<compile_context>
chip_gen: v7x
topology: tpu7x:2x2x1
jax: 0.10.0
libtpu: 0.0.40
codegen_flags: <defaults>
</compile_context>

<pallas_src>
import functools

import jax
import jax.numpy as jnp
from jax.experimental import pallas as pl
from jax.experimental.pallas import tpu as pltpu

_LANE = 128
_SUBLANE = 8

_W_NAMES = ("wir", "wiz", "win", "whr", "whz", "whn")
_B_NAMES = ("bir", "biz", "bin", "bhr", "bhz", "bhn")


def _round_up(x, m):
    return (x + m - 1) // m * m


# ----------------------------------------------------------------------------
# Fused kernel: wavefront 2-layer GRU + LayerNorm + Linear, VMEM-resident.
# ----------------------------------------------------------------------------
def _fused_kernel(x_ref,
                  wi1_ref, wh1_ref, bx1_ref, bhn1_ref,
                  w2_ref, b2x_ref, bhn2_ref,
                  gamma_ref, beta_ref, fcw_ref, fcb_ref,
                  out_ref,
                  gx_ref,
                  *, hidden, t_steps, bp):
    hp = wh1_ref.shape[0]          # padded hidden width = 128 (one lane block)
    gw2 = w2_ref.shape[1]          # 3 * hp (layer-2 stacked gate width)
    zshift = hp - hidden           # roll to bring z from lanes [H:2H] to [0:H]

    # ---- Layer-1 input projection hoisted over the whole sequence ---------
    # gx columns: [0:hp] = packed r|z pre-acts (+ folded r/z biases),
    #             [hp:2hp] = n x-side pre-act (+ bin).
    gx_ref[...] = (jnp.dot(x_ref[...], wi1_ref[...],
                           preferred_element_type=jnp.float32) + bx1_ref[...])

    # ---- Hoist (1,X) -> (bp,X) bias broadcasts out of the recurrence ------
    bhn1_b = jnp.broadcast_to(bhn1_ref[...], (bp, hp))
    bhn2_b = jnp.broadcast_to(bhn2_ref[...], (bp, hp))
    b2x_b = jnp.broadcast_to(b2x_ref[...], (bp, gw2))
    zeros_bh = jnp.zeros((bp, hp), jnp.float32)

    def cell(g_rz, g_nx, g_nh, bhn_b, h_prev):
        # g_rz: packed r|z pre-activation (r at lanes [0:H], z at [H:2H]).
        # g_nx: x-side n pre-activation (incl. bin); g_nh: h-side (excl. bhn).
        rz = jax.nn.sigmoid(g_rz)
        # r (lanes [0:H]) lines up with the real n lanes; the z / pad lanes of
        # g_nh and bhn_b are exactly zero so they contribute tanh(0) = 0.
        n = jnp.tanh(g_nx + rz * (g_nh + bhn_b))
        z = pltpu.roll(rz, shift=zshift, axis=1)   # z -> lanes [0:H]
        return (1.0 - z) * n + z * h_prev          # pad lanes stay exactly 0

    def layer2(h1_prev, h2_prev):
        # Single fused dot: [h1, h2] @ [wi2 ; wh2] with the n gate split into
        # separate x-side / h-side column blocks (r must only scale h-side).
        hcat = jnp.concatenate([h1_prev, h2_prev], axis=1)          # (bp, 2hp)
        g2 = jnp.dot(hcat, w2_ref[...],
                     preferred_element_type=jnp.float32) + b2x_b    # (bp, 3hp)
        return cell(g2[:, 0:hp], g2[:, hp:2 * hp], g2[:, 2 * hp:3 * hp],
                    bhn2_b, h2_prev)

    # ---- Wavefront step s = 0: layer 1 only (h1_prev = 0 => gh1 = 0) ------
    gx0 = gx_ref[pl.ds(0, bp), :]
    h1 = cell(gx0[:, 0:hp], gx0[:, hp:2 * hp], zeros_bh, bhn1_b, zeros_bh)
    h2 = zeros_bh

    # ---- Wavefront steps s = 1 .. T-1: h1[s] and h2[s-1] together ---------
    def step(s, carry):
        h1_prev, h2_prev = carry
        row = pl.multiple_of(s * bp, bp)
        gx = gx_ref[pl.ds(row, bp), :]                               # (bp, 2hp)
        gh1 = jnp.dot(h1_prev, wh1_ref[...],
                      preferred_element_type=jnp.float32)            # (bp, 2hp)
        h1_new = cell(gx[:, 0:hp] + gh1[:, 0:hp], gx[:, hp:2 * hp],
                      gh1[:, hp:2 * hp], bhn1_b, h1_prev)
        h2_new = layer2(h1_prev, h2_prev)
        return (h1_new, h2_new)

    h1, h2 = jax.lax.fori_loop(1, t_steps, step, (h1, h2), unroll=True)

    # ---- Wavefront step s = T: final layer-2 step -> h2[T-1] --------------
    h_last = layer2(h1, h2)                                          # (bp, hp)

    # ---- Head: masked LayerNorm over the real `hidden` lanes, then Linear -
    lane = jax.lax.broadcasted_iota(jnp.int32, (1, hp), 1)
    mask = (lane < hidden).astype(jnp.float32)                       # (1, hp)
    inv_h = 1.0 / float(hidden)
    hm = h_last * mask
    mean = jnp.sum(hm, axis=-1, keepdims=True) * inv_h
    diff = (hm - mean) * mask
    var = jnp.sum(diff * diff, axis=-1, keepdims=True) * inv_h
    normed = diff * jax.lax.rsqrt(var + 1e-5)
    y = normed * gamma_ref[...] + beta_ref[...]                      # pads -> 0
    out_ref[...] = (jnp.dot(y, fcw_ref[...],
                            preferred_element_type=jnp.float32) + fcb_ref[...])


# ----------------------------------------------------------------------------
# Parameter packing: packed r|z gates, stacked layer-2 weights, folded biases.
# ----------------------------------------------------------------------------
def prepare_params(gru_params, gamma, beta, fc_w, fc_b):
    assert len(gru_params) == 2, "fused kernel implements the 2-layer module"
    H = int(gamma.shape[0])
    assert 2 * H <= _LANE, "packed r|z gate layout requires hidden_size <= 64"
    Hp = _LANE
    O = int(fc_w.shape[1])
    Op = _round_up(O, _LANE)
    I = int(gru_params[0]["wir"].shape[0])
    p1, p2 = gru_params

    # Layer 1 input-projection weight (I, 2*Hp): cols [0:H]=r, [H:2H]=z,
    # [Hp:Hp+H]=n; everything else zero-padded.
    wi1 = jnp.zeros((I, 2 * Hp), jnp.float32)
    wi1 = wi1.at[:, 0:H].set(p1["wir"])
    wi1 = wi1.at[:, H:2 * H].set(p1["wiz"])
    wi1 = wi1.at[:, Hp:Hp + H].set(p1["win"])

    bx1 = jnp.zeros((1, 2 * Hp), jnp.float32)
    bx1 = bx1.at[0, 0:H].set(p1["bir"] + p1["bhr"])
    bx1 = bx1.at[0, H:2 * H].set(p1["biz"] + p1["bhz"])
    bx1 = bx1.at[0, Hp:Hp + H].set(p1["bin"])

    wh1 = jnp.zeros((Hp, 2 * Hp), jnp.float32)
    wh1 = wh1.at[0:H, 0:H].set(p1["whr"])
    wh1 = wh1.at[0:H, H:2 * H].set(p1["whz"])
    wh1 = wh1.at[0:H, Hp:Hp + H].set(p1["whn"])

    bhn1 = jnp.zeros((1, Hp), jnp.float32).at[0, 0:H].set(p1["bhn"])

    # Layer-2 stacked weight (2*Hp, 3*Hp):
    #   rows [0:Hp]   = h1 side (wi2), rows [Hp:2Hp] = h2 side (wh2)
    #   cols [0:Hp]   = packed r|z (both row halves contribute)
    #   cols [Hp:2Hp] = n x-side only; cols [2Hp:3Hp] = n h-side only
    w2 = jnp.zeros((2 * Hp, 3 * Hp), jnp.float32)
    w2 = w2.at[0:H, 0:H].set(p2["wir"])
    w2 = w2.at[0:H, H:2 * H].set(p2["wiz"])
    w2 = w2.at[0:H, Hp:Hp + H].set(p2["win"])
    w2 = w2.at[Hp:Hp + H, 0:H].set(p2["whr"])
    w2 = w2.at[Hp:Hp + H, H:2 * H].set(p2["whz"])
    w2 = w2.at[Hp:Hp + H, 2 * Hp:2 * Hp + H].set(p2["whn"])

    b2x = jnp.zeros((1, 3 * Hp), jnp.float32)
    b2x = b2x.at[0, 0:H].set(p2["bir"] + p2["bhr"])
    b2x = b2x.at[0, H:2 * H].set(p2["biz"] + p2["bhz"])
    b2x = b2x.at[0, Hp:Hp + H].set(p2["bin"])

    bhn2 = jnp.zeros((1, Hp), jnp.float32).at[0, 0:H].set(p2["bhn"])

    gamma_p = jnp.zeros((1, Hp), jnp.float32).at[0, :H].set(gamma)
    beta_p = jnp.zeros((1, Hp), jnp.float32).at[0, :H].set(beta)
    fcw_p = jnp.zeros((Hp, Op), jnp.float32).at[:H, :O].set(fc_w)
    fcb_p = jnp.zeros((1, Op), jnp.float32).at[0, :O].set(fc_b)

    return dict(wi1=wi1, wh1=wh1, bx1=bx1, bhn1=bhn1,
                w2=w2, b2x=b2x, bhn2=bhn2,
                gamma=gamma_p, beta=beta_p, fcw=fcw_p, fcb=fcb_p,
                H=H, Hp=Hp, O=O, Op=Op, I=I)


# ----------------------------------------------------------------------------
# Full forward
# ----------------------------------------------------------------------------
def path_gru_forward(x_btf, prep):
    """x_btf: (B, T, input_size) float32 (batch_first, like PyTorch)."""
    B, T, I = x_btf.shape
    Bp = _round_up(max(B, _SUBLANE), _SUBLANE)
    Hp, Op = prep["Hp"], prep["Op"]

    # Time-major, batch padded to full sublanes, flattened to (T*Bp, I) so
    # time step t is the contiguous row block [t*Bp, (t+1)*Bp).
    x_tm = jnp.transpose(x_btf, (1, 0, 2))
    if Bp != B:
        x_tm = jnp.pad(x_tm, ((0, 0), (0, Bp - B), (0, 0)))
    x_flat = x_tm.reshape(T * Bp, I)

    kernel = functools.partial(_fused_kernel, hidden=prep["H"],
                               t_steps=T, bp=Bp)

    # Explicit scoped-VMEM budget: inputs + packed weights + gx scratch + out,
    # doubled for operand staging, with headroom; capped under v7x's 64 MiB.
    vmem_bytes = 4 * (T * Bp * I                # x_flat
                      + T * Bp * 2 * Hp         # gx scratch
                      + I * 2 * Hp              # wi1
                      + Hp * 2 * Hp             # wh1
                      + 2 * Hp * 3 * Hp         # stacked layer-2 weight
                      + Hp * Op                 # fc weight
                      + 10 * Hp + Op            # biases / gamma / beta
                      + Bp * Op)                # output
    vmem_limit = min(2 * vmem_bytes + (16 << 20), 64 << 20)

    out_p = pl.pallas_call(
        kernel,
        out_shape=jax.ShapeDtypeStruct((Bp, Op), jnp.float32),
        scratch_shapes=[
            pltpu.VMEM((T * Bp, 2 * Hp), jnp.float32),   # layer-1 gate pre-acts
        ],
        compiler_params=pltpu.CompilerParams(vmem_limit_bytes=vmem_limit),
    )(x_flat, prep["wi1"], prep["wh1"], prep["bx1"], prep["bhn1"],
      prep["w2"], prep["b2x"], prep["bhn2"],
      prep["gamma"], prep["beta"], prep["fcw"], prep["fcb"])

    return out_p[:B, :prep["O"]]


# ----------------------------------------------------------------------------
# Pure-JAX reference (same math, unpadded) for a correctness check.
# ----------------------------------------------------------------------------
def path_gru_ref(x_btf, gru_params, gamma, beta, fc_w, fc_b):
    B, T, _ = x_btf.shape
    seq = x_btf
    for p in gru_params:
        H = p["whr"].shape[0]
        h = jnp.zeros((B, H), jnp.float32)
        outs = []
        for t in range(T):
            x_t = seq[:, t, :]
            r = jax.nn.sigmoid(x_t @ p["wir"] + p["bir"] + h @ p["whr"] + p["bhr"])
            z = jax.nn.sigmoid(x_t @ p["wiz"] + p["biz"] + h @ p["whz"] + p["bhz"])
            n = jnp.tanh(x_t @ p["win"] + p["bin"] + r * (h @ p["whn"] + p["bhn"]))
            h = (1.0 - z) * n + z * h
            outs.append(h)
        seq = jnp.stack(outs, axis=1)
    last = seq[:, -1, :]
    mean = last.mean(-1, keepdims=True)
    var = ((last - mean) ** 2).mean(-1, keepdims=True)
    normed = (last - mean) / jnp.sqrt(var + 1e-5)
    return (normed * gamma + beta) @ fc_w + fc_b


# ----------------------------------------------------------------------------
# Deterministic parameter construction (PyTorch-style uniform(-1/sqrt(H), ...))
# ----------------------------------------------------------------------------
def make_params(key, input_size, hidden_size, num_layers, output_size):
    bound = 1.0 / jnp.sqrt(hidden_size)
    gru_params = []
    for layer in range(num_layers):
        in_dim = input_size if layer == 0 else hidden_size
        p = {}
        for name in _W_NAMES:
            key, sub = jax.random.split(key)
            d0 = in_dim if name.startswith("wi") else hidden_size
            p[name] = jax.random.uniform(sub, (d0, hidden_size), jnp.float32,
                                         minval=-bound, maxval=bound)
        for name in _B_NAMES:
            key, sub = jax.random.split(key)
            p[name] = jax.random.uniform(sub, (hidden_size,), jnp.float32,
                                         minval=-bound, maxval=bound)
        gru_params.append(p)

    gamma = jnp.ones((hidden_size,), jnp.float32)
    beta = jnp.zeros((hidden_size,), jnp.float32)
    key, sub = jax.random.split(key)
    fc_bound = 1.0 / jnp.sqrt(hidden_size)
    fc_w = jax.random.uniform(sub, (hidden_size, output_size), jnp.float32,
                              minval=-fc_bound, maxval=fc_bound)
    key, sub = jax.random.split(key)
    fc_b = jax.random.uniform(sub, (output_size,), jnp.float32,
                              minval=-fc_bound, maxval=fc_bound)
    return gru_params, gamma, beta, fc_w, fc_b


if __name__ == "__main__":
    B, T = 4, 8
    INPUT, HIDDEN, LAYERS, OUTPUT = 8, 64, 2, 3

    key = jax.random.PRNGKey(0)
    key, xkey = jax.random.split(key)
    x = jax.random.normal(xkey, (B, T, INPUT), jnp.float32)

    gru_params, gamma, beta, fc_w, fc_b = make_params(key, INPUT, HIDDEN,
                                                      LAYERS, OUTPUT)
    prep = prepare_params(gru_params, gamma, beta, fc_w, fc_b)

    out = path_gru_forward(x, prep)
    out = jax.block_until_ready(out)

    ref = path_gru_ref(x, gru_params, gamma, beta, fc_w, fc_b)
    if not jnp.allclose(out, ref, rtol=1e-4, atol=1e-4):
        raise AssertionError("Pallas kernel output does not match JAX reference")

    print("KERNEL_OK")
</pallas_src>

<mosaic_0001>
module attributes {stable_mosaic.version = 11 : i64} {
  func.func @_fused_kernel(%arg0: memref<64x8xf32, #tpu.memory_space<vmem>>, %arg1: memref<8x256xf32, #tpu.memory_space<vmem>>, %arg2: memref<128x256xf32, #tpu.memory_space<vmem>>, %arg3: memref<1x256xf32, #tpu.memory_space<vmem>>, %arg4: memref<1x128xf32, #tpu.memory_space<vmem>>, %arg5: memref<256x384xf32, #tpu.memory_space<vmem>>, %arg6: memref<1x384xf32, #tpu.memory_space<vmem>>, %arg7: memref<1x128xf32, #tpu.memory_space<vmem>>, %arg8: memref<1x128xf32, #tpu.memory_space<vmem>>, %arg9: memref<1x128xf32, #tpu.memory_space<vmem>>, %arg10: memref<128x128xf32, #tpu.memory_space<vmem>>, %arg11: memref<1x128xf32, #tpu.memory_space<vmem>>, %arg12: memref<8x128xf32, #tpu.memory_space<vmem>>, %arg13: memref<64x256xf32, #tpu.memory_space<vmem>>) attributes {dimension_semantics = [], scalar_prefetch = 0 : i64, scratch_operands = 1 : i64, tpu.core_type = #tpu.core_type<tc>} {
    %c0 = arith.constant 0 : index
    %c0_0 = arith.constant 0 : index
    %0 = vector.load %arg0[%c0, %c0_0] : memref<64x8xf32, #tpu.memory_space<vmem>>, vector<64x8xf32>
    %c0_1 = arith.constant 0 : index
    %c0_2 = arith.constant 0 : index
    %1 = vector.load %arg1[%c0_1, %c0_2] : memref<8x256xf32, #tpu.memory_space<vmem>>, vector<8x256xf32>
    %cst = arith.constant dense<0.000000e+00> : vector<64x256xf32>
    %2 = tpu.matmul %0, %1, %cst {dimension_numbers = #tpu.dot_dimension_numbers<[1], [0], [0], [1], [0, 0, 1, 1], [], []>} : vector<64x8xf32>, vector<8x256xf32>, vector<64x256xf32> -> vector<64x256xf32>
    %c0_3 = arith.constant 0 : index
    %c0_4 = arith.constant 0 : index
    %3 = vector.load %arg3[%c0_3, %c0_4] : memref<1x256xf32, #tpu.memory_space<vmem>>, vector<1x256xf32>
    %4 = vector.broadcast %3 : vector<1x256xf32> to vector<64x256xf32>
    %5 = arith.addf %2, %4 : vector<64x256xf32>
    %c0_5 = arith.constant 0 : index
    %c0_6 = arith.constant 0 : index
    %6 = vector.load %arg13[%c0_5, %c0_6] : memref<64x256xf32, #tpu.memory_space<vmem>>, vector<64x256xf32>
    tpu.vector_store %arg13[%c0_5, %c0_6], %5 {strides = array<i32>} : memref<64x256xf32, #tpu.memory_space<vmem>>, vector<64x256xf32>,
    %c0_7 = arith.constant 0 : index
    %c0_8 = arith.constant 0 : index
    %7 = vector.load %arg4[%c0_7, %c0_8] : memref<1x128xf32, #tpu.memory_space<vmem>>, vector<1x128xf32>
    %8 = vector.shape_cast %7 : vector<1x128xf32> to vector<1x128xf32>
    %9 = vector.broadcast %8 : vector<1x128xf32> to vector<8x128xf32>
    %c0_9 = arith.constant 0 : index
    %c0_10 = arith.constant 0 : index
    %10 = vector.load %arg7[%c0_9, %c0_10] : memref<1x128xf32, #tpu.memory_space<vmem>>, vector<1x128xf32>
    %11 = vector.shape_cast %10 : vector<1x128xf32> to vector<1x128xf32>
    %12 = vector.broadcast %11 : vector<1x128xf32> to vector<8x128xf32>
    %c0_11 = arith.constant 0 : index
    %c0_12 = arith.constant 0 : index
    %13 = vector.load %arg6[%c0_11, %c0_12] : memref<1x384xf32, #tpu.memory_space<vmem>>, vector<1x384xf32>
    %14 = vector.shape_cast %13 : vector<1x384xf32> to vector<1x384xf32>
    %15 = vector.broadcast %14 : vector<1x384xf32> to vector<8x384xf32>
    %cst_13 = arith.constant 0.000000e+00 : f32
    %16 = vector.broadcast %cst_13 : f32 to vector<8x128xf32>
    %c0_14 = arith.constant 0 : index
    %c0_15 = arith.constant 0 : index
    %17 = vector.load %arg13[%c0_14, %c0_15] : memref<64x256xf32, #tpu.memory_space<vmem>>, vector<8x256xf32>
    %18 = vector.extract_strided_slice %17 {offsets = [0, 0], sizes = [8, 128], strides = [1, 1]} : vector<8x256xf32> to vector<8x128xf32>
    %19 = vector.extract_strided_slice %17 {offsets = [0, 128], sizes = [8, 128], strides = [1, 1]} : vector<8x256xf32> to vector<8x128xf32>
    %20 = arith.negf %18 : vector<8x128xf32>
    %21 = math.exp %20 : vector<8x128xf32>
    %cst_16 = arith.constant 1.000000e+00 : f32
    %22 = vector.broadcast %cst_16 : f32 to vector<8x128xf32>
    %23 = arith.addf %22, %21 : vector<8x128xf32>
    %24 = arith.divf %22, %23 : vector<8x128xf32>
    %25 = arith.addf %16, %9 : vector<8x128xf32>
    %26 = arith.mulf %24, %25 : vector<8x128xf32>
    %27 = arith.addf %19, %26 : vector<8x128xf32>
    %28 = math.tanh %27 : vector<8x128xf32>
    %c64_i32 = arith.constant 64 : i32
    %29 = tpu.dynamic_rotate %24 by %c64_i32 dim 1 : vector<8x128xf32>, i32 -> vector<8x128xf32>
    %cst_17 = arith.constant 1.000000e+00 : f32
    %30 = vector.broadcast %cst_17 : f32 to vector<8x128xf32>
    %31 = arith.subf %30, %29 : vector<8x128xf32>
    %32 = arith.mulf %31, %28 : vector<8x128xf32>
    %33 = arith.mulf %29, %16 : vector<8x128xf32>
    %34 = arith.addf %32, %33 : vector<8x128xf32>
    %c1_i32 = arith.constant 1 : i32
    %c8_i32 = arith.constant 8 : i32
    %35 = arith.muli %c1_i32, %c8_i32 : i32
    %36 = tpu.assume_multiple %35, 8 : i32
    %37 = arith.index_cast %36 : i32 to index
    %c0_18 = arith.constant 0 : index
    %38 = vector.load %arg13[%37, %c0_18] : memref<64x256xf32, #tpu.memory_space<vmem>>, vector<8x256xf32>
    %c0_19 = arith.constant 0 : index
    %c0_20 = arith.constant 0 : index
    %39 = vector.load %arg2[%c0_19, %c0_20] : memref<128x256xf32, #tpu.memory_space<vmem>>, vector<128x256xf32>
    %cst_21 = arith.constant dense<0.000000e+00> : vector<8x256xf32>
    %40 = tpu.matmul %34, %39, %cst_21 {dimension_numbers = #tpu.dot_dimension_numbers<[1], [0], [0], [1], [0, 0, 1, 1], [], []>} : vector<8x128xf32>, vector<128x256xf32>, vector<8x256xf32> -> vector<8x256xf32>
    %41 = vector.extract_strided_slice %38 {offsets = [0, 0], sizes = [8, 128], strides = [1, 1]} : vector<8x256xf32> to vector<8x128xf32>
    %42 = vector.extract_strided_slice %40 {offsets = [0, 0], sizes = [8, 128], strides = [1, 1]} : vector<8x256xf32> to vector<8x128xf32>
    %43 = arith.addf %41, %42 : vector<8x128xf32>
    %44 = vector.extract_strided_slice %38 {offsets = [0, 128], sizes = [8, 128], strides = [1, 1]} : vector<8x256xf32> to vector<8x128xf32>
    %45 = vector.extract_strided_slice %40 {offsets = [0, 128], sizes = [8, 128], strides = [1, 1]} : vector<8x256xf32> to vector<8x128xf32>
    %46 = arith.negf %43 : vector<8x128xf32>
    %47 = math.exp %46 : vector<8x128xf32>
    %cst_22 = arith.constant 1.000000e+00 : f32
    %48 = vector.broadcast %cst_22 : f32 to vector<8x128xf32>
    %49 = arith.addf %48, %47 : vector<8x128xf32>
    %50 = arith.divf %48, %49 : vector<8x128xf32>
    %51 = arith.addf %45, %9 : vector<8x128xf32>
    %52 = arith.mulf %50, %51 : vector<8x128xf32>
    %53 = arith.addf %44, %52 : vector<8x128xf32>
    %54 = math.tanh %53 : vector<8x128xf32>
    %c64_i32_23 = arith.constant 64 : i32
    %55 = tpu.dynamic_rotate %50 by %c64_i32_23 dim 1 : vector<8x128xf32>, i32 -> vector<8x128xf32>
    %cst_24 = arith.constant 1.000000e+00 : f32
    %56 = vector.broadcast %cst_24 : f32 to vector<8x128xf32>
    %57 = arith.subf %56, %55 : vector<8x128xf32>
    %58 = arith.mulf %57, %54 : vector<8x128xf32>
    %59 = arith.mulf %55, %34 : vector<8x128xf32>
    %60 = arith.addf %58, %59 : vector<8x128xf32>
    %61 = tpu.concatenate %34, %16 in 1 : vector<8x128xf32>, vector<8x128xf32> -> vector<8x256xf32>
    %c0_25 = arith.constant 0 : index
    %c0_26 = arith.constant 0 : index
    %62 = vector.load %arg5[%c0_25, %c0_26] : memref<256x384xf32, #tpu.memory_space<vmem>>, vector<256x384xf32>
    %cst_27 = arith.constant dense<0.000000e+00> : vector<8x384xf32>
    %63 = tpu.matmul %61, %62, %cst_27 {dimension_numbers = #tpu.dot_dimension_numbers<[1], [0], [0], [1], [0, 0, 1, 1], [], []>} : vector<8x256xf32>, vector<256x384xf32>, vector<8x384xf32> -> vector<8x384xf32>
    %64 = arith.addf %63, %15 : vector<8x384xf32>
    %65 = vector.extract_strided_slice %64 {offsets = [0, 0], sizes = [8, 128], strides = [1, 1]} : vector<8x384xf32> to vector<8x128xf32>
    %66 = vector.extract_strided_slice %64 {offsets = [0, 128], sizes = [8, 128], strides = [1, 1]} : vector<8x384xf32> to vector<8x128xf32>
    %67 = vector.extract_strided_slice %64 {offsets = [0, 256], sizes = [8, 128], strides = [1, 1]} : vector<8x384xf32> to vector<8x128xf32>
    %68 = arith.negf %65 : vector<8x128xf32>
    %69 = math.exp %68 : vector<8x128xf32>
    %cst_28 = arith.constant 1.000000e+00 : f32
    %70 = vector.broadcast %cst_28 : f32 to vector<8x128xf32>
    %71 = arith.addf %70, %69 : vector<8x128xf32>
    %72 = arith.divf %70, %71 : vector<8x128xf32>
    %73 = arith.addf %67, %12 : vector<8x128xf32>
    %74 = arith.mulf %72, %73 : vector<8x128xf32>
    %75 = arith.addf %66, %74 : vector<8x128xf32>
    %76 = math.tanh %75 : vector<8x128xf32>
    %c64_i32_29 = arith.constant 64 : i32
    %77 = tpu.dynamic_rotate %72 by %c64_i32_29 dim 1 : vector<8x128xf32>, i32 -> vector<8x128xf32>
    %cst_30 = arith.constant 1.000000e+00 : f32
    %78 = vector.broadcast %cst_30 : f32 to vector<8x128xf32>
    %79 = arith.subf %78, %77 : vector<8x128xf32>
    %80 = arith.mulf %79, %76 : vector<8x128xf32>
    %81 = arith.mulf %77, %16 : vector<8x128xf32>
    %82 = arith.addf %80, %81 : vector<8x128xf32>
    %c2_i32 = arith.constant 2 : i32
    %c8_i32_31 = arith.constant 8 : i32
    %83 = arith.muli %c2_i32, %c8_i32_31 : i32
    %84 = tpu.assume_multiple %83, 8 : i32
    %85 = arith.index_cast %84 : i32 to index
    %c0_32 = arith.constant 0 : index
    %86 = vector.load %arg13[%85, %c0_32] : memref<64x256xf32, #tpu.memory_space<vmem>>, vector<8x256xf32>
    %c0_33 = arith.constant 0 : index
    %c0_34 = arith.constant 0 : index
    %87 = vector.load %arg2[%c0_33, %c0_34] : memref<128x256xf32, #tpu.memory_space<vmem>>, vector<128x256xf32>
    %cst_35 = arith.constant dense<0.000000e+00> : vector<8x256xf32>
    %88 = tpu.matmul %60, %87, %cst_35 {dimension_numbers = #tpu.dot_dimension_numbers<[1], [0], [0], [1], [0, 0, 1, 1], [], []>} : vector<8x128xf32>, vector<128x256xf32>, vector<8x256xf32> -> vector<8x256xf32>
    %89 = vector.extract_strided_slice %86 {offsets = [0, 0], sizes = [8, 128], strides = [1, 1]} : vector<8x256xf32> to vector<8x128xf32>
    %90 = vector.extract_strided_slice %88 {offsets = [0, 0], sizes = [8, 128], strides = [1, 1]} : vector<8x256xf32> to vector<8x128xf32>
    %91 = arith.addf %89, %90 : vector<8x128xf32>
    %92 = vector.extract_strided_slice %86 {offsets = [0, 128], sizes = [8, 128], strides = [1, 1]} : vector<8x256xf32> to vector<8x128xf32>
    %93 = vector.extract_strided_slice %88 {offsets = [0, 128], sizes = [8, 128], strides = [1, 1]} : vector<8x256xf32> to vector<8x128xf32>
    %94 = arith.negf %91 : vector<8x128xf32>
    %95 = math.exp %94 : vector<8x128xf32>
    %cst_36 = arith.constant 1.000000e+00 : f32
    %96 = vector.broadcast %cst_36 : f32 to vector<8x128xf32>
    %97 = arith.addf %96, %95 : vector<8x128xf32>
    %98 = arith.divf %96, %97 : vector<8x128xf32>
    %99 = arith.addf %93, %9 : vector<8x128xf32>
    %100 = arith.mulf %98, %99 : vector<8x128xf32>
    %101 = arith.addf %92, %100 : vector<8x128xf32>
    %102 = math.tanh %101 : vector<8x128xf32>
    %c64_i32_37 = arith.constant 64 : i32
    %103 = tpu.dynamic_rotate %98 by %c64_i32_37 dim 1 : vector<8x128xf32>, i32 -> vector<8x128xf32>
    %cst_38 = arith.constant 1.000000e+00 : f32
    %104 = vector.broadcast %cst_38 : f32 to vector<8x128xf32>
    %105 = arith.subf %104, %103 : vector<8x128xf32>
    %106 = arith.mulf %105, %102 : vector<8x128xf32>
    %107 = arith.mulf %103, %60 : vector<8x128xf32>
    %108 = arith.addf %106, %107 : vector<8x128xf32>
    %109 = tpu.concatenate %60, %82 in 1 : vector<8x128xf32>, vector<8x128xf32> -> vector<8x256xf32>
    %c0_39 = arith.constant 0 : index
    %c0_40 = arith.constant 0 : index
    %110 = vector.load %arg5[%c0_39, %c0_40] : memref<256x384xf32, #tpu.memory_space<vmem>>, vector<256x384xf32>
    %cst_41 = arith.constant dense<0.000000e+00> : vector<8x384xf32>
    %111 = tpu.matmul %109, %110, %cst_41 {dimension_numbers = #tpu.dot_dimension_numbers<[1], [0], [0], [1], [0, 0, 1, 1], [], []>} : vector<8x256xf32>, vector<256x384xf32>, vector<8x384xf32> -> vector<8x384xf32>
    %112 = arith.addf %111, %15 : vector<8x384xf32>
    %113 = vector.extract_strided_slice %112 {offsets = [0, 0], sizes = [8, 128], strides = [1, 1]} : vector<8x384xf32> to vector<8x128xf32>
    %114 = vector.extract_strided_slice %112 {offsets = [0, 128], sizes = [8, 128], strides = [1, 1]} : vector<8x384xf32> to vector<8x128xf32>
    %115 = vector.extract_strided_slice %112 {offsets = [0, 256], sizes = [8, 128], strides = [1, 1]} : vector<8x384xf32> to vector<8x128xf32>
    %116 = arith.negf %113 : vector<8x128xf32>
    %117 = math.exp %116 : vector<8x128xf32>
    %cst_42 = arith.constant 1.000000e+00 : f32
    %118 = vector.broadcast %cst_42 : f32 to vector<8x128xf32>
    %119 = arith.addf %118, %117 : vector<8x128xf32>
    %120 = arith.divf %118, %119 : vector<8x128xf32>
    %121 = arith.addf %115, %12 : vector<8x128xf32>
    %122 = arith.mulf %120, %121 : vector<8x128xf32>
    %123 = arith.addf %114, %122 : vector<8x128xf32>
    %124 = math.tanh %123 : vector<8x128xf32>
    %c64_i32_43 = arith.constant 64 : i32
    %125 = tpu.dynamic_rotate %120 by %c64_i32_43 dim 1 : vector<8x128xf32>, i32 -> vector<8x128xf32>
    %cst_44 = arith.constant 1.000000e+00 : f32
    %126 = vector.broadcast %cst_44 : f32 to vector<8x128xf32>
    %127 = arith.subf %126, %125 : vector<8x128xf32>
    %128 = arith.mulf %127, %124 : vector<8x128xf32>
    %129 = arith.mulf %125, %82 : vector<8x128xf32>
    %130 = arith.addf %128, %129 : vector<8x128xf32>
    %c3_i32 = arith.constant 3 : i32
    %c8_i32_45 = arith.constant 8 : i32
    %131 = arith.muli %c3_i32, %c8_i32_45 : i32
    %132 = tpu.assume_multiple %131, 8 : i32
    %133 = arith.index_cast %132 : i32 to index
    %c0_46 = arith.constant 0 : index
    %134 = vector.load %arg13[%133, %c0_46] : memref<64x256xf32, #tpu.memory_space<vmem>>, vector<8x256xf32>
    %c0_47 = arith.constant 0 : index
    %c0_48 = arith.constant 0 : index
    %135 = vector.load %arg2[%c0_47, %c0_48] : memref<128x256xf32, #tpu.memory_space<vmem>>, vector<128x256xf32>
    %cst_49 = arith.constant dense<0.000000e+00> : vector<8x256xf32>
    %136 = tpu.matmul %108, %135, %cst_49 {dimension_numbers = #tpu.dot_dimension_numbers<[1], [0], [0], [1], [0, 0, 1, 1], [], []>} : vector<8x128xf32>, vector<128x256xf32>, vector<8x256xf32> -> vector<8x256xf32>
    %137 = vector.extract_strided_slice %134 {offsets = [0, 0], sizes = [8, 128], strides = [1, 1]} : vector<8x256xf32> to vector<8x128xf32>
    %138 = vector.extract_strided_slice %136 {offsets = [0, 0], sizes = [8, 128], strides = [1, 1]} : vector<8x256xf32> to vector<8x128xf32>
    %139 = arith.addf %137, %138 : vector<8x128xf32>
    %140 = vector.extract_strided_slice %134 {offsets = [0, 128], sizes = [8, 128], strides = [1, 1]} : vector<8x256xf32> to vector<8x128xf32>
    %141 = vector.extract_strided_slice %136 {offsets = [0, 128], sizes = [8, 128], strides = [1, 1]} : vector<8x256xf32> to vector<8x128xf32>
    %142 = arith.negf %139 : vector<8x128xf32>
    %143 = math.exp %142 : vector<8x128xf32>
    %cst_50 = arith.constant 1.000000e+00 : f32
    %144 = vector.broadcast %cst_50 : f32 to vector<8x128xf32>
    %145 = arith.addf %144, %143 : vector<8x128xf32>
    %146 = arith.divf %144, %145 : vector<8x128xf32>
    %147 = arith.addf %141, %9 : vector<8x128xf32>
    %148 = arith.mulf %146, %147 : vector<8x128xf32>
    %149 = arith.addf %140, %148 : vector<8x128xf32>
    %150 = math.tanh %149 : vector<8x128xf32>
    %c64_i32_51 = arith.constant 64 : i32
    %151 = tpu.dynamic_rotate %146 by %c64_i32_51 dim 1 : vector<8x128xf32>, i32 -> vector<8x128xf32>
    %cst_52 = arith.constant 1.000000e+00 : f32
    %152 = vector.broadcast %cst_52 : f32 to vector<8x128xf32>
    %153 = arith.subf %152, %151 : vector<8x128xf32>
    %154 = arith.mulf %153, %150 : vector<8x128xf32>
    %155 = arith.mulf %151, %108 : vector<8x128xf32>
    %156 = arith.addf %154, %155 : vector<8x128xf32>
    %157 = tpu.concatenate %108, %130 in 1 : vector<8x128xf32>, vector<8x128xf32> -> vector<8x256xf32>
    %c0_53 = arith.constant 0 : index
    %c0_54 = arith.constant 0 : index
    %158 = vector.load %arg5[%c0_53, %c0_54] : memref<256x384xf32, #tpu.memory_space<vmem>>, vector<256x384xf32>
    %cst_55 = arith.constant dense<0.000000e+00> : vector<8x384xf32>
    %159 = tpu.matmul %157, %158, %cst_55 {dimension_numbers = #tpu.dot_dimension_numbers<[1], [0], [0], [1], [0, 0, 1, 1], [], []>} : vector<8x256xf32>, vector<256x384xf32>, vector<8x384xf32> -> vector<8x384xf32>
    %160 = arith.addf %159, %15 : vector<8x384xf32>
    %161 = vector.extract_strided_slice %160 {offsets = [0, 0], sizes = [8, 128], strides = [1, 1]} : vector<8x384xf32> to vector<8x128xf32>
    %162 = vector.extract_strided_slice %160 {offsets = [0, 128], sizes = [8, 128], strides = [1, 1]} : vector<8x384xf32> to vector<8x128xf32>
    %163 = vector.extract_strided_slice %160 {offsets = [0, 256], sizes = [8, 128], strides = [1, 1]} : vector<8x384xf32> to vector<8x128xf32>
    %164 = arith.negf %161 : vector<8x128xf32>
    %165 = math.exp %164 : vector<8x128xf32>
    %cst_56 = arith.constant 1.000000e+00 : f32
    %166 = vector.broadcast %cst_56 : f32 to vector<8x128xf32>
    %167 = arith.addf %166, %165 : vector<8x128xf32>
    %168 = arith.divf %166, %167 : vector<8x128xf32>
    %169 = arith.addf %163, %12 : vector<8x128xf32>
    %170 = arith.mulf %168, %169 : vector<8x128xf32>
    %171 = arith.addf %162, %170 : vector<8x128xf32>
    %172 = math.tanh %171 : vector<8x128xf32>
    %c64_i32_57 = arith.constant 64 : i32
    %173 = tpu.dynamic_rotate %168 by %c64_i32_57 dim 1 : vector<8x128xf32>, i32 -> vector<8x128xf32>
    %cst_58 = arith.constant 1.000000e+00 : f32
    %174 = vector.broadcast %cst_58 : f32 to vector<8x128xf32>
    %175 = arith.subf %174, %173 : vector<8x128xf32>
    %176 = arith.mulf %175, %172 : vector<8x128xf32>
    %177 = arith.mulf %173, %130 : vector<8x128xf32>
    %178 = arith.addf %176, %177 : vector<8x128xf32>
    %c4_i32 = arith.constant 4 : i32
    %c8_i32_59 = arith.constant 8 : i32
    %179 = arith.muli %c4_i32, %c8_i32_59 : i32
    %180 = tpu.assume_multiple %179, 8 : i32
    %181 = arith.index_cast %180 : i32 to index
    %c0_60 = arith.constant 0 : index
    %182 = vector.load %arg13[%181, %c0_60] : memref<64x256xf32, #tpu.memory_space<vmem>>, vector<8x256xf32>
    %c0_61 = arith.constant 0 : index
    %c0_62 = arith.constant 0 : index
    %183 = vector.load %arg2[%c0_61, %c0_62] : memref<128x256xf32, #tpu.memory_space<vmem>>, vector<128x256xf32>
    %cst_63 = arith.constant dense<0.000000e+00> : vector<8x256xf32>
    %184 = tpu.matmul %156, %183, %cst_63 {dimension_numbers = #tpu.dot_dimension_numbers<[1], [0], [0], [1], [0, 0, 1, 1], [], []>} : vector<8x128xf32>, vector<128x256xf32>, vector<8x256xf32> -> vector<8x256xf32>
    %185 = vector.extract_strided_slice %182 {offsets = [0, 0], sizes = [8, 128], strides = [1, 1]} : vector<8x256xf32> to vector<8x128xf32>
    %186 = vector.extract_strided_slice %184 {offsets = [0, 0], sizes = [8, 128], strides = [1, 1]} : vector<8x256xf32> to vector<8x128xf32>
    %187 = arith.addf %185, %186 : vector<8x128xf32>
    %188 = vector.extract_strided_slice %182 {offsets = [0, 128], sizes = [8, 128], strides = [1, 1]} : vector<8x256xf32> to vector<8x128xf32>
    %189 = vector.extract_strided_slice %184 {offsets = [0, 128], sizes = [8, 128], strides = [1, 1]} : vector<8x256xf32> to vector<8x128xf32>
    %190 = arith.negf %187 : vector<8x128xf32>
    %191 = math.exp %190 : vector<8x128xf32>
    %cst_64 = arith.constant 1.000000e+00 : f32
    %192 = vector.broadcast %cst_64 : f32 to vector<8x128xf32>
    %193 = arith.addf %192, %191 : vector<8x128xf32>
    %194 = arith.divf %192, %193 : vector<8x128xf32>
    %195 = arith.addf %189, %9 : vector<8x128xf32>
    %196 = arith.mulf %194, %195 : vector<8x128xf32>
    %197 = arith.addf %188, %196 : vector<8x128xf32>
    %198 = math.tanh %197 : vector<8x128xf32>
    %c64_i32_65 = arith.constant 64 : i32
    %199 = tpu.dynamic_rotate %194 by %c64_i32_65 dim 1 : vector<8x128xf32>, i32 -> vector<8x128xf32>
    %cst_66 = arith.constant 1.000000e+00 : f32
    %200 = vector.broadcast %cst_66 : f32 to vector<8x128xf32>
    %201 = arith.subf %200, %199 : vector<8x128xf32>
    %202 = arith.mulf %201, %198 : vector<8x128xf32>
    %203 = arith.mulf %199, %156 : vector<8x128xf32>
    %204 = arith.addf %202, %203 : vector<8x128xf32>
    %205 = tpu.concatenate %156, %178 in 1 : vector<8x128xf32>, vector<8x128xf32> -> vector<8x256xf32>
    %c0_67 = arith.constant 0 : index
    %c0_68 = arith.constant 0 : index
    %206 = vector.load %arg5[%c0_67, %c0_68] : memref<256x384xf32, #tpu.memory_space<vmem>>, vector<256x384xf32>
    %cst_69 = arith.constant dense<0.000000e+00> : vector<8x384xf32>
    %207 = tpu.matmul %205, %206, %cst_69 {dimension_numbers = #tpu.dot_dimension_numbers<[1], [0], [0], [1], [0, 0, 1, 1], [], []>} : vector<8x256xf32>, vector<256x384xf32>, vector<8x384xf32> -> vector<8x384xf32>
    %208 = arith.addf %207, %15 : vector<8x384xf32>
    %209 = vector.extract_strided_slice %208 {offsets = [0, 0], sizes = [8, 128], strides = [1, 1]} : vector<8x384xf32> to vector<8x128xf32>
    %210 = vector.extract_strided_slice %208 {offsets = [0, 128], sizes = [8, 128], strides = [1, 1]} : vector<8x384xf32> to vector<8x128xf32>
    %211 = vector.extract_strided_slice %208 {offsets = [0, 256], sizes = [8, 128], strides = [1, 1]} : vector<8x384xf32> to vector<8x128xf32>
    %212 = arith.negf %209 : vector<8x128xf32>
    %213 = math.exp %212 : vector<8x128xf32>
    %cst_70 = arith.constant 1.000000e+00 : f32
    %214 = vector.broadcast %cst_70 : f32 to vector<8x128xf32>
    %215 = arith.addf %214, %213 : vector<8x128xf32>
    %216 = arith.divf %214, %215 : vector<8x128xf32>
    %217 = arith.addf %211, %12 : vector<8x128xf32>
    %218 = arith.mulf %216, %217 : vector<8x128xf32>
    %219 = arith.addf %210, %218 : vector<8x128xf32>
    %220 = math.tanh %219 : vector<8x128xf32>
    %c64_i32_71 = arith.constant 64 : i32
    %221 = tpu.dynamic_rotate %216 by %c64_i32_71 dim 1 : vector<8x128xf32>, i32 -> vector<8x128xf32>
    %cst_72 = arith.constant 1.000000e+00 : f32
    %222 = vector.broadcast %cst_72 : f32 to vector<8x128xf32>
    %223 = arith.subf %222, %221 : vector<8x128xf32>
    %224 = arith.mulf %223, %220 : vector<8x128xf32>
    %225 = arith.mulf %221, %178 : vector<8x128xf32>
    %226 = arith.addf %224, %225 : vector<8x128xf32>
    %c5_i32 = arith.constant 5 : i32
    %c8_i32_73 = arith.constant 8 : i32
    %227 = arith.muli %c5_i32, %c8_i32_73 : i32
    %228 = tpu.assume_multiple %227, 8 : i32
    %229 = arith.index_cast %228 : i32 to index
    %c0_74 = arith.constant 0 : index
    %230 = vector.load %arg13[%229, %c0_74] : memref<64x256xf32, #tpu.memory_space<vmem>>, vector<8x256xf32>
    %c0_75 = arith.constant 0 : index
    %c0_76 = arith.constant 0 : index
    %231 = vector.load %arg2[%c0_75, %c0_76] : memref<128x256xf32, #tpu.memory_space<vmem>>, vector<128x256xf32>
    %cst_77 = arith.constant dense<0.000000e+00> : vector<8x256xf32>
    %232 = tpu.matmul %204, %231, %cst_77 {dimension_numbers = #tpu.dot_dimension_numbers<[1], [0], [0], [1], [0, 0, 1, 1], [], []>} : vector<8x128xf32>, vector<128x256xf32>, vector<8x256xf32> -> vector<8x256xf32>
    %233 = vector.extract_strided_slice %230 {offsets = [0, 0], sizes = [8, 128], strides = [1, 1]} : vector<8x256xf32> to vector<8x128xf32>
    %234 = vector.extract_strided_slice %232 {offsets = [0, 0], sizes = [8, 128], strides = [1, 1]} : vector<8x256xf32> to vector<8x128xf32>
    %235 = arith.addf %233, %234 : vector<8x128xf32>
    %236 = vector.extract_strided_slice %230 {offsets = [0, 128], sizes = [8, 128], strides = [1, 1]} : vector<8x256xf32> to vector<8x128xf32>
    %237 = vector.extract_strided_slice %232 {offsets = [0, 128], sizes = [8, 128], strides = [1, 1]} : vector<8x256xf32> to vector<8x128xf32>
    %238 = arith.negf %235 : vector<8x128xf32>
    %239 = math.exp %238 : vector<8x128xf32>
    %cst_78 = arith.constant 1.000000e+00 : f32
    %240 = vector.broadcast %cst_78 : f32 to vector<8x128xf32>
    %241 = arith.addf %240, %239 : vector<8x128xf32>
    %242 = arith.divf %240, %241 : vector<8x128xf32>
    %243 = arith.addf %237, %9 : vector<8x128xf32>
    %244 = arith.mulf %242, %243 : vector<8x128xf32>
    %245 = arith.addf %236, %244 : vector<8x128xf32>
    %246 = math.tanh %245 : vector<8x128xf32>
    %c64_i32_79 = arith.constant 64 : i32
    %247 = tpu.dynamic_rotate %242 by %c64_i32_79 dim 1 : vector<8x128xf32>, i32 -> vector<8x128xf32>
    %cst_80 = arith.constant 1.000000e+00 : f32
    %248 = vector.broadcast %cst_80 : f32 to vector<8x128xf32>
    %249 = arith.subf %248, %247 : vector<8x128xf32>
    %250 = arith.mulf %249, %246 : vector<8x128xf32>
    %251 = arith.mulf %247, %204 : vector<8x128xf32>
    %252 = arith.addf %250, %251 : vector<8x128xf32>
    %253 = tpu.concatenate %204, %226 in 1 : vector<8x128xf32>, vector<8x128xf32> -> vector<8x256xf32>
    %c0_81 = arith.constant 0 : index
    %c0_82 = arith.constant 0 : index
    %254 = vector.load %arg5[%c0_81, %c0_82] : memref<256x384xf32, #tpu.memory_space<vmem>>, vector<256x384xf32>
    %cst_83 = arith.constant dense<0.000000e+00> : vector<8x384xf32>
    %255 = tpu.matmul %253, %254, %cst_83 {dimension_numbers = #tpu.dot_dimension_numbers<[1], [0], [0], [1], [0, 0, 1, 1], [], []>} : vector<8x256xf32>, vector<256x384xf32>, vector<8x384xf32> -> vector<8x384xf32>
    %256 = arith.addf %255, %15 : vector<8x384xf32>
    %257 = vector.extract_strided_slice %256 {offsets = [0, 0], sizes = [8, 128], strides = [1, 1]} : vector<8x384xf32> to vector<8x128xf32>
    %258 = vector.extract_strided_slice %256 {offsets = [0, 128], sizes = [8, 128], strides = [1, 1]} : vector<8x384xf32> to vector<8x128xf32>
    %259 = vector.extract_strided_slice %256 {offsets = [0, 256], sizes = [8, 128], strides = [1, 1]} : vector<8x384xf32> to vector<8x128xf32>
    %260 = arith.negf %257 : vector<8x128xf32>
    %261 = math.exp %260 : vector<8x128xf32>
    %cst_84 = arith.constant 1.000000e+00 : f32
    %262 = vector.broadcast %cst_84 : f32 to vector<8x128xf32>
    %263 = arith.addf %262, %261 : vector<8x128xf32>
    %264 = arith.divf %262, %263 : vector<8x128xf32>
    %265 = arith.addf %259, %12 : vector<8x128xf32>
    %266 = arith.mulf %264, %265 : vector<8x128xf32>
    %267 = arith.addf %258, %266 : vector<8x128xf32>
    %268 = math.tanh %267 : vector<8x128xf32>
    %c64_i32_85 = arith.constant 64 : i32
    %269 = tpu.dynamic_rotate %264 by %c64_i32_85 dim 1 : vector<8x128xf32>, i32 -> vector<8x128xf32>
    %cst_86 = arith.constant 1.000000e+00 : f32
    %270 = vector.broadcast %cst_86 : f32 to vector<8x128xf32>
    %271 = arith.subf %270, %269 : vector<8x128xf32>
    %272 = arith.mulf %271, %268 : vector<8x128xf32>
    %273 = arith.mulf %269, %226 : vector<8x128xf32>
    %274 = arith.addf %272, %273 : vector<8x128xf32>
    %c6_i32 = arith.constant 6 : i32
    %c8_i32_87 = arith.constant 8 : i32
    %275 = arith.muli %c6_i32, %c8_i32_87 : i32
    %276 = tpu.assume_multiple %275, 8 : i32
    %277 = arith.index_cast %276 : i32 to index
    %c0_88 = arith.constant 0 : index
    %278 = vector.load %arg13[%277, %c0_88] : memref<64x256xf32, #tpu.memory_space<vmem>>, vector<8x256xf32>
    %c0_89 = arith.constant 0 : index
    %c0_90 = arith.constant 0 : index
    %279 = vector.load %arg2[%c0_89, %c0_90] : memref<128x256xf32, #tpu.memory_space<vmem>>, vector<128x256xf32>
    %cst_91 = arith.constant dense<0.000000e+00> : vector<8x256xf32>
    %280 = tpu.matmul %252, %279, %cst_91 {dimension_numbers = #tpu.dot_dimension_numbers<[1], [0], [0], [1], [0, 0, 1, 1], [], []>} : vector<8x128xf32>, vector<128x256xf32>, vector<8x256xf32> -> vector<8x256xf32>
    %281 = vector.extract_strided_slice %278 {offsets = [0, 0], sizes = [8, 128], strides = [1, 1]} : vector<8x256xf32> to vector<8x128xf32>
    %282 = vector.extract_strided_slice %280 {offsets = [0, 0], sizes = [8, 128], strides = [1, 1]} : vector<8x256xf32> to vector<8x128xf32>
    %283 = arith.addf %281, %282 : vector<8x128xf32>
    %284 = vector.extract_strided_slice %278 {offsets = [0, 128], sizes = [8, 128], strides = [1, 1]} : vector<8x256xf32> to vector<8x128xf32>
    %285 = vector.extract_strided_slice %280 {offsets = [0, 128], sizes = [8, 128], strides = [1, 1]} : vector<8x256xf32> to vector<8x128xf32>
    %286 = arith.negf %283 : vector<8x128xf32>
    %287 = math.exp %286 : vector<8x128xf32>
    %cst_92 = arith.constant 1.000000e+00 : f32
    %288 = vector.broadcast %cst_92 : f32 to vector<8x128xf32>
    %289 = arith.addf %288, %287 : vector<8x128xf32>
    %290 = arith.divf %288, %289 : vector<8x128xf32>
    %291 = arith.addf %285, %9 : vector<8x128xf32>
    %292 = arith.mulf %290, %291 : vector<8x128xf32>
    %293 = arith.addf %284, %292 : vector<8x128xf32>
    %294 = math.tanh %293 : vector<8x128xf32>
    %c64_i32_93 = arith.constant 64 : i32
    %295 = tpu.dynamic_rotate %290 by %c64_i32_93 dim 1 : vector<8x128xf32>, i32 -> vector<8x128xf32>
    %cst_94 = arith.constant 1.000000e+00 : f32
    %296 = vector.broadcast %cst_94 : f32 to vector<8x128xf32>
    %297 = arith.subf %296, %295 : vector<8x128xf32>
    %298 = arith.mulf %297, %294 : vector<8x128xf32>
    %299 = arith.mulf %295, %252 : vector<8x128xf32>
    %300 = arith.addf %298, %299 : vector<8x128xf32>
    %301 = tpu.concatenate %252, %274 in 1 : vector<8x128xf32>, vector<8x128xf32> -> vector<8x256xf32>
    %c0_95 = arith.constant 0 : index
    %c0_96 = arith.constant 0 : index
    %302 = vector.load %arg5[%c0_95, %c0_96] : memref<256x384xf32, #tpu.memory_space<vmem>>, vector<256x384xf32>
    %cst_97 = arith.constant dense<0.000000e+00> : vector<8x384xf32>
    %303 = tpu.matmul %301, %302, %cst_97 {dimension_numbers = #tpu.dot_dimension_numbers<[1], [0], [0], [1], [0, 0, 1, 1], [], []>} : vector<8x256xf32>, vector<256x384xf32>, vector<8x384xf32> -> vector<8x384xf32>
    %304 = arith.addf %303, %15 : vector<8x384xf32>
    %305 = vector.extract_strided_slice %304 {offsets = [0, 0], sizes = [8, 128], strides = [1, 1]} : vector<8x384xf32> to vector<8x128xf32>
    %306 = vector.extract_strided_slice %304 {offsets = [0, 128], sizes = [8, 128], strides = [1, 1]} : vector<8x384xf32> to vector<8x128xf32>
    %307 = vector.extract_strided_slice %304 {offsets = [0, 256], sizes = [8, 128], strides = [1, 1]} : vector<8x384xf32> to vector<8x128xf32>
    %308 = arith.negf %305 : vector<8x128xf32>
    %309 = math.exp %308 : vector<8x128xf32>
    %cst_98 = arith.constant 1.000000e+00 : f32
    %310 = vector.broadcast %cst_98 : f32 to vector<8x128xf32>
    %311 = arith.addf %310, %309 : vector<8x128xf32>
    %312 = arith.divf %310, %311 : vector<8x128xf32>
    %313 = arith.addf %307, %12 : vector<8x128xf32>
    %314 = arith.mulf %312, %313 : vector<8x128xf32>
    %315 = arith.addf %306, %314 : vector<8x128xf32>
    %316 = math.tanh %315 : vector<8x128xf32>
    %c64_i32_99 = arith.constant 64 : i32
    %317 = tpu.dynamic_rotate %312 by %c64_i32_99 dim 1 : vector<8x128xf32>, i32 -> vector<8x128xf32>
    %cst_100 = arith.constant 1.000000e+00 : f32
    %318 = vector.broadcast %cst_100 : f32 to vector<8x128xf32>
    %319 = arith.subf %318, %317 : vector<8x128xf32>
    %320 = arith.mulf %319, %316 : vector<8x128xf32>
    %321 = arith.mulf %317, %274 : vector<8x128xf32>
    %322 = arith.addf %320, %321 : vector<8x128xf32>
    %c7_i32 = arith.constant 7 : i32
    %c8_i32_101 = arith.constant 8 : i32
    %323 = arith.muli %c7_i32, %c8_i32_101 : i32
    %324 = tpu.assume_multiple %323, 8 : i32
    %325 = arith.index_cast %324 : i32 to index
    %c0_102 = arith.constant 0 : index
    %326 = vector.load %arg13[%325, %c0_102] : memref<64x256xf32, #tpu.memory_space<vmem>>, vector<8x256xf32>
    %c0_103 = arith.constant 0 : index
    %c0_104 = arith.constant 0 : index
    %327 = vector.load %arg2[%c0_103, %c0_104] : memref<128x256xf32, #tpu.memory_space<vmem>>, vector<128x256xf32>
    %cst_105 = arith.constant dense<0.000000e+00> : vector<8x256xf32>
    %328 = tpu.matmul %300, %327, %cst_105 {dimension_numbers = #tpu.dot_dimension_numbers<[1], [0], [0], [1], [0, 0, 1, 1], [], []>} : vector<8x128xf32>, vector<128x256xf32>, vector<8x256xf32> -> vector<8x256xf32>
    %329 = vector.extract_strided_slice %326 {offsets = [0, 0], sizes = [8, 128], strides = [1, 1]} : vector<8x256xf32> to vector<8x128xf32>
    %330 = vector.extract_strided_slice %328 {offsets = [0, 0], sizes = [8, 128], strides = [1, 1]} : vector<8x256xf32> to vector<8x128xf32>
    %331 = arith.addf %329, %330 : vector<8x128xf32>
    %332 = vector.extract_strided_slice %326 {offsets = [0, 128], sizes = [8, 128], strides = [1, 1]} : vector<8x256xf32> to vector<8x128xf32>
    %333 = vector.extract_strided_slice %328 {offsets = [0, 128], sizes = [8, 128], strides = [1, 1]} : vector<8x256xf32> to vector<8x128xf32>
    %334 = arith.negf %331 : vector<8x128xf32>
    %335 = math.exp %334 : vector<8x128xf32>
    %cst_106 = arith.constant 1.000000e+00 : f32
    %336 = vector.broadcast %cst_106 : f32 to vector<8x128xf32>
    %337 = arith.addf %336, %335 : vector<8x128xf32>
    %338 = arith.divf %336, %337 : vector<8x128xf32>
    %339 = arith.addf %333, %9 : vector<8x128xf32>
    %340 = arith.mulf %338, %339 : vector<8x128xf32>
    %341 = arith.addf %332, %340 : vector<8x128xf32>
    %342 = math.tanh %341 : vector<8x128xf32>
    %c64_i32_107 = arith.constant 64 : i32
    %343 = tpu.dynamic_rotate %338 by %c64_i32_107 dim 1 : vector<8x128xf32>, i32 -> vector<8x128xf32>
    %cst_108 = arith.constant 1.000000e+00 : f32
    %344 = vector.broadcast %cst_108 : f32 to vector<8x128xf32>
    %345 = arith.subf %344, %343 : vector<8x128xf32>
    %346 = arith.mulf %345, %342 : vector<8x128xf32>
    %347 = arith.mulf %343, %300 : vector<8x128xf32>
    %348 = arith.addf %346, %347 : vector<8x128xf32>
    %349 = tpu.concatenate %300, %322 in 1 : vector<8x128xf32>, vector<8x128xf32> -> vector<8x256xf32>
    %c0_109 = arith.constant 0 : index
    %c0_110 = arith.constant 0 : index
    %350 = vector.load %arg5[%c0_109, %c0_110] : memref<256x384xf32, #tpu.memory_space<vmem>>, vector<256x384xf32>
    %cst_111 = arith.constant dense<0.000000e+00> : vector<8x384xf32>
    %351 = tpu.matmul %349, %350, %cst_111 {dimension_numbers = #tpu.dot_dimension_numbers<[1], [0], [0], [1], [0, 0, 1, 1], [], []>} : vector<8x256xf32>, vector<256x384xf32>, vector<8x384xf32> -> vector<8x384xf32>
    %352 = arith.addf %351, %15 : vector<8x384xf32>
    %353 = vector.extract_strided_slice %352 {offsets = [0, 0], sizes = [8, 128], strides = [1, 1]} : vector<8x384xf32> to vector<8x128xf32>
    %354 = vector.extract_strided_slice %352 {offsets = [0, 128], sizes = [8, 128], strides = [1, 1]} : vector<8x384xf32> to vector<8x128xf32>
    %355 = vector.extract_strided_slice %352 {offsets = [0, 256], sizes = [8, 128], strides = [1, 1]} : vector<8x384xf32> to vector<8x128xf32>
    %356 = arith.negf %353 : vector<8x128xf32>
    %357 = math.exp %356 : vector<8x128xf32>
    %cst_112 = arith.constant 1.000000e+00 : f32
    %358 = vector.broadcast %cst_112 : f32 to vector<8x128xf32>
    %359 = arith.addf %358, %357 : vector<8x128xf32>
    %360 = arith.divf %358, %359 : vector<8x128xf32>
    %361 = arith.addf %355, %12 : vector<8x128xf32>
    %362 = arith.mulf %360, %361 : vector<8x128xf32>
    %363 = arith.addf %354, %362 : vector<8x128xf32>
    %364 = math.tanh %363 : vector<8x128xf32>
    %c64_i32_113 = arith.constant 64 : i32
    %365 = tpu.dynamic_rotate %360 by %c64_i32_113 dim 1 : vector<8x128xf32>, i32 -> vector<8x128xf32>
    %cst_114 = arith.constant 1.000000e+00 : f32
    %366 = vector.broadcast %cst_114 : f32 to vector<8x128xf32>
    %367 = arith.subf %366, %365 : vector<8x128xf32>
    %368 = arith.mulf %367, %364 : vector<8x128xf32>
    %369 = arith.mulf %365, %322 : vector<8x128xf32>
    %370 = arith.addf %368, %369 : vector<8x128xf32>
    %c7_i32_115 = arith.constant 7 : i32
    %371 = tpu.concatenate %348, %370 in 1 : vector<8x128xf32>, vector<8x128xf32> -> vector<8x256xf32>
    %c0_116 = arith.constant 0 : index
    %c0_117 = arith.constant 0 : index
    %372 = vector.load %arg5[%c0_116, %c0_117] : memref<256x384xf32, #tpu.memory_space<vmem>>, vector<256x384xf32>
    %cst_118 = arith.constant dense<0.000000e+00> : vector<8x384xf32>
    %373 = tpu.matmul %371, %372, %cst_118 {dimension_numbers = #tpu.dot_dimension_numbers<[1], [0], [0], [1], [0, 0, 1, 1], [], []>} : vector<8x256xf32>, vector<256x384xf32>, vector<8x384xf32> -> vector<8x384xf32>
    %374 = arith.addf %373, %15 : vector<8x384xf32>
    %375 = vector.extract_strided_slice %374 {offsets = [0, 0], sizes = [8, 128], strides = [1, 1]} : vector<8x384xf32> to vector<8x128xf32>
    %376 = vector.extract_strided_slice %374 {offsets = [0, 128], sizes = [8, 128], strides = [1, 1]} : vector<8x384xf32> to vector<8x128xf32>
    %377 = vector.extract_strided_slice %374 {offsets = [0, 256], sizes = [8, 128], strides = [1, 1]} : vector<8x384xf32> to vector<8x128xf32>
    %378 = arith.negf %375 : vector<8x128xf32>
    %379 = math.exp %378 : vector<8x128xf32>
    %cst_119 = arith.constant 1.000000e+00 : f32
    %380 = vector.broadcast %cst_119 : f32 to vector<8x128xf32>
    %381 = arith.addf %380, %379 : vector<8x128xf32>
    %382 = arith.divf %380, %381 : vector<8x128xf32>
    %383 = arith.addf %377, %12 : vector<8x128xf32>
    %384 = arith.mulf %382, %383 : vector<8x128xf32>
    %385 = arith.addf %376, %384 : vector<8x128xf32>
    %386 = math.tanh %385 : vector<8x128xf32>
    %c64_i32_120 = arith.constant 64 : i32
    %387 = tpu.dynamic_rotate %382 by %c64_i32_120 dim 1 : vector<8x128xf32>, i32 -> vector<8x128xf32>
    %cst_121 = arith.constant 1.000000e+00 : f32
    %388 = vector.broadcast %cst_121 : f32 to vector<8x128xf32>
    %389 = arith.subf %388, %387 : vector<8x128xf32>
    %390 = arith.mulf %389, %386 : vector<8x128xf32>
    %391 = arith.mulf %387, %370 : vector<8x128xf32>
    %392 = arith.addf %390, %391 : vector<8x128xf32>
    %393 = tpu.iota {dimensions = array<i32: 1>} : vector<1x128xi32>
    %c64_i32_122 = arith.constant 64 : i32
    %394 = vector.broadcast %c64_i32_122 : i32 to vector<1x128xi32>
    %395 = arith.cmpi slt, %393, %394 : vector<1x128xi32>
    %396 = arith.extui %395 : vector<1x128xi1> to vector<1x128xi32>
    %397 = arith.sitofp %396 : vector<1x128xi32> to vector<1x128xf32>
    %398 = vector.broadcast %397 : vector<1x128xf32> to vector<8x128xf32>
    %399 = arith.mulf %392, %398 : vector<8x128xf32>
    %cst_123 = arith.constant dense<0.000000e+00> : vector<8xf32>
    %400 = vector.multi_reduction <add>, %399, %cst_123 [1] : vector<8x128xf32> to vector<8xf32>
    %401 = vector.shape_cast %400 : vector<8xf32> to vector<8x1xf32>
    %cst_124 = arith.constant 1.562500e-02 : f32
    %402 = vector.broadcast %cst_124 : f32 to vector<8x1xf32>
    %403 = arith.mulf %401, %402 : vector<8x1xf32>
    %404 = vector.broadcast %403 : vector<8x1xf32> to vector<8x128xf32>
    %405 = arith.subf %399, %404 : vector<8x128xf32>
    %406 = vector.broadcast %397 : vector<1x128xf32> to vector<8x128xf32>
    %407 = arith.mulf %405, %406 : vector<8x128xf32>
    %408 = arith.mulf %407, %407 : vector<8x128xf32>
    %cst_125 = arith.constant dense<0.000000e+00> : vector<8xf32>
    %409 = vector.multi_reduction <add>, %408, %cst_125 [1] : vector<8x128xf32> to vector<8xf32>
    %410 = vector.shape_cast %409 : vector<8xf32> to vector<8x1xf32>
    %cst_126 = arith.constant 1.562500e-02 : f32
    %411 = vector.broadcast %cst_126 : f32 to vector<8x1xf32>
    %412 = arith.mulf %410, %411 : vector<8x1xf32>
    %cst_127 = arith.constant 9.99999974E-6 : f32
    %413 = vector.broadcast %cst_127 : f32 to vector<8x1xf32>
    %414 = arith.addf %412, %413 : vector<8x1xf32>
    %415 = math.rsqrt %414 : vector<8x1xf32>
    %416 = vector.broadcast %415 : vector<8x1xf32> to vector<8x128xf32>
    %417 = arith.mulf %407, %416 : vector<8x128xf32>
    %c0_128 = arith.constant 0 : index
    %c0_129 = arith.constant 0 : index
    %418 = vector.load %arg8[%c0_128, %c0_129] : memref<1x128xf32, #tpu.memory_space<vmem>>, vector<1x128xf32>
    %419 = vector.broadcast %418 : vector<1x128xf32> to vector<8x128xf32>
    %420 = arith.mulf %417, %419 : vector<8x128xf32>
    %c0_130 = arith.constant 0 : index
    %c0_131 = arith.constant 0 : index
    %421 = vector.load %arg9[%c0_130, %c0_131] : memref<1x128xf32, #tpu.memory_space<vmem>>, vector<1x128xf32>
    %422 = vector.broadcast %421 : vector<1x128xf32> to vector<8x128xf32>
    %423 = arith.addf %420, %422 : vector<8x128xf32>
    %c0_132 = arith.constant 0 : index
    %c0_133 = arith.constant 0 : index
    %424 = vector.load %arg10[%c0_132, %c0_133] : memref<128x128xf32, #tpu.memory_space<vmem>>, vector<128x128xf32>
    %cst_134 = arith.constant dense<0.000000e+00> : vector<8x128xf32>
    %425 = tpu.matmul %423, %424, %cst_134 {dimension_numbers = #tpu.dot_dimension_numbers<[1], [0], [0], [1], [0, 0, 1, 1], [], []>} : vector<8x128xf32>, vector<128x128xf32>, vector<8x128xf32> -> vector<8x128xf32>
    %c0_135 = arith.constant 0 : index
    %c0_136 = arith.constant 0 : index
    %426 = vector.load %arg11[%c0_135, %c0_136] : memref<1x128xf32, #tpu.memory_space<vmem>>, vector<1x128xf32>
    %427 = vector.broadcast %426 : vector<1x128xf32> to vector<8x128xf32>
    %428 = arith.addf %425, %427 : vector<8x128xf32>
    %c0_137 = arith.constant 0 : index
    %c0_138 = arith.constant 0 : index
    %429 = vector.load %arg12[%c0_137, %c0_138] : memref<8x128xf32, #tpu.memory_space<vmem>>, vector<8x128xf32>
    tpu.vector_store %arg12[%c0_137, %c0_138], %428 {strides = array<i32>} : memref<8x128xf32, #tpu.memory_space<vmem>>, vector<8x128xf32>,
    return
  }
}

</mosaic_0001>

<llo_original>
// kernel: tpu_custom_call.1
$region0: #{tpu_custom_call.1}
  #allocation0 [shape = 'u32[]', space=smem, size = 0x4, offset = 0x4, fixed_abs, tag = 'smem constant byte address 0x4 - core index']
  #allocation1 [shape = 'u32[144,128]{1,0:T(1,128)}', space=vmem, size = 0x12000, scoped, tag = 'internal scratch']
  #allocation2 [shape = 'f32[64,256]{1,0:T(8,128)}', space=vmem, size = 0x10000, scoped, tag = 'scratch operand']
  %s0 = inlined_call_operand.vmem [shape: f32[64,8], index: 0, kind: input, shape index: {}]
  %s1 = inlined_call_operand.vmem [shape: f32[8,256], index: 1, kind: input, shape index: {}]
  %s2 = inlined_call_operand.hbm [shape: f32[128,256], index: 2, kind: input, shape index: {}]
  %s3 = inlined_call_operand.vmem [shape: f32[1,256], index: 3, kind: input, shape index: {}]
  %s4 = inlined_call_operand.vmem [shape: f32[1,128], index: 4, kind: input, shape index: {}]
  %s5 = inlined_call_operand.hbm [shape: f32[256,384], index: 5, kind: input, shape index: {}]
  %s6 = inlined_call_operand.vmem [shape: f32[1,384], index: 6, kind: input, shape index: {}]
  %s7 = inlined_call_operand.vmem [shape: f32[1,128], index: 7, kind: input, shape index: {}]
  %s8 = inlined_call_operand.vmem [shape: f32[1,128], index: 8, kind: input, shape index: {}]
  %s9 = inlined_call_operand.vmem [shape: f32[1,128], index: 9, kind: input, shape index: {}]
  %s10 = inlined_call_operand.hbm [shape: f32[128,128], index: 10, kind: input, shape index: {}]
  %s11 = inlined_call_operand.vmem [shape: f32[1,128], index: 11, kind: input, shape index: {}]
  %s12 = inlined_call_operand.hbm [shape: f32[8,128], index: 12, kind: output, shape index: {}]
  %s13 = sld [smem:[#allocation0]]
  $region70: #{tpu_custom_call.1} parent=0
    _
  %s15 = ssub.s32 1, %s13
  %s16 = scalar_select 0, %s15, %s13
  $region1: #{tpu_custom_call.1} parent=0
    #allocation3 [shape = 'u8[131072]{0}', space=vmem, size = 0x20000, scoped, tag = 'input window, operand 2, single buffered']
    #allocation4 [shape = 's32[1]{0}', space=sflag, size = 0x4, scoped, tag = 'scoped memory for tpu_custom_call.1']
    #allocation5 [shape = 's32[1]{0}', space=sflag, size = 0x4, scoped, tag = 'scoped memory for tpu_custom_call.1']
    #allocation6 [shape = 'u8[393216]{0}', space=vmem, size = 0x60000, scoped, tag = 'input window, operand 5, single buffered']
    #allocation7 [shape = 's32[1]{0}', space=sflag, size = 0x4, scoped, tag = 'scoped memory for tpu_custom_call.1']
    #allocation8 [shape = 'u8[65536]{0}', space=vmem, size = 0x10000, scoped, tag = 'input window, operand 10, single buffered']
    #allocation9 [shape = 'u8[4096]{0}', space=vmem, size = 0x1000, scoped, tag = 'output window, operand 0, single buffered']
    %17 = vsyncpa [#allocation4], 0
    %18 = vsyncpa [#allocation7], 0
    %19 = vsyncpa [#allocation5], 0
    // Predicated region
    $region2: #{tpu_custom_call.1} parent=1 // pred_check
      _
    $region3: #{tpu_custom_call.1} parent=1 // pred_check_branch
      %21 = sbr.rel (0) target = $region5
    $region4: #{tpu_custom_call.1} parent=1 // pred_region
      _
    $region5: #{tpu_custom_call.1} parent=1 // pred_fallthru
      _
    // Predicated region
    $region6: #{tpu_custom_call.1} parent=1 // pred_check
      _
    $region7: #{tpu_custom_call.1} parent=1 // pred_check_branch
      %23 = sbr.rel (0) target = $region9
    $region8: #{tpu_custom_call.1} parent=1 // pred_region
      _
    $region9: #{tpu_custom_call.1} parent=1 // pred_fallthru
      _
    // Predicated region
    $region10: #{tpu_custom_call.1} parent=1 // pred_check
      _
    $region11: #{tpu_custom_call.1} parent=1 // pred_check_branch
      %25 = sbr.rel (0) target = $region13
    $region12: #{tpu_custom_call.1} parent=1 // pred_region
      %s27 = ssub.s32 4096, 4096
      %28 = vsyncadd [#allocation4], %s27
      %s29 = sshll.u32 [#allocation3], 4
      %s30 = int_to_ptr.vmem [resolvable:$true] %s29
      %35 = dma.hbm_to_vmem [thread:$0]  %s2, 4096, %s30, [#allocation4], 256, 256, 16
    $region13: #{tpu_custom_call.1} parent=1 // pred_fallthru
      _
    // Predicated region
    $region14: #{tpu_custom_call.1} parent=1 // pred_check
      _
    $region15: #{tpu_custom_call.1} parent=1 // pred_check_branch
      %37 = sbr.rel (0) target = $region17
    $region16: #{tpu_custom_call.1} parent=1 // pred_region
      _
    $region17: #{tpu_custom_call.1} parent=1 // pred_fallthru
      _
    // Predicated region
    $region18: #{tpu_custom_call.1} parent=1 // pred_check
      _
    $region19: #{tpu_custom_call.1} parent=1 // pred_check_branch
      %39 = sbr.rel (0) target = $region21
    $region20: #{tpu_custom_call.1} parent=1 // pred_region
      _
    $region21: #{tpu_custom_call.1} parent=1 // pred_fallthru
      _
    // Predicated region
    $region22: #{tpu_custom_call.1} parent=1 // pred_check
      _
    $region23: #{tpu_custom_call.1} parent=1 // pred_check_branch
      %41 = sbr.rel (0) target = $region25
    $region24: #{tpu_custom_call.1} parent=1 // pred_region
      %s43 = ssub.s32 12288, 12288
      %44 = vsyncadd [#allocation7], %s43
      %s45 = sshll.u32 [#allocation6], 4
      %s46 = int_to_ptr.vmem [resolvable:$true] %s45
      %51 = dma.hbm_to_vmem [thread:$0]  %s5, 12288, %s46, [#allocation7], 384, 384, 24
    $region25: #{tpu_custom_call.1} parent=1 // pred_fallthru
      _
    // Predicated region
    $region26: #{tpu_custom_call.1} parent=1 // pred_check
      _
    $region27: #{tpu_custom_call.1} parent=1 // pred_check_branch
      %53 = sbr.rel (0) target = $region29
    $region28: #{tpu_custom_call.1} parent=1 // pred_region
      _
    $region29: #{tpu_custom_call.1} parent=1 // pred_fallthru
      _
    // Predicated region
    $region30: #{tpu_custom_call.1} parent=1 // pred_check
      _
    $region31: #{tpu_custom_call.1} parent=1 // pred_check_branch
      %55 = sbr.rel (0) target = $region33
    $region32: #{tpu_custom_call.1} parent=1 // pred_region
      _
    $region33: #{tpu_custom_call.1} parent=1 // pred_fallthru
      _
    // Predicated region
    $region34: #{tpu_custom_call.1} parent=1 // pred_check
      _
    $region35: #{tpu_custom_call.1} parent=1 // pred_check_branch
      %57 = sbr.rel (0) target = $region37
    $region36: #{tpu_custom_call.1} parent=1 // pred_region
      _
    $region37: #{tpu_custom_call.1} parent=1 // pred_fallthru
      _
    // Predicated region
    $region38: #{tpu_custom_call.1} parent=1 // pred_check
      _
    $region39: #{tpu_custom_call.1} parent=1 // pred_check_branch
      %59 = sbr.rel (0) target = $region41
    $region40: #{tpu_custom_call.1} parent=1 // pred_region
      _
    $region41: #{tpu_custom_call.1} parent=1 // pred_fallthru
      _
    // Predicated region
    $region42: #{tpu_custom_call.1} parent=1 // pred_check
      _
    $region43: #{tpu_custom_call.1} parent=1 // pred_check_branch
      %61 = sbr.rel (0) target = $region45
    $region44: #{tpu_custom_call.1} parent=1 // pred_region
      %s63 = ssub.s32 2048, 2048
      %64 = vsyncadd [#allocation7], %s63
      %s65 = sshll.u32 [#allocation8], 4
      %s66 = int_to_ptr.vmem [resolvable:$true] %s65
      %71 = dma.hbm_to_vmem [thread:$0]  %s10, 2048, %s66, [#allocation7], 128, 128, 8
    $region45: #{tpu_custom_call.1} parent=1 // pred_fallthru
      _
    // Predicated region
    $region46: #{tpu_custom_call.1} parent=1 // pred_check
      _
    $region47: #{tpu_custom_call.1} parent=1 // pred_check_branch
      %73 = sbr.rel (0) target = $region49
    $region48: #{tpu_custom_call.1} parent=1 // pred_region
      _
    $region49: #{tpu_custom_call.1} parent=1 // pred_fallthru
      _
    // Predicated region
    $region50: #{tpu_custom_call.1} parent=1 // pred_check
      _
    $region51: #{tpu_custom_call.1} parent=1 // pred_check_branch
      %75 = sbr.rel (0) target = $region53
    $region52: #{tpu_custom_call.1} parent=1 // pred_region
      %76 = dma.done [#allocation4], 4096
    $region53: #{tpu_custom_call.1} parent=1 // pred_fallthru
      _
    // Predicated region
    $region54: #{tpu_custom_call.1} parent=1 // pred_check
      _
    $region55: #{tpu_custom_call.1} parent=1 // pred_check_branch
      %78 = sbr.rel (0) target = $region57
    $region56: #{tpu_custom_call.1} parent=1 // pred_region
      %79 = dma.done [#allocation7], 12288
    $region57: #{tpu_custom_call.1} parent=1 // pred_fallthru
      _
    // Predicated region
    $region58: #{tpu_custom_call.1} parent=1 // pred_check
      _
    $region59: #{tpu_custom_call.1} parent=1 // pred_check_branch
      %81 = sbr.rel (0) target = $region61
    $region60: #{tpu_custom_call.1} parent=1 // pred_region
      %82 = dma.done [#allocation7], 2048
    $region61: #{tpu_custom_call.1} parent=1 // pred_fallthru
      _
    %v83 = vld [vmem:[%s0] sm:$0xff]
    %v84 = vld [vmem:[%s0 + $0x8] sm:$0xff]
    %v85 = vld [vmem:[%s0 + $0x10] sm:$0xff]
    %v86 = vld [vmem:[%s0 + $0x18] sm:$0xff]
    %v87 = vld [vmem:[%s0 + $0x20] sm:$0xff]
    %v88 = vld [vmem:[%s0 + $0x28] sm:$0xff]
    %v89 = vld [vmem:[%s0 + $0x30] sm:$0xff]
    %v90 = vld [vmem:[%s0 + $0x38] sm:$0xff]
    %v91 = vld [vmem:[%s1] sm:$0xff]
    %v92 = vld [vmem:[%s1 + $0x8] sm:$0xff]
    %v93 = vld [vmem:[%s3] sm:$0x3]
    %v95 = vlaneseq
    %v96 = vshrl.u32 %v95, 7
    %v97 = vsub.s32 0, %v96
    %v98 = vrot.slane %v93, %v97
    %v99 = vlaneseq
    %v100 = vshrl.u32 %v99, 7
    %v101 = vsub.s32 1, %v100
    %v102 = vrot.slane %v93, %v101
    %vm105 = vcmask 64512
    %v107 = vsel %vm105, %v83, 0
    %v110 = vsel %vm105, %v84, 0
    %v113 = vsel %vm105, %v85, 0
    %v116 = vsel %vm105, %v86, 0
    %v119 = vsel %vm105, %v87, 0
    %v122 = vsel %vm105, %v88, 0
    %v125 = vsel %vm105, %v89, 0
    %v128 = vsel %vm105, %v90, 0
    %130 = vmatprep.subr.mxu0 %v92
    %131 = vmatpush1.msra.mxu0 %v91
    %132 = vmatprep.subr.mxu0 0.0
    %133 = vmatpush1.msra.mxu0 0.0
    %134 = vmatprep.subr.mxu0 0.0
    %135 = vmatpush1.msra.mxu0 0.0
    %136 = vmatprep.subr.mxu0 0.0
    %137 = vmatpush1.msra.mxu0 0.0
    %138 = vmatprep.subr.mxu0 0.0
    %139 = vmatpush1.msra.mxu0 0.0
    %140 = vmatprep.subr.mxu0 0.0
    %141 = vmatpush1.msra.mxu0 0.0
    %142 = vmatprep.subr.mxu0 0.0
    %143 = vmatpush1.msra.mxu0 0.0
    %144 = vmatprep.subr.mxu0 0.0
    %145 = vmatpush1.msra.mxu0 0.0
    %146 = vmatprep.subr.mxu0 0.0
    %147 = vmatpush1.msra.mxu0 0.0
    %148 = vmatprep.subr.mxu0 0.0
    %149 = vmatpush1.msra.mxu0 0.0
    %150 = vmatprep.subr.mxu0 0.0
    %151 = vmatpush1.msra.mxu0 0.0
    %152 = vmatprep.subr.mxu0 0.0
    %153 = vmatpush1.msra.mxu0 0.0
    %154 = vmatprep.subr.mxu0 0.0
    %155 = vmatpush1.msra.mxu0 0.0
    %156 = vmatprep.subr.mxu0 0.0
    %157 = vmatpush1.msra.mxu0 0.0
    %158 = vmatprep.subr.mxu0 0.0
    %159 = vmatpush1.msra.mxu0 0.0
    %160 = vmatprep.subr.mxu0 0.0
    %161 = vmatpush1.msra.mxu0 0.0
    %162 = vmatprep.subr.mxu0 0.0
    %163 = vmatpush1.msra.mxu0 0.0
    %164 = vmatprep.subr.mxu0 0.0
    %165 = vmatpush1.msra.mxu0 0.0
    %166 = vmatprep.subr.mxu0 0.0
    %167 = vmatpush1.msra.mxu0 0.0
    %168 = vmatprep.subr.mxu0 0.0
    %169 = vmatpush1.msra.mxu0 0.0
    %170 = vmatprep.subr.mxu0 0.0
    %171 = vmatpush1.msra.mxu0 0.0
    %172 = vmatprep.subr.mxu0 0.0
    %173 = vmatpush1.msra.mxu0 0.0
    %174 = vmatprep.subr.mxu0 0.0
    %175 = vmatpush1.msra.mxu0 0.0
    %176 = vmatprep.subr.mxu0 0.0
    %177 = vmatpush1.msra.mxu0 0.0
    %178 = vmatprep.subr.mxu0 0.0
    %179 = vmatpush1.msra.mxu0 0.0
    %180 = vmatprep.subr.mxu0 0.0
    %181 = vmatpush1.msra.mxu0 0.0
    %182 = vmatprep.subr.mxu0 0.0
    %183 = vmatpush1.msra.mxu0 0.0
    %184 = vmatprep.subr.mxu0 0.0
    %185 = vmatpush1.msra.mxu0 0.0
    %186 = vmatprep.subr.mxu0 0.0
    %187 = vmatpush1.msra.mxu0 0.0
    %188 = vmatprep.subr.mxu0 0.0
    %189 = vmatpush1.msra.mxu0 0.0
    %190 = vmatprep.subr.mxu0 0.0
    %191 = vmatpush1.msra.mxu0 0.0
    %192 = vmatprep.subr.mxu0 0.0
    %193 = vmatpush1.msra.mxu0 0.0
    %194 = vmatprep.mubr.f32.mxu0 0.0
    %195 = vmatmul.mubr.f32.gmra.mrb[0].mxu0 %v107
    %v196 = vpop.f32.mrb[0].mxu0
    %v197 = vadd.f32 %v98, %v196
    %v198 = vpop.f32.mrb[0].mxu0
    %v199 = vadd.f32 %v102, %v198
    %200 = vmatprep.mubr.f32.mxu0 0.0
    %201 = vmatmul.mubr.f32.gmra.mrb[0].mxu0 %v110
    %v202 = vpop.f32.mrb[0].mxu0
    %v203 = vadd.f32 %v98, %v202
    %v204 = vpop.f32.mrb[0].mxu0
    %v205 = vadd.f32 %v102, %v204
    %206 = vmatprep.mubr.f32.mxu0 0.0
    %207 = vmatmul.mubr.f32.gmra.mrb[0].mxu0 %v113
    %v208 = vpop.f32.mrb[0].mxu0
    %v209 = vadd.f32 %v98, %v208
    %v210 = vpop.f32.mrb[0].mxu0
    %v211 = vadd.f32 %v102, %v210
    %212 = vmatprep.mubr.f32.mxu0 0.0
    %213 = vmatmul.mubr.f32.gmra.mrb[0].mxu0 %v116
    %v214 = vpop.f32.mrb[0].mxu0
    %v215 = vadd.f32 %v98, %v214
    %v216 = vpop.f32.mrb[0].mxu0
    %v217 = vadd.f32 %v102, %v216
    %218 = vmatprep.mubr.f32.mxu0 0.0
    %219 = vmatmul.mubr.f32.gmra.mrb[0].mxu0 %v119
    %v220 = vpop.f32.mrb[0].mxu0
    %v221 = vadd.f32 %v98, %v220
    %v222 = vpop.f32.mrb[0].mxu0
    %v223 = vadd.f32 %v102, %v222
    %224 = vmatprep.mubr.f32.mxu0 0.0
    %225 = vmatmul.mubr.f32.gmra.mrb[0].mxu0 %v122
    %v226 = vpop.f32.mrb[0].mxu0
    %v227 = vadd.f32 %v98, %v226
    %v228 = vpop.f32.mrb[0].mxu0
    %v229 = vadd.f32 %v102, %v228
    %230 = vmatprep.mubr.f32.mxu0 0.0
    %231 = vmatmul.mubr.f32.gmra.mrb[0].mxu0 %v125
    %v232 = vpop.f32.mrb[0].mxu0
    %v233 = vadd.f32 %v98, %v232
    %v234 = vpop.f32.mrb[0].mxu0
    %v235 = vadd.f32 %v102, %v234
    %236 = vmatprep.mubr.f32.mxu0 0.0
    %237 = vmatmul.mubr.f32.gmra.mrb[0].mxu0 %v128
    %v238 = vpop.f32.mrb[0].mxu0
    %v239 = vadd.f32 %v98, %v238
    %v240 = vpop.f32.mrb[0].mxu0
    %v241 = vadd.f32 %v102, %v240
    %242 = vdwg.mxu0
    %243 = vst [vmem:[#allocation2] sm:$0xff] %v197
    %244 = vst [vmem:[#allocation2 + $0x8] sm:$0xff] %v199
    %245 = vst [vmem:[#allocation2 + $0x10] sm:$0xff] %v203
    %246 = vst [vmem:[#allocation2 + $0x18] sm:$0xff] %v205
    %247 = vst [vmem:[#allocation2 + $0x20] sm:$0xff] %v209
    %248 = vst [vmem:[#allocation2 + $0x28] sm:$0xff] %v211
    %249 = vst [vmem:[#allocation2 + $0x30] sm:$0xff] %v215
    %250 = vst [vmem:[#allocation2 + $0x38] sm:$0xff] %v217
    %251 = vst [vmem:[#allocation2 + $0x40] sm:$0xff] %v221
    %252 = vst [vmem:[#allocation2 + $0x48] sm:$0xff] %v223
    %253 = vst [vmem:[#allocation2 + $0x50] sm:$0xff] %v227
    %254 = vst [vmem:[#allocation2 + $0x58] sm:$0xff] %v229
    %255 = vst [vmem:[#allocation2 + $0x60] sm:$0xff] %v233
    %256 = vst [vmem:[#allocation2 + $0x68] sm:$0xff] %v235
    %257 = vst [vmem:[#allocation2 + $0x70] sm:$0xff] %v239
    %258 = vst [vmem:[#allocation2 + $0x78] sm:$0xff] %v241
    %v259 = vld [vmem:[%s4] sm:$0x1]
    %v261 = vlaneseq
    %v262 = vshrl.u32 %v261, 7
    %v263 = vsub.s32 0, %v262
    %v264 = vrot.slane %v259, %v263
    %v266 = vld [vmem:[%s7] sm:$0x1]
    %v268 = vlaneseq
    %v269 = vshrl.u32 %v268, 7
    %v270 = vsub.s32 0, %v269
    %v271 = vrot.slane %v266, %v270
    %v273 = vld [vmem:[%s6] sm:$0x7]
    %v275 = vlaneseq
    %v276 = vshrl.u32 %v275, 7
    %v277 = vsub.s32 0, %v276
    %v278 = vrot.slane %v273, %v277
    %v279 = vlaneseq
    %v280 = vshrl.u32 %v279, 7
    %v281 = vsub.s32 1, %v280
    %v282 = vrot.slane %v273, %v281
    %v283 = vlaneseq
    %v284 = vshrl.u32 %v283, 7
    %v285 = vsub.s32 2, %v284
    %v286 = vrot.slane %v273, %v285
    %v290 = vld [vmem:[#allocation2] sm:$0xff]
    %v291 = vld [vmem:[#allocation2 + $0x8] sm:$0xff]
    %v292 = vxor.u32 %v290, 2147483648
    %v293 = vmul.f32 %v292, 1.442695
    %v294 = vpow.pop %v293
    %v295 = vadd.f32 %v294, 1.0
    %v296 = vrcp.pop %v295
    %v297 = vmul.f32 1.0, %v296
    %v298 = vadd.f32 %v264, 0.0
    %v299 = vmul.f32 %v297, %v298
    %v300 = vadd.f32 %v291, %v299
    %v301 = vtanh.pop %v300
    %302 = vrot.lane.b32.xlu0 %v297, 64
    %v303 = vpop.permute.xlu0 %302
    %v304 = vsub.f32 1.0, %v303
    %v305 = vmul.f32 %v304, %v301
    %v306 = vmul.f32 %v303, 0.0
    %v307 = vadd.f32 %v305, %v306
    %s308 = smul.u32 1, 2
    %s309 = smul.addr %s308, 8
    %s310 = scalar_lea.vmem [#allocation2], %s309
    %v311 = vld [vmem:[%s310] sm:$0xff]
    %v312 = vld [vmem:[%s310 + $0x8] sm:$0xff]
    %v313 = vld [vmem:[#allocation3] sm:$0xff]
    %v314 = vld [vmem:[#allocation3 + $0x8] sm:$0xff]
    %v315 = vld [vmem:[#allocation3 + $0x10] sm:$0xff]
    %v316 = vld [vmem:[#allocation3 + $0x18] sm:$0xff]
    %v317 = vld [vmem:[#allocation3 + $0x20] sm:$0xff]
    %v318 = vld [vmem:[#allocation3 + $0x28] sm:$0xff]
    %v319 = vld [vmem:[#allocation3 + $0x30] sm:$0xff]
    %v320 = vld [vmem:[#allocation3 + $0x38] sm:$0xff]
    %v321 = vld [vmem:[#allocation3 + $0x40] sm:$0xff]
    %v322 = vld [vmem:[#allocation3 + $0x48] sm:$0xff]
    %v323 = vld [vmem:[#allocation3 + $0x50] sm:$0xff]
    %v324 = vld [vmem:[#allocation3 + $0x58] sm:$0xff]
    %v325 = vld [vmem:[#allocation3 + $0x60] sm:$0xff]
    %v326 = vld [vmem:[#allocation3 + $0x68] sm:$0xff]
    %v327 = vld [vmem:[#allocation3 + $0x70] sm:$0xff]
    %v328 = vld [vmem:[#allocation3 + $0x78] sm:$0xff]
    %v329 = vld [vmem:[#allocation3 + $0x80] sm:$0xff]
    %v330 = vld [vmem:[#allocation3 + $0x88] sm:$0xff]
    %v331 = vld [vmem:[#allocation3 + $0x90] sm:$0xff]
    %v332 = vld [vmem:[#allocation3 + $0x98] sm:$0xff]
    %v333 = vld [vmem:[#allocation3 + $0xa0] sm:$0xff]
    %v334 = vld [vmem:[#allocation3 + $0xa8] sm:$0xff]
    %v335 = vld [vmem:[#allocation3 + $0xb0] sm:$0xff]
    %v336 = vld [vmem:[#allocation3 + $0xb8] sm:$0xff]
    %v337 = vld [vmem:[#allocation3 + $0xc0] sm:$0xff]
    %v338 = vld [vmem:[#allocation3 + $0xc8] sm:$0xff]
    %v339 = vld [vmem:[#allocation3 + $0xd0] sm:$0xff]
    %v340 = vld [vmem:[#allocation3 + $0xd8] sm:$0xff]
    %v341 = vld [vmem:[#allocation3 + $0xe0] sm:$0xff]
    %v342 = vld [vmem:[#allocation3 + $0xe8] sm:$0xff]
    %v343 = vld [vmem:[#allocation3 + $0xf0] sm:$0xff]
    %v344 = vld [vmem:[#allocation3 + $0xf8] sm:$0xff]
    %345 = vmatprep.subr.mxu0 %v314
    %346 = vmatpush1.msra.mxu0 %v313
    %347 = vmatprep.subr.mxu0 %v316
    %348 = vmatpush1.msra.mxu0 %v315
    %349 = vmatprep.subr.mxu0 %v318
    %350 = vmatpush1.msra.mxu0 %v317
    %351 = vmatprep.subr.mxu0 %v320
    %352 = vmatpush1.msra.mxu0 %v319
    %353 = vmatprep.subr.mxu0 %v322
    %354 = vmatpush1.msra.mxu0 %v321
    %355 = vmatprep.subr.mxu0 %v324
    %356 = vmatpush1.msra.mxu0 %v323
    %357 = vmatprep.subr.mxu0 %v326
    %358 = vmatpush1.msra.mxu0 %v325
    %359 = vmatprep.subr.mxu0 %v328
    %360 = vmatpush1.msra.mxu0 %v327
    %361 = vmatprep.subr.mxu0 %v330
    %362 = vmatpush1.msra.mxu0 %v329
    %363 = vmatprep.subr.mxu0 %v332
    %364 = vmatpush1.msra.mxu0 %v331
    %365 = vmatprep.subr.mxu0 %v334
    %366 = vmatpush1.msra.mxu0 %v333
    %367 = vmatprep.subr.mxu0 %v336
    %368 = vmatpush1.msra.mxu0 %v335
    %369 = vmatprep.subr.mxu0 %v338
    %370 = vmatpush1.msra.mxu0 %v337
    %371 = vmatprep.subr.mxu0 %v340
    %372 = vmatpush1.msra.mxu0 %v339
    %373 = vmatprep.subr.mxu0 %v342
    %374 = vmatpush1.msra.mxu0 %v341
    %375 = vmatprep.subr.mxu0 %v344
    %376 = vmatpush1.msra.mxu0 %v343
    %377 = vmatprep.subr.mxu0 0.0
    %378 = vmatpush1.msra.mxu0 0.0
    %379 = vmatprep.subr.mxu0 0.0
    %380 = vmatpush1.msra.mxu0 0.0
    %381 = vmatprep.subr.mxu0 0.0
    %382 = vmatpush1.msra.mxu0 0.0
    %383 = vmatprep.subr.mxu0 0.0
    %384 = vmatpush1.msra.mxu0 0.0
    %385 = vmatprep.subr.mxu0 0.0
    %386 = vmatpush1.msra.mxu0 0.0
    %387 = vmatprep.subr.mxu0 0.0
    %388 = vmatpush1.msra.mxu0 0.0
    %389 = vmatprep.subr.mxu0 0.0
    %390 = vmatpush1.msra.mxu0 0.0
    %391 = vmatprep.subr.mxu0 0.0
    %392 = vmatpush1.msra.mxu0 0.0
    %393 = vmatprep.subr.mxu0 0.0
    %394 = vmatpush1.msra.mxu0 0.0
    %395 = vmatprep.subr.mxu0 0.0
    %396 = vmatpush1.msra.mxu0 0.0
    %397 = vmatprep.subr.mxu0 0.0
    %398 = vmatpush1.msra.mxu0 0.0
    %399 = vmatprep.subr.mxu0 0.0
    %400 = vmatpush1.msra.mxu0 0.0
    %401 = vmatprep.subr.mxu0 0.0
    %402 = vmatpush1.msra.mxu0 0.0
    %403 = vmatprep.subr.mxu0 0.0
    %404 = vmatpush1.msra.mxu0 0.0
    %405 = vmatprep.subr.mxu0 0.0
    %406 = vmatpush1.msra.mxu0 0.0
    %407 = vmatprep.subr.mxu0 0.0
    %408 = vmatpush1.msra.mxu0 0.0
    %409 = vmatprep.mubr.f32.mxu0 0.0
    %410 = vmatmul.mubr.f32.gmra.mrb[0].mxu0 %v307
    %v411 = vpop.f32.mrb[0].mxu0
    %v412 = vadd.f32 0.0, %v411
    %v413 = vpop.f32.mrb[0].mxu0
    %v414 = vadd.f32 0.0, %v413
    %415 = vdwg.mxu0
    %v416 = vadd.f32 %v311, %v412
    %v417 = vxor.u32 %v416, 2147483648
    %v418 = vmul.f32 %v417, 1.442695
    %v419 = vpow.pop %v418
    %v420 = vadd.f32 %v419, 1.0
    %v421 = vrcp.pop %v420
    %v422 = vmul.f32 1.0, %v421
    %v423 = vadd.f32 %v414, %v264
    %v424 = vmul.f32 %v422, %v423
    %v425 = vadd.f32 %v312, %v424
    %v426 = vtanh.pop %v425
    %427 = vrot.lane.b32.xlu0 %v422, 64
    %v428 = vpop.permute.xlu0 %427
    %v429 = vsub.f32 1.0, %v428
    %v430 = vmul.f32 %v429, %v426
    %v431 = vmul.f32 %v428, %v307
    %v432 = vadd.f32 %v430, %v431
    %v433 = vld [vmem:[#allocation6] sm:$0xff]
    %v434 = vld [vmem:[#allocation6 + $0x8] sm:$0xff]
    %v435 = vld [vmem:[#allocation6 + $0x10] sm:$0xff]
    %v436 = vld [vmem:[#allocation6 + $0x18] sm:$0xff]
    %v437 = vld [vmem:[#allocation6 + $0x20] sm:$0xff]
    %v438 = vld [vmem:[#allocation6 + $0x28] sm:$0xff]
    %v439 = vld [vmem:[#allocation6 + $0x30] sm:$0xff]
    %v440 = vld [vmem:[#allocation6 + $0x38] sm:$0xff]
    %v441 = vld [vmem:[#allocation6 + $0x40] sm:$0xff]
    %v442 = vld [vmem:[#allocation6 + $0x48] sm:$0xff]
    %v443 = vld [vmem:[#allocation6 + $0x50] sm:$0xff]
    %v444 = vld [vmem:[#allocation6 + $0x58] sm:$0xff]
    %v445 = vld [vmem:[#allocation6 + $0x60] sm:$0xff]
    %v446 = vld [vmem:[#allocation6 + $0x68] sm:$0xff]
    %v447 = vld [vmem:[#allocation6 + $0x70] sm:$0xff]
    %v448 = vld [vmem:[#allocation6 + $0x78] sm:$0xff]
    %v449 = vld [vmem:[#allocation6 + $0x80] sm:$0xff]
    %v450 = vld [vmem:[#allocation6 + $0x88] sm:$0xff]
    %v451 = vld [vmem:[#allocation6 + $0x90] sm:$0xff]
    %v452 = vld [vmem:[#allocation6 + $0x98] sm:$0xff]
    %v453 = vld [vmem:[#allocation6 + $0xa0] sm:$0xff]
    %v454 = vld [vmem:[#allocation6 + $0xa8] sm:$0xff]
    %v455 = vld [vmem:[#allocation6 + $0xb0] sm:$0xff]
    %v456 = vld [vmem:[#allocation6 + $0xb8] sm:$0xff]
    %v457 = vld [vmem:[#allocation6 + $0xc0] sm:$0xff]
    %v458 = vld [vmem:[#allocation6 + $0xc8] sm:$0xff]
    %v459 = vld [vmem:[#allocation6 + $0xd0] sm:$0xff]
    %v460 = vld [vmem:[#allocation6 + $0xd8] sm:$0xff]
    %v461 = vld [vmem:[#allocation6 + $0xe0] sm:$0xff]
    %v462 = vld [vmem:[#allocation6 + $0xe8] sm:$0xff]
    %v463 = vld [vmem:[#allocation6 + $0xf0] sm:$0xff]
    %v464 = vld [vmem:[#allocation6 + $0xf8] sm:$0xff]
    %v465 = vld [vmem:[#allocation6 + $0x100] sm:$0xff]
    %v466 = vld [vmem:[#allocation6 + $0x108] sm:$0xff]
    %v467 = vld [vmem:[#allocation6 + $0x110] sm:$0xff]
    %v468 = vld [vmem:[#allocation6 + $0x118] sm:$0xff]
    %v469 = vld [vmem:[#allocation6 + $0x120] sm:$0xff]
    %v470 = vld [vmem:[#allocation6 + $0x128] sm:$0xff]
    %v471 = vld [vmem:[#allocation6 + $0x130] sm:$0xff]
    %v472 = vld [vmem:[#allocation6 + $0x138] sm:$0xff]
    %v473 = vld [vmem:[#allocation6 + $0x140] sm:$0xff]
    %v474 = vld [vmem:[#allocation6 + $0x148] sm:$0xff]
    %v475 = vld [vmem:[#allocation6 + $0x150] sm:$0xff]
    %v476 = vld [vmem:[#allocation6 + $0x158] sm:$0xff]
    %v477 = vld [vmem:[#allocation6 + $0x160] sm:$0xff]
    %v478 = vld [vmem:[#allocation6 + $0x168] sm:$0xff]
    %v479 = vld [vmem:[#allocation6 + $0x170] sm:$0xff]
    %v480 = vld [vmem:[#allocation6 + $0x178] sm:$0xff]
    %v481 = vld [vmem:[#allocation6 + $0x180] sm:$0xff]
    %v482 = vld [vmem:[#allocation6 + $0x188] sm:$0xff]
    %v483 = vld [vmem:[#allocation6 + $0x190] sm:$0xff]
    %v484 = vld [vmem:[#allocation6 + $0x198] sm:$0xff]
    %v485 = vld [vmem:[#allocation6 + $0x1a0] sm:$0xff]
    %v486 = vld [vmem:[#allocation6 + $0x1a8] sm:$0xff]
    %v487 = vld [vmem:[#allocation6 + $0x1b0] sm:$0xff]
    %v488 = vld [vmem:[#allocation6 + $0x1b8] sm:$0xff]
    %v489 = vld [vmem:[#allocation6 + $0x1c0] sm:$0xff]
    %v490 = vld [vmem:[#allocation6 + $0x1c8] sm:$0xff]
    %v491 = vld [vmem:[#allocation6 + $0x1d0] sm:$0xff]
    %v492 = vld [vmem:[#allocation6 + $0x1d8] sm:$0xff]
    %v493 = vld [vmem:[#allocation6 + $0x1e0] sm:$0xff]
    %v494 = vld [vmem:[#allocation6 + $0x1e8] sm:$0xff]
    %v495 = vld [vmem:[#allocation6 + $0x1f0] sm:$0xff]
    %v496 = vld [vmem:[#allocation6 + $0x1f8] sm:$0xff]
    %v497 = vld [vmem:[#allocation6 + $0x200] sm:$0xff]
    %v498 = vld [vmem:[#allocation6 + $0x208] sm:$0xff]
    %v499 = vld [vmem:[#allocation6 + $0x210] sm:$0xff]
    %v500 = vld [vmem:[#allocation6 + $0x218] sm:$0xff]
    %v501 = vld [vmem:[#allocation6 + $0x220] sm:$0xff]
    %v502 = vld [vmem:[#allocation6 + $0x228] sm:$0xff]
    %v503 = vld [vmem:[#allocation6 + $0x230] sm:$0xff]
    %v504 = vld [vmem:[#allocation6 + $0x238] sm:$0xff]
    %v505 = vld [vmem:[#allocation6 + $0x240] sm:$0xff]
    %v506 = vld [vmem:[#allocation6 + $0x248] sm:$0xff]
    %v507 = vld [vmem:[#allocation6 + $0x250] sm:$0xff]
    %v508 = vld [vmem:[#allocation6 + $0x258] sm:$0xff]
    %v509 = vld [vmem:[#allocation6 + $0x260] sm:$0xff]
    %v510 = vld [vmem:[#allocation6 + $0x268] sm:$0xff]
    %v511 = vld [vmem:[#allocation6 + $0x270] sm:$0xff]
    %v512 = vld [vmem:[#allocation6 + $0x278] sm:$0xff]
    %v513 = vld [vmem:[#allocation6 + $0x280] sm:$0xff]
    %v514 = vld [vmem:[#allocation6 + $0x288] sm:$0xff]
    %v515 = vld [vmem:[#allocation6 + $0x290] sm:$0xff]
    %v516 = vld [vmem:[#allocation6 + $0x298] sm:$0xff]
    %v517 = vld [vmem:[#allocation6 + $0x2a0] sm:$0xff]
    %v518 = vld [vmem:[#allocation6 + $0x2a8] sm:$0xff]
    %v519 = vld [vmem:[#allocation6 + $0x2b0] sm:$0xff]
    %v520 = vld [vmem:[#allocation6 + $0x2b8] sm:$0xff]
    %v521 = vld [vmem:[#allocation6 + $0x2c0] sm:$0xff]
    %v522 = vld [vmem:[#allocation6 + $0x2c8] sm:$0xff]
    %v523 = vld [vmem:[#allocation6 + $0x2d0] sm:$0xff]
    %v524 = vld [vmem:[#allocation6 + $0x2d8] sm:$0xff]
    %v525 = vld [vmem:[#allocation6 + $0x2e0] sm:$0xff]
    %v526 = vld [vmem:[#allocation6 + $0x2e8] sm:$0xff]
    %v527 = vld [vmem:[#allocation6 + $0x2f0] sm:$0xff]
    %v528 = vld [vmem:[#allocation6 + $0x2f8] sm:$0xff]
    %529 = vmatprep.subr.mxu0 %v434
    %530 = vmatpush1.msra.mxu0 %v433
    %531 = vmatprep.subr.mxu0 %v437
    %532 = vmatpush1.msra.mxu0 %v436
    %533 = vmatprep.subr.mxu0 %v440
    %534 = vmatpush1.msra.mxu0 %v439
    %535 = vmatprep.subr.mxu0 %v443
    %536 = vmatpush1.msra.mxu0 %v442
    %537 = vmatprep.subr.mxu0 %v446
    %538 = vmatpush1.msra.mxu0 %v445
    %539 = vmatprep.subr.mxu0 %v449
    %540 = vmatpush1.msra.mxu0 %v448
    %541 = vmatprep.subr.mxu0 %v452
    %542 = vmatpush1.msra.mxu0 %v451
    %543 = vmatprep.subr.mxu0 %v455
    %544 = vmatpush1.msra.mxu0 %v454
    %545 = vmatprep.subr.mxu0 %v458
    %546 = vmatpush1.msra.mxu0 %v457
    %547 = vmatprep.subr.mxu0 %v461
    %548 = vmatpush1.msra.mxu0 %v460
    %549 = vmatprep.subr.mxu0 %v464
    %550 = vmatpush1.msra.mxu0 %v463
    %551 = vmatprep.subr.mxu0 %v467
    %552 = vmatpush1.msra.mxu0 %v466
    %553 = vmatprep.subr.mxu0 %v470
    %554 = vmatpush1.msra.mxu0 %v469
    %555 = vmatprep.subr.mxu0 %v473
    %556 = vmatpush1.msra.mxu0 %v472
    %557 = vmatprep.subr.mxu0 %v476
    %558 = vmatpush1.msra.mxu0 %v475
    %559 = vmatprep.subr.mxu0 %v479
    %560 = vmatpush1.msra.mxu0 %v478
    %561 = vmatprep.subr.mxu0 %v482
    %562 = vmatpush1.msra.mxu0 %v481
    %563 = vmatprep.subr.mxu0 %v485
    %564 = vmatpush1.msra.mxu0 %v484
    %565 = vmatprep.subr.mxu0 %v488
    %566 = vmatpush1.msra.mxu0 %v487
    %567 = vmatprep.subr.mxu0 %v491
    %568 = vmatpush1.msra.mxu0 %v490
    %569 = vmatprep.subr.mxu0 %v494
    %570 = vmatpush1.msra.mxu0 %v493
    %571 = vmatprep.subr.mxu0 %v497
    %572 = vmatpush1.msra.mxu0 %v496
    %573 = vmatprep.subr.mxu0 %v500
    %574 = vmatpush1.msra.mxu0 %v499
    %575 = vmatprep.subr.mxu0 %v503
    %576 = vmatpush1.msra.mxu0 %v502
    %577 = vmatprep.subr.mxu0 %v506
    %578 = vmatpush1.msra.mxu0 %v505
    %579 = vmatprep.subr.mxu0 %v509
    %580 = vmatpush1.msra.mxu0 %v508
    %581 = vmatprep.subr.mxu0 %v512
    %582 = vmatpush1.msra.mxu0 %v511
    %583 = vmatprep.subr.mxu0 %v515
    %584 = vmatpush1.msra.mxu0 %v514
    %585 = vmatprep.subr.mxu0 %v518
    %586 = vmatpush1.msra.mxu0 %v517
    %587 = vmatprep.subr.mxu0 %v521
    %588 = vmatpush1.msra.mxu0 %v520
    %589 = vmatprep.subr.mxu0 %v524
    %590 = vmatpush1.msra.mxu0 %v523
    %591 = vmatprep.subr.mxu0 %v527
    %592 = vmatpush1.msra.mxu0 %v526
    %593 = vmatprep.mubr.f32.mxu0 0.0
    %594 = vmatmul.mubr.f32.gmra.mrb[0].mxu0 %v307
    %v595 = vpop.f32.mrb[0].mxu0
    %v596 = vadd.f32 %v278, %v595
    %v597 = vpop.f32.mrb[0].mxu0
    %v598 = vadd.f32 %v282, %v597
    %599 = vdwg.mxu0
    %600 = vmatprep.subr.mxu0 0.0
    %601 = vmatpush1.msra.mxu0 %v435
    %602 = vmatprep.subr.mxu0 0.0
    %603 = vmatpush1.msra.mxu0 %v438
    %604 = vmatprep.subr.mxu0 0.0
    %605 = vmatpush1.msra.mxu0 %v441
    %606 = vmatprep.subr.mxu0 0.0
    %607 = vmatpush1.msra.mxu0 %v444
    %608 = vmatprep.subr.mxu0 0.0
    %609 = vmatpush1.msra.mxu0 %v447
    %610 = vmatprep.subr.mxu0 0.0
    %611 = vmatpush1.msra.mxu0 %v450
    %612 = vmatprep.subr.mxu0 0.0
    %613 = vmatpush1.msra.mxu0 %v453
    %614 = vmatprep.subr.mxu0 0.0
    %615 = vmatpush1.msra.mxu0 %v456
    %616 = vmatprep.subr.mxu0 0.0
    %617 = vmatpush1.msra.mxu0 %v459
    %618 = vmatprep.subr.mxu0 0.0
    %619 = vmatpush1.msra.mxu0 %v462
    %620 = vmatprep.subr.mxu0 0.0
    %621 = vmatpush1.msra.mxu0 %v465
    %622 = vmatprep.subr.mxu0 0.0
    %623 = vmatpush1.msra.mxu0 %v468
    %624 = vmatprep.subr.mxu0 0.0
    %625 = vmatpush1.msra.mxu0 %v471
    %626 = vmatprep.subr.mxu0 0.0
    %627 = vmatpush1.msra.mxu0 %v474
    %628 = vmatprep.subr.mxu0 0.0
    %629 = vmatpush1.msra.mxu0 %v477
    %630 = vmatprep.subr.mxu0 0.0
    %631 = vmatpush1.msra.mxu0 %v480
    %632 = vmatprep.subr.mxu0 0.0
    %633 = vmatpush1.msra.mxu0 %v483
    %634 = vmatprep.subr.mxu0 0.0
    %635 = vmatpush1.msra.mxu0 %v486
    %636 = vmatprep.subr.mxu0 0.0
    %637 = vmatpush1.msra.mxu0 %v489
    %638 = vmatprep.subr.mxu0 0.0
    %639 = vmatpush1.msra.mxu0 %v492
    %640 = vmatprep.subr.mxu0 0.0
    %641 = vmatpush1.msra.mxu0 %v495
    %642 = vmatprep.subr.mxu0 0.0
    %643 = vmatpush1.msra.mxu0 %v498
    %644 = vmatprep.subr.mxu0 0.0
    %645 = vmatpush1.msra.mxu0 %v501
    %646 = vmatprep.subr.mxu0 0.0
    %647 = vmatpush1.msra.mxu0 %v504
    %648 = vmatprep.subr.mxu0 0.0
    %649 = vmatpush1.msra.mxu0 %v507
    %650 = vmatprep.subr.mxu0 0.0
    %651 = vmatpush1.msra.mxu0 %v510
    %652 = vmatprep.subr.mxu0 0.0
    %653 = vmatpush1.msra.mxu0 %v513
    %654 = vmatprep.subr.mxu0 0.0
    %655 = vmatpush1.msra.mxu0 %v516
    %656 = vmatprep.subr.mxu0 0.0
    %657 = vmatpush1.msra.mxu0 %v519
    %658 = vmatprep.subr.mxu0 0.0
    %659 = vmatpush1.msra.mxu0 %v522
    %660 = vmatprep.subr.mxu0 0.0
    %661 = vmatpush1.msra.mxu0 %v525
    %662 = vmatprep.subr.mxu0 0.0
    %663 = vmatpush1.msra.mxu0 %v528
    %664 = vmatprep.mubr.f32.mxu0 0.0
    %665 = vmatmul.mubr.f32.gmra.mrb[0].mxu0 %v307
    %v666 = vpop.f32.mrb[0].mxu0
    %v667 = vadd.f32 %v286, %v666
    %v668 = vpop.f32.mrb[0].mxu0
    %669 = vdwg.mxu0
    %v670 = vxor.u32 %v596, 2147483648
    %v671 = vmul.f32 %v670, 1.442695
    %v672 = vpow.pop %v671
    %v673 = vadd.f32 %v672, 1.0
    %v674 = vrcp.pop %v673
    %v675 = vmul.f32 1.0, %v674
    %v676 = vadd.f32 %v667, %v271
    %v677 = vmul.f32 %v675, %v676
    %v678 = vadd.f32 %v598, %v677
    %v679 = vtanh.pop %v678
    %680 = vrot.lane.b32.xlu0 %v675, 64
    %v681 = vpop.permute.xlu0 %680
    %v682 = vsub.f32 1.0, %v681
    %v683 = vmul.f32 %v682, %v679
    %v684 = vmul.f32 %v681, 0.0
    %v685 = vadd.f32 %v683, %v684
    %s686 = smul.u32 2, 2
    %s687 = smul.addr %s686, 8
    %s688 = scalar_lea.vmem [#allocation2], %s687
    %v689 = vld [vmem:[%s688] sm:$0xff]
    %v690 = vld [vmem:[%s688 + $0x8] sm:$0xff]
    %691 = vmatprep.subr.mxu0 %v314
    %692 = vmatpush1.msra.mxu0 %v313
    %693 = vmatprep.subr.mxu0 %v316
    %694 = vmatpush1.msra.mxu0 %v315
    %695 = vmatprep.subr.mxu0 %v318
    %696 = vmatpush1.msra.mxu0 %v317
    %697 = vmatprep.subr.mxu0 %v320
    %698 = vmatpush1.msra.mxu0 %v319
    %699 = vmatprep.subr.mxu0 %v322
    %700 = vmatpush1.msra.mxu0 %v321
    %701 = vmatprep.subr.mxu0 %v324
    %702 = vmatpush1.msra.mxu0 %v323
    %703 = vmatprep.subr.mxu0 %v326
    %704 = vmatpush1.msra.mxu0 %v325
    %705 = vmatprep.subr.mxu0 %v328
    %706 = vmatpush1.msra.mxu0 %v327
    %707 = vmatprep.subr.mxu0 %v330
    %708 = vmatpush1.msra.mxu0 %v329
    %709 = vmatprep.subr.mxu0 %v332
    %710 = vmatpush1.msra.mxu0 %v331
    %711 = vmatprep.subr.mxu0 %v334
    %712 = vmatpush1.msra.mxu0 %v333
    %713 = vmatprep.subr.mxu0 %v336
    %714 = vmatpush1.msra.mxu0 %v335
    %715 = vmatprep.subr.mxu0 %v338
    %716 = vmatpush1.msra.mxu0 %v337
    %717 = vmatprep.subr.mxu0 %v340
    %718 = vmatpush1.msra.mxu0 %v339
    %719 = vmatprep.subr.mxu0 %v342
    %720 = vmatpush1.msra.mxu0 %v341
    %721 = vmatprep.subr.mxu0 %v344
    %722 = vmatpush1.msra.mxu0 %v343
    %723 = vmatprep.subr.mxu0 0.0
    %724 = vmatpush1.msra.mxu0 0.0
    %725 = vmatprep.subr.mxu0 0.0
    %726 = vmatpush1.msra.mxu0 0.0
    %727 = vmatprep.subr.mxu0 0.0
    %728 = vmatpush1.msra.mxu0 0.0
    %729 = vmatprep.subr.mxu0 0.0
    %730 = vmatpush1.msra.mxu0 0.0
    %731 = vmatprep.subr.mxu0 0.0
    %732 = vmatpush1.msra.mxu0 0.0
    %733 = vmatprep.subr.mxu0 0.0
    %734 = vmatpush1.msra.mxu0 0.0
    %735 = vmatprep.subr.mxu0 0.0
    %736 = vmatpush1.msra.mxu0 0.0
    %737 = vmatprep.subr.mxu0 0.0
    %738 = vmatpush1.msra.mxu0 0.0
    %739 = vmatprep.subr.mxu0 0.0
    %740 = vmatpush1.msra.mxu0 0.0
    %741 = vmatprep.subr.mxu0 0.0
    %742 = vmatpush1.msra.mxu0 0.0
    %743 = vmatprep.subr.mxu0 0.0
    %744 = vmatpush1.msra.mxu0 0.0
    %745 = vmatprep.subr.mxu0 0.0
    %746 = vmatpush1.msra.mxu0 0.0
    %747 = vmatprep.subr.mxu0 0.0
    %748 = vmatpush1.msra.mxu0 0.0
    %749 = vmatprep.subr.mxu0 0.0
    %750 = vmatpush1.msra.mxu0 0.0
    %751 = vmatprep.subr.mxu0 0.0
    %752 = vmatpush1.msra.mxu0 0.0
    %753 = vmatprep.subr.mxu0 0.0
    %754 = vmatpush1.msra.mxu0 0.0
    %755 = vmatprep.mubr.f32.mxu0 0.0
    %756 = vmatmul.mubr.f32.gmra.mrb[0].mxu0 %v432
    %v757 = vpop.f32.mrb[0].mxu0
    %v758 = vadd.f32 0.0, %v757
    %v759 = vpop.f32.mrb[0].mxu0
    %v760 = vadd.f32 0.0, %v759
    %761 = vdwg.mxu0
    %v762 = vadd.f32 %v689, %v758
    %v763 = vxor.u32 %v762, 2147483648
    %v764 = vmul.f32 %v763, 1.442695
    %v765 = vpow.pop %v764
    %v766 = vadd.f32 %v765, 1.0
    %v767 = vrcp.pop %v766
    %v768 = vmul.f32 1.0, %v767
    %v769 = vadd.f32 %v760, %v264
    %v770 = vmul.f32 %v768, %v769
    %v771 = vadd.f32 %v690, %v770
    %v772 = vtanh.pop %v771
    %773 = vrot.lane.b32.xlu0 %v768, 64
    %v774 = vpop.permute.xlu0 %773
    %v775 = vsub.f32 1.0, %v774
    %v776 = vmul.f32 %v775, %v772
    %v777 = vmul.f32 %v774, %v432
    %v778 = vadd.f32 %v776, %v777
    %779 = vmatprep.subr.mxu0 %v434
    %780 = vmatpush1.msra.mxu0 %v433
    %781 = vmatprep.subr.mxu0 %v437
    %782 = vmatpush1.msra.mxu0 %v436
    %783 = vmatprep.subr.mxu0 %v440
    %784 = vmatpush1.msra.mxu0 %v439
    %785 = vmatprep.subr.mxu0 %v443
    %786 = vmatpush1.msra.mxu0 %v442
    %787 = vmatprep.subr.mxu0 %v446
    %788 = vmatpush1.msra.mxu0 %v445
    %789 = vmatprep.subr.mxu0 %v449
    %790 = vmatpush1.msra.mxu0 %v448
    %791 = vmatprep.subr.mxu0 %v452
    %792 = vmatpush1.msra.mxu0 %v451
    %793 = vmatprep.subr.mxu0 %v455
    %794 = vmatpush1.msra.mxu0 %v454
    %795 = vmatprep.subr.mxu0 %v458
    %796 = vmatpush1.msra.mxu0 %v457
    %797 = vmatprep.subr.mxu0 %v461
    %798 = vmatpush1.msra.mxu0 %v460
    %799 = vmatprep.subr.mxu0 %v464
    %800 = vmatpush1.msra.mxu0 %v463
    %801 = vmatprep.subr.mxu0 %v467
    %802 = vmatpush1.msra.mxu0 %v466
    %803 = vmatprep.subr.mxu0 %v470
    %804 = vmatpush1.msra.mxu0 %v469
    %805 = vmatprep.subr.mxu0 %v473
    %806 = vmatpush1.msra.mxu0 %v472
    %807 = vmatprep.subr.mxu0 %v476
    %808 = vmatpush1.msra.mxu0 %v475
    %809 = vmatprep.subr.mxu0 %v479
    %810 = vmatpush1.msra.mxu0 %v478
    %811 = vmatprep.subr.mxu0 %v482
    %812 = vmatpush1.msra.mxu0 %v481
    %813 = vmatprep.subr.mxu0 %v485
    %814 = vmatpush1.msra.mxu0 %v484
    %815 = vmatprep.subr.mxu0 %v488
    %816 = vmatpush1.msra.mxu0 %v487
    %817 = vmatprep.subr.mxu0 %v491
    %818 = vmatpush1.msra.mxu0 %v490
    %819 = vmatprep.subr.mxu0 %v494
    %820 = vmatpush1.msra.mxu0 %v493
    %821 = vmatprep.subr.mxu0 %v497
    %822 = vmatpush1.msra.mxu0 %v496
    %823 = vmatprep.subr.mxu0 %v500
    %824 = vmatpush1.msra.mxu0 %v499
    %825 = vmatprep.subr.mxu0 %v503
    %826 = vmatpush1.msra.mxu0 %v502
    %827 = vmatprep.subr.mxu0 %v506
    %828 = vmatpush1.msra.mxu0 %v505
    %829 = vmatprep.subr.mxu0 %v509
    %830 = vmatpush1.msra.mxu0 %v508
    %831 = vmatprep.subr.mxu0 %v512
    %832 = vmatpush1.msra.mxu0 %v511
    %833 = vmatprep.subr.mxu0 %v515
    %834 = vmatpush1.msra.mxu0 %v514
    %835 = vmatprep.subr.mxu0 %v518
    %836 = vmatpush1.msra.mxu0 %v517
    %837 = vmatprep.subr.mxu0 %v521
    %838 = vmatpush1.msra.mxu0 %v520
    %839 = vmatprep.subr.mxu0 %v524
    %840 = vmatpush1.msra.mxu0 %v523
    %841 = vmatprep.subr.mxu0 %v527
    %842 = vmatpush1.msra.mxu0 %v526
    %843 = vmatprep.mubr.f32.mxu0 %v685
    %844 = vmatmul.mubr.f32.gmra.mrb[0].mxu0 %v432
    %v845 = vpop.f32.mrb[0].mxu0
    %v846 = vadd.f32 %v278, %v845
    %v847 = vpop.f32.mrb[0].mxu0
    %v848 = vadd.f32 %v282, %v847
    %849 = vdwg.mxu0
    %850 = vmatprep.subr.mxu0 0.0
    %851 = vmatpush1.msra.mxu0 %v435
    %852 = vmatprep.subr.mxu0 0.0
    %853 = vmatpush1.msra.mxu0 %v438
    %854 = vmatprep.subr.mxu0 0.0
    %855 = vmatpush1.msra.mxu0 %v441
    %856 = vmatprep.subr.mxu0 0.0
    %857 = vmatpush1.msra.mxu0 %v444
    %858 = vmatprep.subr.mxu0 0.0
    %859 = vmatpush1.msra.mxu0 %v447
    %860 = vmatprep.subr.mxu0 0.0
    %861 = vmatpush1.msra.mxu0 %v450
    %862 = vmatprep.subr.mxu0 0.0
    %863 = vmatpush1.msra.mxu0 %v453
    %864 = vmatprep.subr.mxu0 0.0
    %865 = vmatpush1.msra.mxu0 %v456
    %866 = vmatprep.subr.mxu0 0.0
    %867 = vmatpush1.msra.mxu0 %v459
    %868 = vmatprep.subr.mxu0 0.0
    %869 = vmatpush1.msra.mxu0 %v462
    %870 = vmatprep.subr.mxu0 0.0
    %871 = vmatpush1.msra.mxu0 %v465
    %872 = vmatprep.subr.mxu0 0.0
    %873 = vmatpush1.msra.mxu0 %v468
    %874 = vmatprep.subr.mxu0 0.0
    %875 = vmatpush1.msra.mxu0 %v471
    %876 = vmatprep.subr.mxu0 0.0
    %877 = vmatpush1.msra.mxu0 %v474
    %878 = vmatprep.subr.mxu0 0.0
    %879 = vmatpush1.msra.mxu0 %v477
    %880 = vmatprep.subr.mxu0 0.0
    %881 = vmatpush1.msra.mxu0 %v480
    %882 = vmatprep.subr.mxu0 0.0
    %883 = vmatpush1.msra.mxu0 %v483
    %884 = vmatprep.subr.mxu0 0.0
    %885 = vmatpush1.msra.mxu0 %v486
    %886 = vmatprep.subr.mxu0 0.0
    %887 = vmatpush1.msra.mxu0 %v489
    %888 = vmatprep.subr.mxu0 0.0
    %889 = vmatpush1.msra.mxu0 %v492
    %890 = vmatprep.subr.mxu0 0.0
    %891 = vmatpush1.msra.mxu0 %v495
    %892 = vmatprep.subr.mxu0 0.0
    %893 = vmatpush1.msra.mxu0 %v498
    %894 = vmatprep.subr.mxu0 0.0
    %895 = vmatpush1.msra.mxu0 %v501
    %896 = vmatprep.subr.mxu0 0.0
    %897 = vmatpush1.msra.mxu0 %v504
    %898 = vmatprep.subr.mxu0 0.0
    %899 = vmatpush1.msra.mxu0 %v507
    %900 = vmatprep.subr.mxu0 0.0
    %901 = vmatpush1.msra.mxu0 %v510
    %902 = vmatprep.subr.mxu0 0.0
    %903 = vmatpush1.msra.mxu0 %v513
    %904 = vmatprep.subr.mxu0 0.0
    %905 = vmatpush1.msra.mxu0 %v516
    %906 = vmatprep.subr.mxu0 0.0
    %907 = vmatpush1.msra.mxu0 %v519
    %908 = vmatprep.subr.mxu0 0.0
    %909 = vmatpush1.msra.mxu0 %v522
    %910 = vmatprep.subr.mxu0 0.0
    %911 = vmatpush1.msra.mxu0 %v525
    %912 = vmatprep.subr.mxu0 0.0
    %913 = vmatpush1.msra.mxu0 %v528
    %914 = vmatprep.mubr.f32.mxu0 %v685
    %915 = vmatmul.mubr.f32.gmra.mrb[0].mxu0 %v432
    %v916 = vpop.f32.mrb[0].mxu0
    %v917 = vadd.f32 %v286, %v916
    %v918 = vpop.f32.mrb[0].mxu0
    %919 = vdwg.mxu0
    %v920 = vxor.u32 %v846, 2147483648
    %v921 = vmul.f32 %v920, 1.442695
    %v922 = vpow.pop %v921
    %v923 = vadd.f32 %v922, 1.0
    %v924 = vrcp.pop %v923
    %v925 = vmul.f32 1.0, %v924
    %v926 = vadd.f32 %v917, %v271
    %v927 = vmul.f32 %v925, %v926
    %v928 = vadd.f32 %v848, %v927
    %v929 = vtanh.pop %v928
    %930 = vrot.lane.b32.xlu0 %v925, 64
    %v931 = vpop.permute.xlu0 %930
    %v932 = vsub.f32 1.0, %v931
    %v933 = vmul.f32 %v932, %v929
    %v934 = vmul.f32 %v931, %v685
    %v935 = vadd.f32 %v933, %v934
    %s936 = smul.u32 3, 2
    %s937 = smul.addr %s936, 8
    %s938 = scalar_lea.vmem [#allocation2], %s937
    %v939 = vld [vmem:[%s938] sm:$0xff]
    %v940 = vld [vmem:[%s938 + $0x8] sm:$0xff]
    %941 = vmatprep.subr.mxu0 %v314
    %942 = vmatpush1.msra.mxu0 %v313
    %943 = vmatprep.subr.mxu0 %v316
    %944 = vmatpush1.msra.mxu0 %v315
    %945 = vmatprep.subr.mxu0 %v318
    %946 = vmatpush1.msra.mxu0 %v317
    %947 = vmatprep.subr.mxu0 %v320
    %948 = vmatpush1.msra.mxu0 %v319
    %949 = vmatprep.subr.mxu0 %v322
    %950 = vmatpush1.msra.mxu0 %v321
    %951 = vmatprep.subr.mxu0 %v324
    %952 = vmatpush1.msra.mxu0 %v323
    %953 = vmatprep.subr.mxu0 %v326
    %954 = vmatpush1.msra.mxu0 %v325
    %955 = vmatprep.subr.mxu0 %v328
    %956 = vmatpush1.msra.mxu0 %v327
    %957 = vmatprep.subr.mxu0 %v330
    %958 = vmatpush1.msra.mxu0 %v329
    %959 = vmatprep.subr.mxu0 %v332
    %960 = vmatpush1.msra.mxu0 %v331
    %961 = vmatprep.subr.mxu0 %v334
    %962 = vmatpush1.msra.mxu0 %v333
    %963 = vmatprep.subr.mxu0 %v336
    %964 = vmatpush1.msra.mxu0 %v335
    %965 = vmatprep.subr.mxu0 %v338
    %966 = vmatpush1.msra.mxu0 %v337
    %967 = vmatprep.subr.mxu0 %v340
    %968 = vmatpush1.msra.mxu0 %v339
    %969 = vmatprep.subr.mxu0 %v342
    %970 = vmatpush1.msra.mxu0 %v341
    %971 = vmatprep.subr.mxu0 %v344
    %972 = vmatpush1.msra.mxu0 %v343
    %973 = vmatprep.subr.mxu0 0.0
    %974 = vmatpush1.msra.mxu0 0.0
    %975 = vmatprep.subr.mxu0 0.0
    %976 = vmatpush1.msra.mxu0 0.0
    %977 = vmatprep.subr.mxu0 0.0
    %978 = vmatpush1.msra.mxu0 0.0
    %979 = vmatprep.subr.mxu0 0.0
    %980 = vmatpush1.msra.mxu0 0.0
    %981 = vmatprep.subr.mxu0 0.0
    %982 = vmatpush1.msra.mxu0 0.0
    %983 = vmatprep.subr.mxu0 0.0
    %984 = vmatpush1.msra.mxu0 0.0
    %985 = vmatprep.subr.mxu0 0.0
    %986 = vmatpush1.msra.mxu0 0.0
    %987 = vmatprep.subr.mxu0 0.0
    %988 = vmatpush1.msra.mxu0 0.0
    %989 = vmatprep.subr.mxu0 0.0
    %990 = vmatpush1.msra.mxu0 0.0
    %991 = vmatprep.subr.mxu0 0.0
    %992 = vmatpush1.msra.mxu0 0.0
    %993 = vmatprep.subr.mxu0 0.0
    %994 = vmatpush1.msra.mxu0 0.0
    %995 = vmatprep.subr.mxu0 0.0
    %996 = vmatpush1.msra.mxu0 0.0
    %997 = vmatprep.subr.mxu0 0.0
    %998 = vmatpush1.msra.mxu0 0.0
    %999 = vmatprep.subr.mxu0 0.0
    %1000 = vmatpush1.msra.mxu0 0.0
    %1001 = vmatprep.subr.mxu0 0.0
    %1002 = vmatpush1.msra.mxu0 0.0
    %1003 = vmatprep.subr.mxu0 0.0
    %1004 = vmatpush1.msra.mxu0 0.0
    %1005 = vmatprep.mubr.f32.mxu0 0.0
    %1006 = vmatmul.mubr.f32.gmra.mrb[0].mxu0 %v778
    %v1007 = vpop.f32.mrb[0].mxu0
    %v1008 = vadd.f32 0.0, %v1007
    %v1009 = vpop.f32.mrb[0].mxu0
    %v1010 = vadd.f32 0.0, %v1009
    %1011 = vdwg.mxu0
    %v1012 = vadd.f32 %v939, %v1008
    %v1013 = vxor.u32 %v1012, 2147483648
    %v1014 = vmul.f32 %v1013, 1.442695
    %v1015 = vpow.pop %v1014
    %v1016 = vadd.f32 %v1015, 1.0
    %v1017 = vrcp.pop %v1016
    %v1018 = vmul.f32 1.0, %v1017
    %v1019 = vadd.f32 %v1010, %v264
    %v1020 = vmul.f32 %v1018, %v1019
    %v1021 = vadd.f32 %v940, %v1020
    %v1022 = vtanh.pop %v1021
    %1023 = vrot.lane.b32.xlu0 %v1018, 64
    %v1024 = vpop.permute.xlu0 %1023
    %v1025 = vsub.f32 1.0, %v1024
    %v1026 = vmul.f32 %v1025, %v1022
    %v1027 = vmul.f32 %v1024, %v778
    %v1028 = vadd.f32 %v1026, %v1027
    %1029 = vmatprep.subr.mxu0 %v434
    %1030 = vmatpush1.msra.mxu0 %v433
    %1031 = vmatprep.subr.mxu0 %v437
    %1032 = vmatpush1.msra.mxu0 %v436
    %1033 = vmatprep.subr.mxu0 %v440
    %1034 = vmatpush1.msra.mxu0 %v439
    %1035 = vmatprep.subr.mxu0 %v443
    %1036 = vmatpush1.msra.mxu0 %v442
    %1037 = vmatprep.subr.mxu0 %v446
    %1038 = vmatpush1.msra.mxu0 %v445
    %1039 = vmatprep.subr.mxu0 %v449
    %1040 = vmatpush1.msra.mxu0 %v448
    %1041 = vmatprep.subr.mxu0 %v452
    %1042 = vmatpush1.msra.mxu0 %v451
    %1043 = vmatprep.subr.mxu0 %v455
    %1044 = vmatpush1.msra.mxu0 %v454
    %1045 = vmatprep.subr.mxu0 %v458
    %1046 = vmatpush1.msra.mxu0 %v457
    %1047 = vmatprep.subr.mxu0 %v461
    %1048 = vmatpush1.msra.mxu0 %v460
    %1049 = vmatprep.subr.mxu0 %v464
    %1050 = vmatpush1.msra.mxu0 %v463
    %1051 = vmatprep.subr.mxu0 %v467
    %1052 = vmatpush1.msra.mxu0 %v466
    %1053 = vmatprep.subr.mxu0 %v470
    %1054 = vmatpush1.msra.mxu0 %v469
    %1055 = vmatprep.subr.mxu0 %v473
    %1056 = vmatpush1.msra.mxu0 %v472
    %1057 = vmatprep.subr.mxu0 %v476
    %1058 = vmatpush1.msra.mxu0 %v475
    %1059 = vmatprep.subr.mxu0 %v479
    %1060 = vmatpush1.msra.mxu0 %v478
    %1061 = vmatprep.subr.mxu0 %v482
    %1062 = vmatpush1.msra.mxu0 %v481
    %1063 = vmatprep.subr.mxu0 %v485
    %1064 = vmatpush1.msra.mxu0 %v484
    %1065 = vmatprep.subr.mxu0 %v488
    %1066 = vmatpush1.msra.mxu0 %v487
    %1067 = vmatprep.subr.mxu0 %v491
    %1068 = vmatpush1.msra.mxu0 %v490
    %1069 = vmatprep.subr.mxu0 %v494
    %1070 = vmatpush1.msra.mxu0 %v493
    %1071 = vmatprep.subr.mxu0 %v497
    %1072 = vmatpush1.msra.mxu0 %v496
    %1073 = vmatprep.subr.mxu0 %v500
    %1074 = vmatpush1.msra.mxu0 %v499
    %1075 = vmatprep.subr.mxu0 %v503
    %1076 = vmatpush1.msra.mxu0 %v502
    %1077 = vmatprep.subr.mxu0 %v506
    %1078 = vmatpush1.msra.mxu0 %v505
    %1079 = vmatprep.subr.mxu0 %v509
    %1080 = vmatpush1.msra.mxu0 %v508
    %1081 = vmatprep.subr.mxu0 %v512
    %1082 = vmatpush1.msra.mxu0 %v511
    %1083 = vmatprep.subr.mxu0 %v515
    %1084 = vmatpush1.msra.mxu0 %v514
    %1085 = vmatprep.subr.mxu0 %v518
    %1086 = vmatpush1.msra.mxu0 %v517
    %1087 = vmatprep.subr.mxu0 %v521
    %1088 = vmatpush1.msra.mxu0 %v520
    %1089 = vmatprep.subr.mxu0 %v524
    %1090 = vmatpush1.msra.mxu0 %v523
    %1091 = vmatprep.subr.mxu0 %v527
    %1092 = vmatpush1.msra.mxu0 %v526
    %1093 = vmatprep.mubr.f32.mxu0 %v935
    %1094 = vmatmul.mubr.f32.gmra.mrb[0].mxu0 %v778
    %v1095 = vpop.f32.mrb[0].mxu0
    %v1096 = vadd.f32 %v278, %v1095
    %v1097 = vpop.f32.mrb[0].mxu0
    %v1098 = vadd.f32 %v282, %v1097
    %1099 = vdwg.mxu0
    %1100 = vmatprep.subr.mxu0 0.0
    %1101 = vmatpush1.msra.mxu0 %v435
    %1102 = vmatprep.subr.mxu0 0.0
    %1103 = vmatpush1.msra.mxu0 %v438
    %1104 = vmatprep.subr.mxu0 0.0
    %1105 = vmatpush1.msra.mxu0 %v441
    %1106 = vmatprep.subr.mxu0 0.0
    %1107 = vmatpush1.msra.mxu0 %v444
    %1108 = vmatprep.subr.mxu0 0.0
    %1109 = vmatpush1.msra.mxu0 %v447
    %1110 = vmatprep.subr.mxu0 0.0
    %1111 = vmatpush1.msra.mxu0 %v450
    %1112 = vmatprep.subr.mxu0 0.0
    %1113 = vmatpush1.msra.mxu0 %v453
    %1114 = vmatprep.subr.mxu0 0.0
    %1115 = vmatpush1.msra.mxu0 %v456
    %1116 = vmatprep.subr.mxu0 0.0
    %1117 = vmatpush1.msra.mxu0 %v459
    %1118 = vmatprep.subr.mxu0 0.0
    %1119 = vmatpush1.msra.mxu0 %v462
    %1120 = vmatprep.subr.mxu0 0.0
    %1121 = vmatpush1.msra.mxu0 %v465
    %1122 = vmatprep.subr.mxu0 0.0
    %1123 = vmatpush1.msra.mxu0 %v468
    %1124 = vmatprep.subr.mxu0 0.0
    %1125 = vmatpush1.msra.mxu0 %v471
    %1126 = vmatprep.subr.mxu0 0.0
    %1127 = vmatpush1.msra.mxu0 %v474
    %1128 = vmatprep.subr.mxu0 0.0
    %1129 = vmatpush1.msra.mxu0 %v477
    %1130 = vmatprep.subr.mxu0 0.0
    %1131 = vmatpush1.msra.mxu0 %v480
    %1132 = vmatprep.subr.mxu0 0.0
    %1133 = vmatpush1.msra.mxu0 %v483
    %1134 = vmatprep.subr.mxu0 0.0
    %1135 = vmatpush1.msra.mxu0 %v486
    %1136 = vmatprep.subr.mxu0 0.0
    %1137 = vmatpush1.msra.mxu0 %v489
    %1138 = vmatprep.subr.mxu0 0.0
    %1139 = vmatpush1.msra.mxu0 %v492
    %1140 = vmatprep.subr.mxu0 0.0
    %1141 = vmatpush1.msra.mxu0 %v495
    %1142 = vmatprep.subr.mxu0 0.0
    %1143 = vmatpush1.msra.mxu0 %v498
    %1144 = vmatprep.subr.mxu0 0.0
    %1145 = vmatpush1.msra.mxu0 %v501
    %1146 = vmatprep.subr.mxu0 0.0
    %1147 = vmatpush1.msra.mxu0 %v504
    %1148 = vmatprep.subr.mxu0 0.0
    %1149 = vmatpush1.msra.mxu0 %v507
    %1150 = vmatprep.subr.mxu0 0.0
    %1151 = vmatpush1.msra.mxu0 %v510
    %1152 = vmatprep.subr.mxu0 0.0
    %1153 = vmatpush1.msra.mxu0 %v513
    %1154 = vmatprep.subr.mxu0 0.0
    %1155 = vmatpush1.msra.mxu0 %v516
    %1156 = vmatprep.subr.mxu0 0.0
    %1157 = vmatpush1.msra.mxu0 %v519
    %1158 = vmatprep.subr.mxu0 0.0
    %1159 = vmatpush1.msra.mxu0 %v522
    %1160 = vmatprep.subr.mxu0 0.0
    %1161 = vmatpush1.msra.mxu0 %v525
    %1162 = vmatprep.subr.mxu0 0.0
    %1163 = vmatpush1.msra.mxu0 %v528
    %1164 = vmatprep.mubr.f32.mxu0 %v935
    %1165 = vmatmul.mubr.f32.gmra.mrb[0].mxu0 %v778
    %v1166 = vpop.f32.mrb[0].mxu0
    %v1167 = vadd.f32 %v286, %v1166
    %v1168 = vpop.f32.mrb[0].mxu0
    %1169 = vdwg.mxu0
    %v1170 = vxor.u32 %v1096, 2147483648
    %v1171 = vmul.f32 %v1170, 1.442695
    %v1172 = vpow.pop %v1171
    %v1173 = vadd.f32 %v1172, 1.0
    %v1174 = vrcp.pop %v1173
    %v1175 = vmul.f32 1.0, %v1174
    %v1176 = vadd.f32 %v1167, %v271
    %v1177 = vmul.f32 %v1175, %v1176
    %v1178 = vadd.f32 %v1098, %v1177
    %v1179 = vtanh.pop %v1178
    %1180 = vrot.lane.b32.xlu0 %v1175, 64
    %v1181 = vpop.permute.xlu0 %1180
    %v1182 = vsub.f32 1.0, %v1181
    %v1183 = vmul.f32 %v1182, %v1179
    %v1184 = vmul.f32 %v1181, %v935
    %v1185 = vadd.f32 %v1183, %v1184
    %s1186 = smul.u32 4, 2
    %s1187 = smul.addr %s1186, 8
    %s1188 = scalar_lea.vmem [#allocation2], %s1187
    %v1189 = vld [vmem:[%s1188] sm:$0xff]
    %v1190 = vld [vmem:[%s1188 + $0x8] sm:$0xff]
    %1191 = vmatprep.subr.mxu0 %v314
    %1192 = vmatpush1.msra.mxu0 %v313
    %1193 = vmatprep.subr.mxu0 %v316
    %1194 = vmatpush1.msra.mxu0 %v315
    %1195 = vmatprep.subr.mxu0 %v318
    %1196 = vmatpush1.msra.mxu0 %v317
    %1197 = vmatprep.subr.mxu0 %v320
    %1198 = vmatpush1.msra.mxu0 %v319
    %1199 = vmatprep.subr.mxu0 %v322
    %1200 = vmatpush1.msra.mxu0 %v321
    %1201 = vmatprep.subr.mxu0 %v324
    %1202 = vmatpush1.msra.mxu0 %v323
    %1203 = vmatprep.subr.mxu0 %v326
    %1204 = vmatpush1.msra.mxu0 %v325
    %1205 = vmatprep.subr.mxu0 %v328
    %1206 = vmatpush1.msra.mxu0 %v327
    %1207 = vmatprep.subr.mxu0 %v330
    %1208 = vmatpush1.msra.mxu0 %v329
    %1209 = vmatprep.subr.mxu0 %v332
    %1210 = vmatpush1.msra.mxu0 %v331
    %1211 = vmatprep.subr.mxu0 %v334
    %1212 = vmatpush1.msra.mxu0 %v333
    %1213 = vmatprep.subr.mxu0 %v336
    %1214 = vmatpush1.msra.mxu0 %v335
    %1215 = vmatprep.subr.mxu0 %v338
    %1216 = vmatpush1.msra.mxu0 %v337
    %1217 = vmatprep.subr.mxu0 %v340
    %1218 = vmatpush1.msra.mxu0 %v339
    %1219 = vmatprep.subr.mxu0 %v342
    %1220 = vmatpush1.msra.mxu0 %v341
    %1221 = vmatprep.subr.mxu0 %v344
    %1222 = vmatpush1.msra.mxu0 %v343
    %1223 = vmatprep.subr.mxu0 0.0
    %1224 = vmatpush1.msra.mxu0 0.0
    %1225 = vmatprep.subr.mxu0 0.0
    %1226 = vmatpush1.msra.mxu0 0.0
    %1227 = vmatprep.subr.mxu0 0.0
    %1228 = vmatpush1.msra.mxu0 0.0
    %1229 = vmatprep.subr.mxu0 0.0
    %1230 = vmatpush1.msra.mxu0 0.0
    %1231 = vmatprep.subr.mxu0 0.0
    %1232 = vmatpush1.msra.mxu0 0.0
    %1233 = vmatprep.subr.mxu0 0.0
    %1234 = vmatpush1.msra.mxu0 0.0
    %1235 = vmatprep.subr.mxu0 0.0
    %1236 = vmatpush1.msra.mxu0 0.0
    %1237 = vmatprep.subr.mxu0 0.0
    %1238 = vmatpush1.msra.mxu0 0.0
    %1239 = vmatprep.subr.mxu0 0.0
    %1240 = vmatpush1.msra.mxu0 0.0
    %1241 = vmatprep.subr.mxu0 0.0
    %1242 = vmatpush1.msra.mxu0 0.0
    %1243 = vmatprep.subr.mxu0 0.0
    %1244 = vmatpush1.msra.mxu0 0.0
    %1245 = vmatprep.subr.mxu0 0.0
    %1246 = vmatpush1.msra.mxu0 0.0
    %1247 = vmatprep.subr.mxu0 0.0
    %1248 = vmatpush1.msra.mxu0 0.0
    %1249 = vmatprep.subr.mxu0 0.0
    %1250 = vmatpush1.msra.mxu0 0.0
    %1251 = vmatprep.subr.mxu0 0.0
    %1252 = vmatpush1.msra.mxu0 0.0
    %1253 = vmatprep.subr.mxu0 0.0
    %1254 = vmatpush1.msra.mxu0 0.0
    %1255 = vmatprep.mubr.f32.mxu0 0.0
    %1256 = vmatmul.mubr.f32.gmra.mrb[0].mxu0 %v1028
    %v1257 = vpop.f32.mrb[0].mxu0
    %v1258 = vadd.f32 0.0, %v1257
    %v1259 = vpop.f32.mrb[0].mxu0
    %v1260 = vadd.f32 0.0, %v1259
    %1261 = vdwg.mxu0
    %v1262 = vadd.f32 %v1189, %v1258
    %v1263 = vxor.u32 %v1262, 2147483648
    %v1264 = vmul.f32 %v1263, 1.442695
    %v1265 = vpow.pop %v1264
    %v1266 = vadd.f32 %v1265, 1.0
    %v1267 = vrcp.pop %v1266
    %v1268 = vmul.f32 1.0, %v1267
    %v1269 = vadd.f32 %v1260, %v264
    %v1270 = vmul.f32 %v1268, %v1269
    %v1271 = vadd.f32 %v1190, %v1270
    %v1272 = vtanh.pop %v1271
    %1273 = vrot.lane.b32.xlu0 %v1268, 64
    %v1274 = vpop.permute.xlu0 %1273
    %v1275 = vsub.f32 1.0, %v1274
    %v1276 = vmul.f32 %v1275, %v1272
    %v1277 = vmul.f32 %v1274, %v1028
    %v1278 = vadd.f32 %v1276, %v1277
    %1279 = vmatprep.subr.mxu0 %v434
    %1280 = vmatpush1.msra.mxu0 %v433
    %1281 = vmatprep.subr.mxu0 %v437
    %1282 = vmatpush1.msra.mxu0 %v436
    %1283 = vmatprep.subr.mxu0 %v440
    %1284 = vmatpush1.msra.mxu0 %v439
    %1285 = vmatprep.subr.mxu0 %v443
    %1286 = vmatpush1.msra.mxu0 %v442
    %1287 = vmatprep.subr.mxu0 %v446
    %1288 = vmatpush1.msra.mxu0 %v445
    %1289 = vmatprep.subr.mxu0 %v449
    %1290 = vmatpush1.msra.mxu0 %v448
    %1291 = vmatprep.subr.mxu0 %v452
    %1292 = vmatpush1.msra.mxu0 %v451
    %1293 = vmatprep.subr.mxu0 %v455
    %1294 = vmatpush1.msra.mxu0 %v454
    %1295 = vmatprep.subr.mxu0 %v458
    %1296 = vmatpush1.msra.mxu0 %v457
    %1297 = vmatprep.subr.mxu0 %v461
    %1298 = vmatpush1.msra.mxu0 %v460
    %1299 = vmatprep.subr.mxu0 %v464
    %1300 = vmatpush1.msra.mxu0 %v463
    %1301 = vmatprep.subr.mxu0 %v467
    %1302 = vmatpush1.msra.mxu0 %v466
    %1303 = vmatprep.subr.mxu0 %v470
    %1304 = vmatpush1.msra.mxu0 %v469
    %1305 = vmatprep.subr.mxu0 %v473
    %1306 = vmatpush1.msra.mxu0 %v472
    %1307 = vmatprep.subr.mxu0 %v476
    %1308 = vmatpush1.msra.mxu0 %v475
    %1309 = vmatprep.subr.mxu0 %v479
    %1310 = vmatpush1.msra.mxu0 %v478
    %1311 = vmatprep.subr.mxu0 %v482
    %1312 = vmatpush1.msra.mxu0 %v481
    %1313 = vmatprep.subr.mxu0 %v485
    %1314 = vmatpush1.msra.mxu0 %v484
    %1315 = vmatprep.subr.mxu0 %v488
    %1316 = vmatpush1.msra.mxu0 %v487
    %1317 = vmatprep.subr.mxu0 %v491
    %1318 = vmatpush1.msra.mxu0 %v490
    %1319 = vmatprep.subr.mxu0 %v494
    %1320 = vmatpush1.msra.mxu0 %v493
    %1321 = vmatprep.subr.mxu0 %v497
    %1322 = vmatpush1.msra.mxu0 %v496
    %1323 = vmatprep.subr.mxu0 %v500
    %1324 = vmatpush1.msra.mxu0 %v499
    %1325 = vmatprep.subr.mxu0 %v503
    %1326 = vmatpush1.msra.mxu0 %v502
    %1327 = vmatprep.subr.mxu0 %v506
    %1328 = vmatpush1.msra.mxu0 %v505
    %1329 = vmatprep.subr.mxu0 %v509
    %1330 = vmatpush1.msra.mxu0 %v508
    %1331 = vmatprep.subr.mxu0 %v512
    %1332 = vmatpush1.msra.mxu0 %v511
    %1333 = vmatprep.subr.mxu0 %v515
    %1334 = vmatpush1.msra.mxu0 %v514
    %1335 = vmatprep.subr.mxu0 %v518
    %1336 = vmatpush1.msra.mxu0 %v517
    %1337 = vmatprep.subr.mxu0 %v521
    %1338 = vmatpush1.msra.mxu0 %v520
    %1339 = vmatprep.subr.mxu0 %v524
    %1340 = vmatpush1.msra.mxu0 %v523
    %1341 = vmatprep.subr.mxu0 %v527
    %1342 = vmatpush1.msra.mxu0 %v526
    %1343 = vmatprep.mubr.f32.mxu0 %v1185
    %1344 = vmatmul.mubr.f32.gmra.mrb[0].mxu0 %v1028
    %v1345 = vpop.f32.mrb[0].mxu0
    %v1346 = vadd.f32 %v278, %v1345
    %v1347 = vpop.f32.mrb[0].mxu0
    %v1348 = vadd.f32 %v282, %v1347
    %1349 = vdwg.mxu0
    %1350 = vmatprep.subr.mxu0 0.0
    %1351 = vmatpush1.msra.mxu0 %v435
    %1352 = vmatprep.subr.mxu0 0.0
    %1353 = vmatpush1.msra.mxu0 %v438
    %1354 = vmatprep.subr.mxu0 0.0
    %1355 = vmatpush1.msra.mxu0 %v441
    %1356 = vmatprep.subr.mxu0 0.0
    %1357 = vmatpush1.msra.mxu0 %v444
    %1358 = vmatprep.subr.mxu0 0.0
    %1359 = vmatpush1.msra.mxu0 %v447
    %1360 = vmatprep.subr.mxu0 0.0
    %1361 = vmatpush1.msra.mxu0 %v450
    %1362 = vmatprep.subr.mxu0 0.0
    %1363 = vmatpush1.msra.mxu0 %v453
    %1364 = vmatprep.subr.mxu0 0.0
    %1365 = vmatpush1.msra.mxu0 %v456
    %1366 = vmatprep.subr.mxu0 0.0
    %1367 = vmatpush1.msra.mxu0 %v459
    %1368 = vmatprep.subr.mxu0 0.0
    %1369 = vmatpush1.msra.mxu0 %v462
    %1370 = vmatprep.subr.mxu0 0.0
    %1371 = vmatpush1.msra.mxu0 %v465
    %1372 = vmatprep.subr.mxu0 0.0
    %1373 = vmatpush1.msra.mxu0 %v468
    %1374 = vmatprep.subr.mxu0 0.0
    %1375 = vmatpush1.msra.mxu0 %v471
    %1376 = vmatprep.subr.mxu0 0.0
    %1377 = vmatpush1.msra.mxu0 %v474
    %1378 = vmatprep.subr.mxu0 0.0
    %1379 = vmatpush1.msra.mxu0 %v477
    %1380 = vmatprep.subr.mxu0 0.0
    %1381 = vmatpush1.msra.mxu0 %v480
    %1382 = vmatprep.subr.mxu0 0.0
    %1383 = vmatpush1.msra.mxu0 %v483
    %1384 = vmatprep.subr.mxu0 0.0
    %1385 = vmatpush1.msra.mxu0 %v486
    %1386 = vmatprep.subr.mxu0 0.0
    %1387 = vmatpush1.msra.mxu0 %v489
    %1388 = vmatprep.subr.mxu0 0.0
    %1389 = vmatpush1.msra.mxu0 %v492
    %1390 = vmatprep.subr.mxu0 0.0
    %1391 = vmatpush1.msra.mxu0 %v495
    %1392 = vmatprep.subr.mxu0 0.0
    %1393 = vmatpush1.msra.mxu0 %v498
    %1394 = vmatprep.subr.mxu0 0.0
    %1395 = vmatpush1.msra.mxu0 %v501
    %1396 = vmatprep.subr.mxu0 0.0
    %1397 = vmatpush1.msra.mxu0 %v504
    %1398 = vmatprep.subr.mxu0 0.0
    %1399 = vmatpush1.msra.mxu0 %v507
    %1400 = vmatprep.subr.mxu0 0.0
    %1401 = vmatpush1.msra.mxu0 %v510
    %1402 = vmatprep.subr.mxu0 0.0
    %1403 = vmatpush1.msra.mxu0 %v513
    %1404 = vmatprep.subr.mxu0 0.0
    %1405 = vmatpush1.msra.mxu0 %v516
    %1406 = vmatprep.subr.mxu0 0.0
    %1407 = vmatpush1.msra.mxu0 %v519
    %1408 = vmatprep.subr.mxu0 0.0
    %1409 = vmatpush1.msra.mxu0 %v522
    %1410 = vmatprep.subr.mxu0 0.0
    %1411 = vmatpush1.msra.mxu0 %v525
    %1412 = vmatprep.subr.mxu0 0.0
    %1413 = vmatpush1.msra.mxu0 %v528
    %1414 = vmatprep.mubr.f32.mxu0 %v1185
    %1415 = vmatmul.mubr.f32.gmra.mrb[0].mxu0 %v1028
    %v1416 = vpop.f32.mrb[0].mxu0
    %v1417 = vadd.f32 %v286, %v1416
    %v1418 = vpop.f32.mrb[0].mxu0
    %1419 = vdwg.mxu0
    %v1420 = vxor.u32 %v1346, 2147483648
    %v1421 = vmul.f32 %v1420, 1.442695
    %v1422 = vpow.pop %v1421
    %v1423 = vadd.f32 %v1422, 1.0
    %v1424 = vrcp.pop %v1423
    %v1425 = vmul.f32 1.0, %v1424
    %v1426 = vadd.f32 %v1417, %v271
    %v1427 = vmul.f32 %v1425, %v1426
    %v1428 = vadd.f32 %v1348, %v1427
    %v1429 = vtanh.pop %v1428
    %1430 = vrot.lane.b32.xlu0 %v1425, 64
    %v1431 = vpop.permute.xlu0 %1430
    %v1432 = vsub.f32 1.0, %v1431
    %v1433 = vmul.f32 %v1432, %v1429
    %v1434 = vmul.f32 %v1431, %v1185
    %v1435 = vadd.f32 %v1433, %v1434
    %s1436 = smul.u32 5, 2
    %s1437 = smul.addr %s1436, 8
    %s1438 = scalar_lea.vmem [#allocation2], %s1437
    %v1439 = vld [vmem:[%s1438] sm:$0xff]
    %v1440 = vld [vmem:[%s1438 + $0x8] sm:$0xff]
    %1441 = vmatprep.subr.mxu0 %v314
    %1442 = vmatpush1.msra.mxu0 %v313
    %1443 = vmatprep.subr.mxu0 %v316
    %1444 = vmatpush1.msra.mxu0 %v315
    %1445 = vmatprep.subr.mxu0 %v318
    %1446 = vmatpush1.msra.mxu0 %v317
    %1447 = vmatprep.subr.mxu0 %v320
    %1448 = vmatpush1.msra.mxu0 %v319
    %1449 = vmatprep.subr.mxu0 %v322
    %1450 = vmatpush1.msra.mxu0 %v321
    %1451 = vmatprep.subr.mxu0 %v324
    %1452 = vmatpush1.msra.mxu0 %v323
    %1453 = vmatprep.subr.mxu0 %v326
    %1454 = vmatpush1.msra.mxu0 %v325
    %1455 = vmatprep.subr.mxu0 %v328
    %1456 = vmatpush1.msra.mxu0 %v327
    %1457 = vmatprep.subr.mxu0 %v330
    %1458 = vmatpush1.msra.mxu0 %v329
    %1459 = vmatprep.subr.mxu0 %v332
    %1460 = vmatpush1.msra.mxu0 %v331
    %1461 = vmatprep.subr.mxu0 %v334
    %1462 = vmatpush1.msra.mxu0 %v333
    %1463 = vmatprep.subr.mxu0 %v336
    %1464 = vmatpush1.msra.mxu0 %v335
    %1465 = vmatprep.subr.mxu0 %v338
    %1466 = vmatpush1.msra.mxu0 %v337
    %1467 = vmatprep.subr.mxu0 %v340
    %1468 = vmatpush1.msra.mxu0 %v339
    %1469 = vmatprep.subr.mxu0 %v342
    %1470 = vmatpush1.msra.mxu0 %v341
    %1471 = vmatprep.subr.mxu0 %v344
    %1472 = vmatpush1.msra.mxu0 %v343
    %1473 = vmatprep.subr.mxu0 0.0
    %1474 = vmatpush1.msra.mxu0 0.0
    %1475 = vmatprep.subr.mxu0 0.0
    %1476 = vmatpush1.msra.mxu0 0.0
    %1477 = vmatprep.subr.mxu0 0.0
    %1478 = vmatpush1.msra.mxu0 0.0
    %1479 = vmatprep.subr.mxu0 0.0
    %1480 = vmatpush1.msra.mxu0 0.0
    %1481 = vmatprep.subr.mxu0 0.0
    %1482 = vmatpush1.msra.mxu0 0.0
    %1483 = vmatprep.subr.mxu0 0.0
    %1484 = vmatpush1.msra.mxu0 0.0
    %1485 = vmatprep.subr.mxu0 0.0
    %1486 = vmatpush1.msra.mxu0 0.0
    %1487 = vmatprep.subr.mxu0 0.0
    %1488 = vmatpush1.msra.mxu0 0.0
    %1489 = vmatprep.subr.mxu0 0.0
    %1490 = vmatpush1.msra.mxu0 0.0
    %1491 = vmatprep.subr.mxu0 0.0
    %1492 = vmatpush1.msra.mxu0 0.0
    %1493 = vmatprep.subr.mxu0 0.0
    %1494 = vmatpush1.msra.mxu0 0.0
    %1495 = vmatprep.subr.mxu0 0.0
    %1496 = vmatpush1.msra.mxu0 0.0
    %1497 = vmatprep.subr.mxu0 0.0
    %1498 = vmatpush1.msra.mxu0 0.0
    %1499 = vmatprep.subr.mxu0 0.0
    %1500 = vmatpush1.msra.mxu0 0.0
    %1501 = vmatprep.subr.mxu0 0.0
    %1502 = vmatpush1.msra.mxu0 0.0
    %1503 = vmatprep.subr.mxu0 0.0
    %1504 = vmatpush1.msra.mxu0 0.0
    %1505 = vmatprep.mubr.f32.mxu0 0.0
    %1506 = vmatmul.mubr.f32.gmra.mrb[0].mxu0 %v1278
    %v1507 = vpop.f32.mrb[0].mxu0
    %v1508 = vadd.f32 0.0, %v1507
    %v1509 = vpop.f32.mrb[0].mxu0
    %v1510 = vadd.f32 0.0, %v1509
    %1511 = vdwg.mxu0
    %v1512 = vadd.f32 %v1439, %v1508
    %v1513 = vxor.u32 %v1512, 2147483648
    %v1514 = vmul.f32 %v1513, 1.442695
    %v1515 = vpow.pop %v1514
    %v1516 = vadd.f32 %v1515, 1.0
    %v1517 = vrcp.pop %v1516
    %v1518 = vmul.f32 1.0, %v1517
    %v1519 = vadd.f32 %v1510, %v264
    %v1520 = vmul.f32 %v1518, %v1519
    %v1521 = vadd.f32 %v1440, %v1520
    %v1522 = vtanh.pop %v1521
    %1523 = vrot.lane.b32.xlu0 %v1518, 64
    %v1524 = vpop.permute.xlu0 %1523
    %v1525 = vsub.f32 1.0, %v1524
    %v1526 = vmul.f32 %v1525, %v1522
    %v1527 = vmul.f32 %v1524, %v1278
    %v1528 = vadd.f32 %v1526, %v1527
    %1529 = vmatprep.subr.mxu0 %v434
    %1530 = vmatpush1.msra.mxu0 %v433
    %1531 = vmatprep.subr.mxu0 %v437
    %1532 = vmatpush1.msra.mxu0 %v436
    %1533 = vmatprep.subr.mxu0 %v440
    %1534 = vmatpush1.msra.mxu0 %v439
    %1535 = vmatprep.subr.mxu0 %v443
    %1536 = vmatpush1.msra.mxu0 %v442
    %1537 = vmatprep.subr.mxu0 %v446
    %1538 = vmatpush1.msra.mxu0 %v445
    %1539 = vmatprep.subr.mxu0 %v449
    %1540 = vmatpush1.msra.mxu0 %v448
    %1541 = vmatprep.subr.mxu0 %v452
    %1542 = vmatpush1.msra.mxu0 %v451
    %1543 = vmatprep.subr.mxu0 %v455
    %1544 = vmatpush1.msra.mxu0 %v454
    %1545 = vmatprep.subr.mxu0 %v458
    %1546 = vmatpush1.msra.mxu0 %v457
    %1547 = vmatprep.subr.mxu0 %v461
    %1548 = vmatpush1.msra.mxu0 %v460
    %1549 = vmatprep.subr.mxu0 %v464
    %1550 = vmatpush1.msra.mxu0 %v463
    %1551 = vmatprep.subr.mxu0 %v467
    %1552 = vmatpush1.msra.mxu0 %v466
    %1553 = vmatprep.subr.mxu0 %v470
    %1554 = vmatpush1.msra.mxu0 %v469
    %1555 = vmatprep.subr.mxu0 %v473
    %1556 = vmatpush1.msra.mxu0 %v472
    %1557 = vmatprep.subr.mxu0 %v476
    %1558 = vmatpush1.msra.mxu0 %v475
    %1559 = vmatprep.subr.mxu0 %v479
    %1560 = vmatpush1.msra.mxu0 %v478
    %1561 = vmatprep.subr.mxu0 %v482
    %1562 = vmatpush1.msra.mxu0 %v481
    %1563 = vmatprep.subr.mxu0 %v485
    %1564 = vmatpush1.msra.mxu0 %v484
    %1565 = vmatprep.subr.mxu0 %v488
    %1566 = vmatpush1.msra.mxu0 %v487
    %1567 = vmatprep.subr.mxu0 %v491
    %1568 = vmatpush1.msra.mxu0 %v490
    %1569 = vmatprep.subr.mxu0 %v494
    %1570 = vmatpush1.msra.mxu0 %v493
    %1571 = vmatprep.subr.mxu0 %v497
    %1572 = vmatpush1.msra.mxu0 %v496
    %1573 = vmatprep.subr.mxu0 %v500
    %1574 = vmatpush1.msra.mxu0 %v499
    %1575 = vmatprep.subr.mxu0 %v503
    %1576 = vmatpush1.msra.mxu0 %v502
    %1577 = vmatprep.subr.mxu0 %v506
    %1578 = vmatpush1.msra.mxu0 %v505
    %1579 = vmatprep.subr.mxu0 %v509
    %1580 = vmatpush1.msra.mxu0 %v508
    %1581 = vmatprep.subr.mxu0 %v512
    %1582 = vmatpush1.msra.mxu0 %v511
    %1583 = vmatprep.subr.mxu0 %v515
    %1584 = vmatpush1.msra.mxu0 %v514
    %1585 = vmatprep.subr.mxu0 %v518
    %1586 = vmatpush1.msra.mxu0 %v517
    %1587 = vmatprep.subr.mxu0 %v521
    %1588 = vmatpush1.msra.mxu0 %v520
    %1589 = vmatprep.subr.mxu0 %v524
    %1590 = vmatpush1.msra.mxu0 %v523
    %1591 = vmatprep.subr.mxu0 %v527
    %1592 = vmatpush1.msra.mxu0 %v526
    %1593 = vmatprep.mubr.f32.mxu0 %v1435
    %1594 = vmatmul.mubr.f32.gmra.mrb[0].mxu0 %v1278
    %v1595 = vpop.f32.mrb[0].mxu0
    %v1596 = vadd.f32 %v278, %v1595
    %v1597 = vpop.f32.mrb[0].mxu0
    %v1598 = vadd.f32 %v282, %v1597
    %1599 = vdwg.mxu0
    %1600 = vmatprep.subr.mxu0 0.0
    %1601 = vmatpush1.msra.mxu0 %v435
    %1602 = vmatprep.subr.mxu0 0.0
    %1603 = vmatpush1.msra.mxu0 %v438
    %1604 = vmatprep.subr.mxu0 0.0
    %1605 = vmatpush1.msra.mxu0 %v441
    %1606 = vmatprep.subr.mxu0 0.0
    %1607 = vmatpush1.msra.mxu0 %v444
    %1608 = vmatprep.subr.mxu0 0.0
    %1609 = vmatpush1.msra.mxu0 %v447
    %1610 = vmatprep.subr.mxu0 0.0
    %1611 = vmatpush1.msra.mxu0 %v450
    %1612 = vmatprep.subr.mxu0 0.0
    %1613 = vmatpush1.msra.mxu0 %v453
    %1614 = vmatprep.subr.mxu0 0.0
    %1615 = vmatpush1.msra.mxu0 %v456
    %1616 = vmatprep.subr.mxu0 0.0
    %1617 = vmatpush1.msra.mxu0 %v459
    %1618 = vmatprep.subr.mxu0 0.0
    %1619 = vmatpush1.msra.mxu0 %v462
    %1620 = vmatprep.subr.mxu0 0.0
    %1621 = vmatpush1.msra.mxu0 %v465
    %1622 = vmatprep.subr.mxu0 0.0
    %1623 = vmatpush1.msra.mxu0 %v468
    %1624 = vmatprep.subr.mxu0 0.0
    %1625 = vmatpush1.msra.mxu0 %v471
    %1626 = vmatprep.subr.mxu0 0.0
    %1627 = vmatpush1.msra.mxu0 %v474
    %1628 = vmatprep.subr.mxu0 0.0
    %1629 = vmatpush1.msra.mxu0 %v477
    %1630 = vmatprep.subr.mxu0 0.0
    %1631 = vmatpush1.msra.mxu0 %v480
    %1632 = vmatprep.subr.mxu0 0.0
    %1633 = vmatpush1.msra.mxu0 %v483
    %1634 = vmatprep.subr.mxu0 0.0
    %1635 = vmatpush1.msra.mxu0 %v486
    %1636 = vmatprep.subr.mxu0 0.0
    %1637 = vmatpush1.msra.mxu0 %v489
    %1638 = vmatprep.subr.mxu0 0.0
    %1639 = vmatpush1.msra.mxu0 %v492
    %1640 = vmatprep.subr.mxu0 0.0
    %1641 = vmatpush1.msra.mxu0 %v495
    %1642 = vmatprep.subr.mxu0 0.0
    %1643 = vmatpush1.msra.mxu0 %v498
    %1644 = vmatprep.subr.mxu0 0.0
    %1645 = vmatpush1.msra.mxu0 %v501
    %1646 = vmatprep.subr.mxu0 0.0
    %1647 = vmatpush1.msra.mxu0 %v504
    %1648 = vmatprep.subr.mxu0 0.0
    %1649 = vmatpush1.msra.mxu0 %v507
    %1650 = vmatprep.subr.mxu0 0.0
    %1651 = vmatpush1.msra.mxu0 %v510
    %1652 = vmatprep.subr.mxu0 0.0
    %1653 = vmatpush1.msra.mxu0 %v513
    %1654 = vmatprep.subr.mxu0 0.0
    %1655 = vmatpush1.msra.mxu0 %v516
    %1656 = vmatprep.subr.mxu0 0.0
    %1657 = vmatpush1.msra.mxu0 %v519
    %1658 = vmatprep.subr.mxu0 0.0
    %1659 = vmatpush1.msra.mxu0 %v522
    %1660 = vmatprep.subr.mxu0 0.0
    %1661 = vmatpush1.msra.mxu0 %v525
    %1662 = vmatprep.subr.mxu0 0.0
    %1663 = vmatpush1.msra.mxu0 %v528
    %1664 = vmatprep.mubr.f32.mxu0 %v1435
    %1665 = vmatmul.mubr.f32.gmra.mrb[0].mxu0 %v1278
    %v1666 = vpop.f32.mrb[0].mxu0
    %v1667 = vadd.f32 %v286, %v1666
    %v1668 = vpop.f32.mrb[0].mxu0
    %1669 = vdwg.mxu0
    %v1670 = vxor.u32 %v1596, 2147483648
    %v1671 = vmul.f32 %v1670, 1.442695
    %v1672 = vpow.pop %v1671
    %v1673 = vadd.f32 %v1672, 1.0
    %v1674 = vrcp.pop %v1673
    %v1675 = vmul.f32 1.0, %v1674
    %v1676 = vadd.f32 %v1667, %v271
    %v1677 = vmul.f32 %v1675, %v1676
    %v1678 = vadd.f32 %v1598, %v1677
    %v1679 = vtanh.pop %v1678
    %1680 = vrot.lane.b32.xlu0 %v1675, 64
    %v1681 = vpop.permute.xlu0 %1680
    %v1682 = vsub.f32 1.0, %v1681
    %v1683 = vmul.f32 %v1682, %v1679
    %v1684 = vmul.f32 %v1681, %v1435
    %v1685 = vadd.f32 %v1683, %v1684
    %s1686 = smul.u32 6, 2
    %s1687 = smul.addr %s1686, 8
    %s1688 = scalar_lea.vmem [#allocation2], %s1687
    %v1689 = vld [vmem:[%s1688] sm:$0xff]
    %v1690 = vld [vmem:[%s1688 + $0x8] sm:$0xff]
    %1691 = vmatprep.subr.mxu0 %v314
    %1692 = vmatpush1.msra.mxu0 %v313
    %1693 = vmatprep.subr.mxu0 %v316
    %1694 = vmatpush1.msra.mxu0 %v315
    %1695 = vmatprep.subr.mxu0 %v318
    %1696 = vmatpush1.msra.mxu0 %v317
    %1697 = vmatprep.subr.mxu0 %v320
    %1698 = vmatpush1.msra.mxu0 %v319
    %1699 = vmatprep.subr.mxu0 %v322
    %1700 = vmatpush1.msra.mxu0 %v321
    %1701 = vmatprep.subr.mxu0 %v324
    %1702 = vmatpush1.msra.mxu0 %v323
    %1703 = vmatprep.subr.mxu0 %v326
    %1704 = vmatpush1.msra.mxu0 %v325
    %1705 = vmatprep.subr.mxu0 %v328
    %1706 = vmatpush1.msra.mxu0 %v327
    %1707 = vmatprep.subr.mxu0 %v330
    %1708 = vmatpush1.msra.mxu0 %v329
    %1709 = vmatprep.subr.mxu0 %v332
    %1710 = vmatpush1.msra.mxu0 %v331
    %1711 = vmatprep.subr.mxu0 %v334
    %1712 = vmatpush1.msra.mxu0 %v333
    %1713 = vmatprep.subr.mxu0 %v336
    %1714 = vmatpush1.msra.mxu0 %v335
    %1715 = vmatprep.subr.mxu0 %v338
    %1716 = vmatpush1.msra.mxu0 %v337
    %1717 = vmatprep.subr.mxu0 %v340
    %1718 = vmatpush1.msra.mxu0 %v339
    %1719 = vmatprep.subr.mxu0 %v342
    %1720 = vmatpush1.msra.mxu0 %v341
    %1721 = vmatprep.subr.mxu0 %v344
    %1722 = vmatpush1.msra.mxu0 %v343
    %1723 = vmatprep.subr.mxu0 0.0
    %1724 = vmatpush1.msra.mxu0 0.0
    %1725 = vmatprep.subr.mxu0 0.0
    %1726 = vmatpush1.msra.mxu0 0.0
    %1727 = vmatprep.subr.mxu0 0.0
    %1728 = vmatpush1.msra.mxu0 0.0
    %1729 = vmatprep.subr.mxu0 0.0
    %1730 = vmatpush1.msra.mxu0 0.0
    %1731 = vmatprep.subr.mxu0 0.0
    %1732 = vmatpush1.msra.mxu0 0.0
    %1733 = vmatprep.subr.mxu0 0.0
    %1734 = vmatpush1.msra.mxu0 0.0
    %1735 = vmatprep.subr.mxu0 0.0
    %1736 = vmatpush1.msra.mxu0 0.0
    %1737 = vmatprep.subr.mxu0 0.0
    %1738 = vmatpush1.msra.mxu0 0.0
    %1739 = vmatprep.subr.mxu0 0.0
    %1740 = vmatpush1.msra.mxu0 0.0
    %1741 = vmatprep.subr.mxu0 0.0
    %1742 = vmatpush1.msra.mxu0 0.0
    %1743 = vmatprep.subr.mxu0 0.0
    %1744 = vmatpush1.msra.mxu0 0.0
    %1745 = vmatprep.subr.mxu0 0.0
    %1746 = vmatpush1.msra.mxu0 0.0
    %1747 = vmatprep.subr.mxu0 0.0
    %1748 = vmatpush1.msra.mxu0 0.0
    %1749 = vmatprep.subr.mxu0 0.0
    %1750 = vmatpush1.msra.mxu0 0.0
    %1751 = vmatprep.subr.mxu0 0.0
    %1752 = vmatpush1.msra.mxu0 0.0
    %1753 = vmatprep.subr.mxu0 0.0
    %1754 = vmatpush1.msra.mxu0 0.0
    %1755 = vmatprep.mubr.f32.mxu0 0.0
    %1756 = vmatmul.mubr.f32.gmra.mrb[0].mxu0 %v1528
    %v1757 = vpop.f32.mrb[0].mxu0
    %v1758 = vadd.f32 0.0, %v1757
    %v1759 = vpop.f32.mrb[0].mxu0
    %v1760 = vadd.f32 0.0, %v1759
    %1761 = vdwg.mxu0
    %v1762 = vadd.f32 %v1689, %v1758
    %v1763 = vxor.u32 %v1762, 2147483648
    %v1764 = vmul.f32 %v1763, 1.442695
    %v1765 = vpow.pop %v1764
    %v1766 = vadd.f32 %v1765, 1.0
    %v1767 = vrcp.pop %v1766
    %v1768 = vmul.f32 1.0, %v1767
    %v1769 = vadd.f32 %v1760, %v264
    %v1770 = vmul.f32 %v1768, %v1769
    %v1771 = vadd.f32 %v1690, %v1770
    %v1772 = vtanh.pop %v1771
    %1773 = vrot.lane.b32.xlu0 %v1768, 64
    %v1774 = vpop.permute.xlu0 %1773
    %v1775 = vsub.f32 1.0, %v1774
    %v1776 = vmul.f32 %v1775, %v1772
    %v1777 = vmul.f32 %v1774, %v1528
    %v1778 = vadd.f32 %v1776, %v1777
    %1779 = vmatprep.subr.mxu0 %v434
    %1780 = vmatpush1.msra.mxu0 %v433
    %1781 = vmatprep.subr.mxu0 %v437
    %1782 = vmatpush1.msra.mxu0 %v436
    %1783 = vmatprep.subr.mxu0 %v440
    %1784 = vmatpush1.msra.mxu0 %v439
    %1785 = vmatprep.subr.mxu0 %v443
    %1786 = vmatpush1.msra.mxu0 %v442
    %1787 = vmatprep.subr.mxu0 %v446
    %1788 = vmatpush1.msra.mxu0 %v445
    %1789 = vmatprep.subr.mxu0 %v449
    %1790 = vmatpush1.msra.mxu0 %v448
    %1791 = vmatprep.subr.mxu0 %v452
    %1792 = vmatpush1.msra.mxu0 %v451
    %1793 = vmatprep.subr.mxu0 %v455
    %1794 = vmatpush1.msra.mxu0 %v454
    %1795 = vmatprep.subr.mxu0 %v458
    %1796 = vmatpush1.msra.mxu0 %v457
    %1797 = vmatprep.subr.mxu0 %v461
    %1798 = vmatpush1.msra.mxu0 %v460
    %1799 = vmatprep.subr.mxu0 %v464
    %1800 = vmatpush1.msra.mxu0 %v463
    %1801 = vmatprep.subr.mxu0 %v467
    %1802 = vmatpush1.msra.mxu0 %v466
    %1803 = vmatprep.subr.mxu0 %v470
    %1804 = vmatpush1.msra.mxu0 %v469
    %1805 = vmatprep.subr.mxu0 %v473
    %1806 = vmatpush1.msra.mxu0 %v472
    %1807 = vmatprep.subr.mxu0 %v476
    %1808 = vmatpush1.msra.mxu0 %v475
    %1809 = vmatprep.subr.mxu0 %v479
    %1810 = vmatpush1.msra.mxu0 %v478
    %1811 = vmatprep.subr.mxu0 %v482
    %1812 = vmatpush1.msra.mxu0 %v481
    %1813 = vmatprep.subr.mxu0 %v485
    %1814 = vmatpush1.msra.mxu0 %v484
    %1815 = vmatprep.subr.mxu0 %v488
    %1816 = vmatpush1.msra.mxu0 %v487
    %1817 = vmatprep.subr.mxu0 %v491
    %1818 = vmatpush1.msra.mxu0 %v490
    %1819 = vmatprep.subr.mxu0 %v494
    %1820 = vmatpush1.msra.mxu0 %v493
    %1821 = vmatprep.subr.mxu0 %v497
    %1822 = vmatpush1.msra.mxu0 %v496
    %1823 = vmatprep.subr.mxu0 %v500
    %1824 = vmatpush1.msra.mxu0 %v499
    %1825 = vmatprep.subr.mxu0 %v503
    %1826 = vmatpush1.msra.mxu0 %v502
    %1827 = vmatprep.subr.mxu0 %v506
    %1828 = vmatpush1.msra.mxu0 %v505
    %1829 = vmatprep.subr.mxu0 %v509
    %1830 = vmatpush1.msra.mxu0 %v508
    %1831 = vmatprep.subr.mxu0 %v512
    %1832 = vmatpush1.msra.mxu0 %v511
    %1833 = vmatprep.subr.mxu0 %v515
    %1834 = vmatpush1.msra.mxu0 %v514
    %1835 = vmatprep.subr.mxu0 %v518
    %1836 = vmatpush1.msra.mxu0 %v517
    %1837 = vmatprep.subr.mxu0 %v521
    %1838 = vmatpush1.msra.mxu0 %v520
    %1839 = vmatprep.subr.mxu0 %v524
    %1840 = vmatpush1.msra.mxu0 %v523
    %1841 = vmatprep.subr.mxu0 %v527
    %1842 = vmatpush1.msra.mxu0 %v526
    %1843 = vmatprep.mubr.f32.mxu0 %v1685
    %1844 = vmatmul.mubr.f32.gmra.mrb[0].mxu0 %v1528
    %v1845 = vpop.f32.mrb[0].mxu0
    %v1846 = vadd.f32 %v278, %v1845
    %v1847 = vpop.f32.mrb[0].mxu0
    %v1848 = vadd.f32 %v282, %v1847
    %1849 = vdwg.mxu0
    %1850 = vmatprep.subr.mxu0 0.0
    %1851 = vmatpush1.msra.mxu0 %v435
    %1852 = vmatprep.subr.mxu0 0.0
    %1853 = vmatpush1.msra.mxu0 %v438
    %1854 = vmatprep.subr.mxu0 0.0
    %1855 = vmatpush1.msra.mxu0 %v441
    %1856 = vmatprep.subr.mxu0 0.0
    %1857 = vmatpush1.msra.mxu0 %v444
    %1858 = vmatprep.subr.mxu0 0.0
    %1859 = vmatpush1.msra.mxu0 %v447
    %1860 = vmatprep.subr.mxu0 0.0
    %1861 = vmatpush1.msra.mxu0 %v450
    %1862 = vmatprep.subr.mxu0 0.0
    %1863 = vmatpush1.msra.mxu0 %v453
    %1864 = vmatprep.subr.mxu0 0.0
    %1865 = vmatpush1.msra.mxu0 %v456
    %1866 = vmatprep.subr.mxu0 0.0
    %1867 = vmatpush1.msra.mxu0 %v459
    %1868 = vmatprep.subr.mxu0 0.0
    %1869 = vmatpush1.msra.mxu0 %v462
    %1870 = vmatprep.subr.mxu0 0.0
    %1871 = vmatpush1.msra.mxu0 %v465
    %1872 = vmatprep.subr.mxu0 0.0
    %1873 = vmatpush1.msra.mxu0 %v468
    %1874 = vmatprep.subr.mxu0 0.0
    %1875 = vmatpush1.msra.mxu0 %v471
    %1876 = vmatprep.subr.mxu0 0.0
    %1877 = vmatpush1.msra.mxu0 %v474
    %1878 = vmatprep.subr.mxu0 0.0
    %1879 = vmatpush1.msra.mxu0 %v477
    %1880 = vmatprep.subr.mxu0 0.0
    %1881 = vmatpush1.msra.mxu0 %v480
    %1882 = vmatprep.subr.mxu0 0.0
    %1883 = vmatpush1.msra.mxu0 %v483
    %1884 = vmatprep.subr.mxu0 0.0
    %1885 = vmatpush1.msra.mxu0 %v486
    %1886 = vmatprep.subr.mxu0 0.0
    %1887 = vmatpush1.msra.mxu0 %v489
    %1888 = vmatprep.subr.mxu0 0.0
    %1889 = vmatpush1.msra.mxu0 %v492
    %1890 = vmatprep.subr.mxu0 0.0
    %1891 = vmatpush1.msra.mxu0 %v495
    %1892 = vmatprep.subr.mxu0 0.0
    %1893 = vmatpush1.msra.mxu0 %v498
    %1894 = vmatprep.subr.mxu0 0.0
    %1895 = vmatpush1.msra.mxu0 %v501
    %1896 = vmatprep.subr.mxu0 0.0
    %1897 = vmatpush1.msra.mxu0 %v504
    %1898 = vmatprep.subr.mxu0 0.0
    %1899 = vmatpush1.msra.mxu0 %v507
    %1900 = vmatprep.subr.mxu0 0.0
    %1901 = vmatpush1.msra.mxu0 %v510
    %1902 = vmatprep.subr.mxu0 0.0
    %1903 = vmatpush1.msra.mxu0 %v513
    %1904 = vmatprep.subr.mxu0 0.0
    %1905 = vmatpush1.msra.mxu0 %v516
    %1906 = vmatprep.subr.mxu0 0.0
    %1907 = vmatpush1.msra.mxu0 %v519
    %1908 = vmatprep.subr.mxu0 0.0
    %1909 = vmatpush1.msra.mxu0 %v522
    %1910 = vmatprep.subr.mxu0 0.0
    %1911 = vmatpush1.msra.mxu0 %v525
    %1912 = vmatprep.subr.mxu0 0.0
    %1913 = vmatpush1.msra.mxu0 %v528
    %1914 = vmatprep.mubr.f32.mxu0 %v1685
    %1915 = vmatmul.mubr.f32.gmra.mrb[0].mxu0 %v1528
    %v1916 = vpop.f32.mrb[0].mxu0
    %v1917 = vadd.f32 %v286, %v1916
    %v1918 = vpop.f32.mrb[0].mxu0
    %1919 = vdwg.mxu0
    %v1920 = vxor.u32 %v1846, 2147483648
    %v1921 = vmul.f32 %v1920, 1.442695
    %v1922 = vpow.pop %v1921
    %v1923 = vadd.f32 %v1922, 1.0
    %v1924 = vrcp.pop %v1923
    %v1925 = vmul.f32 1.0, %v1924
    %v1926 = vadd.f32 %v1917, %v271
    %v1927 = vmul.f32 %v1925, %v1926
    %v1928 = vadd.f32 %v1848, %v1927
    %v1929 = vtanh.pop %v1928
    %1930 = vrot.lane.b32.xlu0 %v1925, 64
    %v1931 = vpop.permute.xlu0 %1930
    %v1932 = vsub.f32 1.0, %v1931
    %v1933 = vmul.f32 %v1932, %v1929
    %v1934 = vmul.f32 %v1931, %v1685
    %v1935 = vadd.f32 %v1933, %v1934
    %s1936 = smul.u32 7, 2
    %s1937 = smul.addr %s1936, 8
    %s1938 = scalar_lea.vmem [#allocation2], %s1937
    %v1939 = vld [vmem:[%s1938] sm:$0xff]
    %v1940 = vld [vmem:[%s1938 + $0x8] sm:$0xff]
    %1941 = vmatprep.subr.mxu0 %v314
    %1942 = vmatpush1.msra.mxu0 %v313
    %1943 = vmatprep.subr.mxu0 %v316
    %1944 = vmatpush1.msra.mxu0 %v315
    %1945 = vmatprep.subr.mxu0 %v318
    %1946 = vmatpush1.msra.mxu0 %v317
    %1947 = vmatprep.subr.mxu0 %v320
    %1948 = vmatpush1.msra.mxu0 %v319
    %1949 = vmatprep.subr.mxu0 %v322
    %1950 = vmatpush1.msra.mxu0 %v321
    %1951 = vmatprep.subr.mxu0 %v324
    %1952 = vmatpush1.msra.mxu0 %v323
    %1953 = vmatprep.subr.mxu0 %v326
    %1954 = vmatpush1.msra.mxu0 %v325
    %1955 = vmatprep.subr.mxu0 %v328
    %1956 = vmatpush1.msra.mxu0 %v327
    %1957 = vmatprep.subr.mxu0 %v330
    %1958 = vmatpush1.msra.mxu0 %v329
    %1959 = vmatprep.subr.mxu0 %v332
    %1960 = vmatpush1.msra.mxu0 %v331
    %1961 = vmatprep.subr.mxu0 %v334
    %1962 = vmatpush1.msra.mxu0 %v333
    %1963 = vmatprep.subr.mxu0 %v336
    %1964 = vmatpush1.msra.mxu0 %v335
    %1965 = vmatprep.subr.mxu0 %v338
    %1966 = vmatpush1.msra.mxu0 %v337
    %1967 = vmatprep.subr.mxu0 %v340
    %1968 = vmatpush1.msra.mxu0 %v339
    %1969 = vmatprep.subr.mxu0 %v342
    %1970 = vmatpush1.msra.mxu0 %v341
    %1971 = vmatprep.subr.mxu0 %v344
    %1972 = vmatpush1.msra.mxu0 %v343
    %1973 = vmatprep.subr.mxu0 0.0
    %1974 = vmatpush1.msra.mxu0 0.0
    %1975 = vmatprep.subr.mxu0 0.0
    %1976 = vmatpush1.msra.mxu0 0.0
    %1977 = vmatprep.subr.mxu0 0.0
    %1978 = vmatpush1.msra.mxu0 0.0
    %1979 = vmatprep.subr.mxu0 0.0
    %1980 = vmatpush1.msra.mxu0 0.0
    %1981 = vmatprep.subr.mxu0 0.0
    %1982 = vmatpush1.msra.mxu0 0.0
    %1983 = vmatprep.subr.mxu0 0.0
    %1984 = vmatpush1.msra.mxu0 0.0
    %1985 = vmatprep.subr.mxu0 0.0
    %1986 = vmatpush1.msra.mxu0 0.0
    %1987 = vmatprep.subr.mxu0 0.0
    %1988 = vmatpush1.msra.mxu0 0.0
    %1989 = vmatprep.subr.mxu0 0.0
    %1990 = vmatpush1.msra.mxu0 0.0
    %1991 = vmatprep.subr.mxu0 0.0
    %1992 = vmatpush1.msra.mxu0 0.0
    %1993 = vmatprep.subr.mxu0 0.0
    %1994 = vmatpush1.msra.mxu0 0.0
    %1995 = vmatprep.subr.mxu0 0.0
    %1996 = vmatpush1.msra.mxu0 0.0
    %1997 = vmatprep.subr.mxu0 0.0
    %1998 = vmatpush1.msra.mxu0 0.0
    %1999 = vmatprep.subr.mxu0 0.0
    %2000 = vmatpush1.msra.mxu0 0.0
    %2001 = vmatprep.subr.mxu0 0.0
    %2002 = vmatpush1.msra.mxu0 0.0
    %2003 = vmatprep.subr.mxu0 0.0
    %2004 = vmatpush1.msra.mxu0 0.0
    %2005 = vmatprep.mubr.f32.mxu0 0.0
    %2006 = vmatmul.mubr.f32.gmra.mrb[0].mxu0 %v1778
    %v2007 = vpop.f32.mrb[0].mxu0
    %v2008 = vadd.f32 0.0, %v2007
    %v2009 = vpop.f32.mrb[0].mxu0
    %v2010 = vadd.f32 0.0, %v2009
    %2011 = vdwg.mxu0
    %v2012 = vadd.f32 %v1939, %v2008
    %v2013 = vxor.u32 %v2012, 2147483648
    %v2014 = vmul.f32 %v2013, 1.442695
    %v2015 = vpow.pop %v2014
    %v2016 = vadd.f32 %v2015, 1.0
    %v2017 = vrcp.pop %v2016
    %v2018 = vmul.f32 1.0, %v2017
    %v2019 = vadd.f32 %v2010, %v264
    %v2020 = vmul.f32 %v2018, %v2019
    %v2021 = vadd.f32 %v1940, %v2020
    %v2022 = vtanh.pop %v2021
    %2023 = vrot.lane.b32.xlu0 %v2018, 64
    %v2024 = vpop.permute.xlu0 %2023
    %v2025 = vsub.f32 1.0, %v2024
    %v2026 = vmul.f32 %v2025, %v2022
    %v2027 = vmul.f32 %v2024, %v1778
    %v2028 = vadd.f32 %v2026, %v2027
    %2029 = vmatprep.subr.mxu0 %v434
    %2030 = vmatpush1.msra.mxu0 %v433
    %2031 = vmatprep.subr.mxu0 %v437
    %2032 = vmatpush1.msra.mxu0 %v436
    %2033 = vmatprep.subr.mxu0 %v440
    %2034 = vmatpush1.msra.mxu0 %v439
    %2035 = vmatprep.subr.mxu0 %v443
    %2036 = vmatpush1.msra.mxu0 %v442
    %2037 = vmatprep.subr.mxu0 %v446
    %2038 = vmatpush1.msra.mxu0 %v445
    %2039 = vmatprep.subr.mxu0 %v449
    %2040 = vmatpush1.msra.mxu0 %v448
    %2041 = vmatprep.subr.mxu0 %v452
    %2042 = vmatpush1.msra.mxu0 %v451
    %2043 = vmatprep.subr.mxu0 %v455
    %2044 = vmatpush1.msra.mxu0 %v454
    %2045 = vmatprep.subr.mxu0 %v458
    %2046 = vmatpush1.msra.mxu0 %v457
    %2047 = vmatprep.subr.mxu0 %v461
    %2048 = vmatpush1.msra.mxu0 %v460
    %2049 = vmatprep.subr.mxu0 %v464
    %2050 = vmatpush1.msra.mxu0 %v463
    %2051 = vmatprep.subr.mxu0 %v467
    %2052 = vmatpush1.msra.mxu0 %v466
    %2053 = vmatprep.subr.mxu0 %v470
    %2054 = vmatpush1.msra.mxu0 %v469
    %2055 = vmatprep.subr.mxu0 %v473
    %2056 = vmatpush1.msra.mxu0 %v472
    %2057 = vmatprep.subr.mxu0 %v476
    %2058 = vmatpush1.msra.mxu0 %v475
    %2059 = vmatprep.subr.mxu0 %v479
    %2060 = vmatpush1.msra.mxu0 %v478
    %2061 = vmatprep.subr.mxu0 %v482
    %2062 = vmatpush1.msra.mxu0 %v481
    %2063 = vmatprep.subr.mxu0 %v485
    %2064 = vmatpush1.msra.mxu0 %v484
    %2065 = vmatprep.subr.mxu0 %v488
    %2066 = vmatpush1.msra.mxu0 %v487
    %2067 = vmatprep.subr.mxu0 %v491
    %2068 = vmatpush1.msra.mxu0 %v490
    %2069 = vmatprep.subr.mxu0 %v494
    %2070 = vmatpush1.msra.mxu0 %v493
    %2071 = vmatprep.subr.mxu0 %v497
    %2072 = vmatpush1.msra.mxu0 %v496
    %2073 = vmatprep.subr.mxu0 %v500
    %2074 = vmatpush1.msra.mxu0 %v499
    %2075 = vmatprep.subr.mxu0 %v503
    %2076 = vmatpush1.msra.mxu0 %v502
    %2077 = vmatprep.subr.mxu0 %v506
    %2078 = vmatpush1.msra.mxu0 %v505
    %2079 = vmatprep.subr.mxu0 %v509
    %2080 = vmatpush1.msra.mxu0 %v508
    %2081 = vmatprep.subr.mxu0 %v512
    %2082 = vmatpush1.msra.mxu0 %v511
    %2083 = vmatprep.subr.mxu0 %v515
    %2084 = vmatpush1.msra.mxu0 %v514
    %2085 = vmatprep.subr.mxu0 %v518
    %2086 = vmatpush1.msra.mxu0 %v517
    %2087 = vmatprep.subr.mxu0 %v521
    %2088 = vmatpush1.msra.mxu0 %v520
    %2089 = vmatprep.subr.mxu0 %v524
    %2090 = vmatpush1.msra.mxu0 %v523
    %2091 = vmatprep.subr.mxu0 %v527
    %2092 = vmatpush1.msra.mxu0 %v526
    %2093 = vmatprep.mubr.f32.mxu0 %v1935
    %2094 = vmatmul.mubr.f32.gmra.mrb[0].mxu0 %v1778
    %v2095 = vpop.f32.mrb[0].mxu0
    %v2096 = vadd.f32 %v278, %v2095
    %v2097 = vpop.f32.mrb[0].mxu0
    %v2098 = vadd.f32 %v282, %v2097
    %2099 = vdwg.mxu0
    %2100 = vmatprep.subr.mxu0 0.0
    %2101 = vmatpush1.msra.mxu0 %v435
    %2102 = vmatprep.subr.mxu0 0.0
    %2103 = vmatpush1.msra.mxu0 %v438
    %2104 = vmatprep.subr.mxu0 0.0
    %2105 = vmatpush1.msra.mxu0 %v441
    %2106 = vmatprep.subr.mxu0 0.0
    %2107 = vmatpush1.msra.mxu0 %v444
    %2108 = vmatprep.subr.mxu0 0.0
    %2109 = vmatpush1.msra.mxu0 %v447
    %2110 = vmatprep.subr.mxu0 0.0
    %2111 = vmatpush1.msra.mxu0 %v450
    %2112 = vmatprep.subr.mxu0 0.0
    %2113 = vmatpush1.msra.mxu0 %v453
    %2114 = vmatprep.subr.mxu0 0.0
    %2115 = vmatpush1.msra.mxu0 %v456
    %2116 = vmatprep.subr.mxu0 0.0
    %2117 = vmatpush1.msra.mxu0 %v459
    %2118 = vmatprep.subr.mxu0 0.0
    %2119 = vmatpush1.msra.mxu0 %v462
    %2120 = vmatprep.subr.mxu0 0.0
    %2121 = vmatpush1.msra.mxu0 %v465
    %2122 = vmatprep.subr.mxu0 0.0
    %2123 = vmatpush1.msra.mxu0 %v468
    %2124 = vmatprep.subr.mxu0 0.0
    %2125 = vmatpush1.msra.mxu0 %v471
    %2126 = vmatprep.subr.mxu0 0.0
    %2127 = vmatpush1.msra.mxu0 %v474
    %2128 = vmatprep.subr.mxu0 0.0
    %2129 = vmatpush1.msra.mxu0 %v477
    %2130 = vmatprep.subr.mxu0 0.0
    %2131 = vmatpush1.msra.mxu0 %v480
    %2132 = vmatprep.subr.mxu0 0.0
    %2133 = vmatpush1.msra.mxu0 %v483
    %2134 = vmatprep.subr.mxu0 0.0
    %2135 = vmatpush1.msra.mxu0 %v486
    %2136 = vmatprep.subr.mxu0 0.0
    %2137 = vmatpush1.msra.mxu0 %v489
    %2138 = vmatprep.subr.mxu0 0.0
    %2139 = vmatpush1.msra.mxu0 %v492
    %2140 = vmatprep.subr.mxu0 0.0
    %2141 = vmatpush1.msra.mxu0 %v495
    %2142 = vmatprep.subr.mxu0 0.0
    %2143 = vmatpush1.msra.mxu0 %v498
    %2144 = vmatprep.subr.mxu0 0.0
    %2145 = vmatpush1.msra.mxu0 %v501
    %2146 = vmatprep.subr.mxu0 0.0
    %2147 = vmatpush1.msra.mxu0 %v504
    %2148 = vmatprep.subr.mxu0 0.0
    %2149 = vmatpush1.msra.mxu0 %v507
    %2150 = vmatprep.subr.mxu0 0.0
    %2151 = vmatpush1.msra.mxu0 %v510
    %2152 = vmatprep.subr.mxu0 0.0
    %2153 = vmatpush1.msra.mxu0 %v513
    %2154 = vmatprep.subr.mxu0 0.0
    %2155 = vmatpush1.msra.mxu0 %v516
    %2156 = vmatprep.subr.mxu0 0.0
    %2157 = vmatpush1.msra.mxu0 %v519
    %2158 = vmatprep.subr.mxu0 0.0
    %2159 = vmatpush1.msra.mxu0 %v522
    %2160 = vmatprep.subr.mxu0 0.0
    %2161 = vmatpush1.msra.mxu0 %v525
    %2162 = vmatprep.subr.mxu0 0.0
    %2163 = vmatpush1.msra.mxu0 %v528
    %2164 = vmatprep.mubr.f32.mxu0 %v1935
    %2165 = vmatmul.mubr.f32.gmra.mrb[0].mxu0 %v1778
    %v2166 = vpop.f32.mrb[0].mxu0
    %v2167 = vadd.f32 %v286, %v2166
    %v2168 = vpop.f32.mrb[0].mxu0
    %2169 = vdwg.mxu0
    %v2170 = vxor.u32 %v2096, 2147483648
    %v2171 = vmul.f32 %v2170, 1.442695
    %v2172 = vpow.pop %v2171
    %v2173 = vadd.f32 %v2172, 1.0
    %v2174 = vrcp.pop %v2173
    %v2175 = vmul.f32 1.0, %v2174
    %v2176 = vadd.f32 %v2167, %v271
    %v2177 = vmul.f32 %v2175, %v2176
    %v2178 = vadd.f32 %v2098, %v2177
    %v2179 = vtanh.pop %v2178
    %2180 = vrot.lane.b32.xlu0 %v2175, 64
    %v2181 = vpop.permute.xlu0 %2180
    %v2182 = vsub.f32 1.0, %v2181
    %v2183 = vmul.f32 %v2182, %v2179
    %v2184 = vmul.f32 %v2181, %v1935
    %v2185 = vadd.f32 %v2183, %v2184
    %2186 = vmatprep.subr.mxu0 %v434
    %2187 = vmatpush1.msra.mxu0 %v433
    %2188 = vmatprep.subr.mxu0 %v437
    %2189 = vmatpush1.msra.mxu0 %v436
    %2190 = vmatprep.subr.mxu0 %v440
    %2191 = vmatpush1.msra.mxu0 %v439
    %2192 = vmatprep.subr.mxu0 %v443
    %2193 = vmatpush1.msra.mxu0 %v442
    %2194 = vmatprep.subr.mxu0 %v446
    %2195 = vmatpush1.msra.mxu0 %v445
    %2196 = vmatprep.subr.mxu0 %v449
    %2197 = vmatpush1.msra.mxu0 %v448
    %2198 = vmatprep.subr.mxu0 %v452
    %2199 = vmatpush1.msra.mxu0 %v451
    %2200 = vmatprep.subr.mxu0 %v455
    %2201 = vmatpush1.msra.mxu0 %v454
    %2202 = vmatprep.subr.mxu0 %v458
    %2203 = vmatpush1.msra.mxu0 %v457
    %2204 = vmatprep.subr.mxu0 %v461
    %2205 = vmatpush1.msra.mxu0 %v460
    %2206 = vmatprep.subr.mxu0 %v464
    %2207 = vmatpush1.msra.mxu0 %v463
    %2208 = vmatprep.subr.mxu0 %v467
    %2209 = vmatpush1.msra.mxu0 %v466
    %2210 = vmatprep.subr.mxu0 %v470
    %2211 = vmatpush1.msra.mxu0 %v469
    %2212 = vmatprep.subr.mxu0 %v473
    %2213 = vmatpush1.msra.mxu0 %v472
    %2214 = vmatprep.subr.mxu0 %v476
    %2215 = vmatpush1.msra.mxu0 %v475
    %2216 = vmatprep.subr.mxu0 %v479
    %2217 = vmatpush1.msra.mxu0 %v478
    %2218 = vmatprep.subr.mxu0 %v482
    %2219 = vmatpush1.msra.mxu0 %v481
    %2220 = vmatprep.subr.mxu0 %v485
    %2221 = vmatpush1.msra.mxu0 %v484
    %2222 = vmatprep.subr.mxu0 %v488
    %2223 = vmatpush1.msra.mxu0 %v487
    %2224 = vmatprep.subr.mxu0 %v491
    %2225 = vmatpush1.msra.mxu0 %v490
    %2226 = vmatprep.subr.mxu0 %v494
    %2227 = vmatpush1.msra.mxu0 %v493
    %2228 = vmatprep.subr.mxu0 %v497
    %2229 = vmatpush1.msra.mxu0 %v496
    %2230 = vmatprep.subr.mxu0 %v500
    %2231 = vmatpush1.msra.mxu0 %v499
    %2232 = vmatprep.subr.mxu0 %v503
    %2233 = vmatpush1.msra.mxu0 %v502
    %2234 = vmatprep.subr.mxu0 %v506
    %2235 = vmatpush1.msra.mxu0 %v505
    %2236 = vmatprep.subr.mxu0 %v509
    %2237 = vmatpush1.msra.mxu0 %v508
    %2238 = vmatprep.subr.mxu0 %v512
    %2239 = vmatpush1.msra.mxu0 %v511
    %2240 = vmatprep.subr.mxu0 %v515
    %2241 = vmatpush1.msra.mxu0 %v514
    %2242 = vmatprep.subr.mxu0 %v518
    %2243 = vmatpush1.msra.mxu0 %v517
    %2244 = vmatprep.subr.mxu0 %v521
    %2245 = vmatpush1.msra.mxu0 %v520
    %2246 = vmatprep.subr.mxu0 %v524
    %2247 = vmatpush1.msra.mxu0 %v523
    %2248 = vmatprep.subr.mxu0 %v527
    %2249 = vmatpush1.msra.mxu0 %v526
    %2250 = vmatprep.mubr.f32.mxu0 %v2185
    %2251 = vmatmul.mubr.f32.gmra.mrb[0].mxu0 %v2028
    %v2252 = vpop.f32.mrb[0].mxu0
    %v2253 = vadd.f32 %v278, %v2252
    %v2254 = vpop.f32.mrb[0].mxu0
    %v2255 = vadd.f32 %v282, %v2254
    %2256 = vdwg.mxu0
    %2257 = vmatprep.subr.mxu0 0.0
    %2258 = vmatpush1.msra.mxu0 %v435
    %2259 = vmatprep.subr.mxu0 0.0
    %2260 = vmatpush1.msra.mxu0 %v438
    %2261 = vmatprep.subr.mxu0 0.0
    %2262 = vmatpush1.msra.mxu0 %v441
    %2263 = vmatprep.subr.mxu0 0.0
    %2264 = vmatpush1.msra.mxu0 %v444
    %2265 = vmatprep.subr.mxu0 0.0
    %2266 = vmatpush1.msra.mxu0 %v447
    %2267 = vmatprep.subr.mxu0 0.0
    %2268 = vmatpush1.msra.mxu0 %v450
    %2269 = vmatprep.subr.mxu0 0.0
    %2270 = vmatpush1.msra.mxu0 %v453
    %2271 = vmatprep.subr.mxu0 0.0
    %2272 = vmatpush1.msra.mxu0 %v456
    %2273 = vmatprep.subr.mxu0 0.0
    %2274 = vmatpush1.msra.mxu0 %v459
    %2275 = vmatprep.subr.mxu0 0.0
    %2276 = vmatpush1.msra.mxu0 %v462
    %2277 = vmatprep.subr.mxu0 0.0
    %2278 = vmatpush1.msra.mxu0 %v465
    %2279 = vmatprep.subr.mxu0 0.0
    %2280 = vmatpush1.msra.mxu0 %v468
    %2281 = vmatprep.subr.mxu0 0.0
    %2282 = vmatpush1.msra.mxu0 %v471
    %2283 = vmatprep.subr.mxu0 0.0
    %2284 = vmatpush1.msra.mxu0 %v474
    %2285 = vmatprep.subr.mxu0 0.0
    %2286 = vmatpush1.msra.mxu0 %v477
    %2287 = vmatprep.subr.mxu0 0.0
    %2288 = vmatpush1.msra.mxu0 %v480
    %2289 = vmatprep.subr.mxu0 0.0
    %2290 = vmatpush1.msra.mxu0 %v483
    %2291 = vmatprep.subr.mxu0 0.0
    %2292 = vmatpush1.msra.mxu0 %v486
    %2293 = vmatprep.subr.mxu0 0.0
    %2294 = vmatpush1.msra.mxu0 %v489
    %2295 = vmatprep.subr.mxu0 0.0
    %2296 = vmatpush1.msra.mxu0 %v492
    %2297 = vmatprep.subr.mxu0 0.0
    %2298 = vmatpush1.msra.mxu0 %v495
    %2299 = vmatprep.subr.mxu0 0.0
    %2300 = vmatpush1.msra.mxu0 %v498
    %2301 = vmatprep.subr.mxu0 0.0
    %2302 = vmatpush1.msra.mxu0 %v501
    %2303 = vmatprep.subr.mxu0 0.0
    %2304 = vmatpush1.msra.mxu0 %v504
    %2305 = vmatprep.subr.mxu0 0.0
    %2306 = vmatpush1.msra.mxu0 %v507
    %2307 = vmatprep.subr.mxu0 0.0
    %2308 = vmatpush1.msra.mxu0 %v510
    %2309 = vmatprep.subr.mxu0 0.0
    %2310 = vmatpush1.msra.mxu0 %v513
    %2311 = vmatprep.subr.mxu0 0.0
    %2312 = vmatpush1.msra.mxu0 %v516
    %2313 = vmatprep.subr.mxu0 0.0
    %2314 = vmatpush1.msra.mxu0 %v519
    %2315 = vmatprep.subr.mxu0 0.0
    %2316 = vmatpush1.msra.mxu0 %v522
    %2317 = vmatprep.subr.mxu0 0.0
    %2318 = vmatpush1.msra.mxu0 %v525
    %2319 = vmatprep.subr.mxu0 0.0
    %2320 = vmatpush1.msra.mxu0 %v528
    %2321 = vmatprep.mubr.f32.mxu0 %v2185
    %2322 = vmatmul.mubr.f32.gmra.mrb[0].mxu0 %v2028
    %v2323 = vpop.f32.mrb[0].mxu0
    %v2324 = vadd.f32 %v286, %v2323
    %v2325 = vpop.f32.mrb[0].mxu0
    %2326 = vdwg.mxu0
    %v2327 = vxor.u32 %v2253, 2147483648
    %v2328 = vmul.f32 %v2327, 1.442695
    %v2329 = vpow.pop %v2328
    %v2330 = vadd.f32 %v2329, 1.0
    %v2331 = vrcp.pop %v2330
    %v2332 = vmul.f32 1.0, %v2331
    %v2333 = vadd.f32 %v2324, %v271
    %v2334 = vmul.f32 %v2332, %v2333
    %v2335 = vadd.f32 %v2255, %v2334
    %v2336 = vtanh.pop %v2335
    %2337 = vrot.lane.b32.xlu0 %v2332, 64
    %v2338 = vpop.permute.xlu0 %2337
    %v2339 = vsub.f32 1.0, %v2338
    %v2340 = vmul.f32 %v2339, %v2336
    %v2341 = vmul.f32 %v2338, %v2185
    %v2342 = vadd.f32 %v2340, %v2341
    %v2343 = vlaneseq
    %v2344 = vand.u32 %v2343, 127
    %vm2345 = vcmp.lt.s32.totalorder %v2344, 64
    %v2346 = vsel %vm2345, 1, 0
    %v2347 = vcvt.s32.f32 %v2346
    %v2348 = vmul.f32 %v2342, %v2347
    %2349 = vadd.xlane.f32.xlu0 %v2348
    %v2350 = vpop.xlane.xlu0 %2349
    %v2351 = vmul.f32 %v2350, 0.015625
    %v2352 = vsub.f32 %v2348, %v2351
    %v2353 = vmul.f32 %v2352, %v2347
    %v2354 = vmul.f32 %v2353, %v2353
    %2355 = vadd.xlane.f32.xlu0 %v2354
    %v2356 = vpop.xlane.xlu0 %2355
    %v2357 = vmul.f32 %v2356, 0.015625
    %v2358 = vadd.f32 %v2357, 1e-05
    %v2359 = vrsqrt.pop %v2358
    %v2360 = vmul.f32 %v2353, %v2359
    %v2361 = vld [vmem:[%s8] sm:$0x1]
    %v2363 = vlaneseq
    %v2364 = vshrl.u32 %v2363, 7
    %v2365 = vsub.s32 0, %v2364
    %v2366 = vrot.slane %v2361, %v2365
    %v2368 = vmul.f32 %v2360, %v2366
    %v2369 = vld [vmem:[%s9] sm:$0x1]
    %v2371 = vlaneseq
    %v2372 = vshrl.u32 %v2371, 7
    %v2373 = vsub.s32 0, %v2372
    %v2374 = vrot.slane %v2369, %v2373
    %v2376 = vadd.f32 %v2368, %v2374
    %v2377 = vld [vmem:[#allocation8] sm:$0xff]
    %v2378 = vld [vmem:[#allocation8 + $0x8] sm:$0xff]
    %v2379 = vld [vmem:[#allocation8 + $0x10] sm:$0xff]
    %v2380 = vld [vmem:[#allocation8 + $0x18] sm:$0xff]
    %v2381 = vld [vmem:[#allocation8 + $0x20] sm:$0xff]
    %v2382 = vld [vmem:[#allocation8 + $0x28] sm:$0xff]
    %v2383 = vld [vmem:[#allocation8 + $0x30] sm:$0xff]
    %v2384 = vld [vmem:[#allocation8 + $0x38] sm:$0xff]
    %v2385 = vld [vmem:[#allocation8 + $0x40] sm:$0xff]
    %v2386 = vld [vmem:[#allocation8 + $0x48] sm:$0xff]
    %v2387 = vld [vmem:[#allocation8 + $0x50] sm:$0xff]
    %v2388 = vld [vmem:[#allocation8 + $0x58] sm:$0xff]
    %v2389 = vld [vmem:[#allocation8 + $0x60] sm:$0xff]
    %v2390 = vld [vmem:[#allocation8 + $0x68] sm:$0xff]
    %v2391 = vld [vmem:[#allocation8 + $0x70] sm:$0xff]
    %v2392 = vld [vmem:[#allocation8 + $0x78] sm:$0xff]
    %v2393 = vld [vmem:[%s11] sm:$0x1]
    %v2395 = vlaneseq
    %v2396 = vshrl.u32 %v2395, 7
    %v2397 = vsub.s32 0, %v2396
    %v2398 = vrot.slane %v2393, %v2397
    %2400 = vmatprep.subr.mxu0 0.0
    %2401 = vmatpush1.msra.mxu0 %v2377
    %2402 = vmatprep.subr.mxu0 0.0
    %2403 = vmatpush1.msra.mxu0 %v2378
    %2404 = vmatprep.subr.mxu0 0.0
    %2405 = vmatpush1.msra.mxu0 %v2379
    %2406 = vmatprep.subr.mxu0 0.0
    %2407 = vmatpush1.msra.mxu0 %v2380
    %2408 = vmatprep.subr.mxu0 0.0
    %2409 = vmatpush1.msra.mxu0 %v2381
    %2410 = vmatprep.subr.mxu0 0.0
    %2411 = vmatpush1.msra.mxu0 %v2382
    %2412 = vmatprep.subr.mxu0 0.0
    %2413 = vmatpush1.msra.mxu0 %v2383
    %2414 = vmatprep.subr.mxu0 0.0
    %2415 = vmatpush1.msra.mxu0 %v2384
    %2416 = vmatprep.subr.mxu0 0.0
    %2417 = vmatpush1.msra.mxu0 %v2385
    %2418 = vmatprep.subr.mxu0 0.0
    %2419 = vmatpush1.msra.mxu0 %v2386
    %2420 = vmatprep.subr.mxu0 0.0
    %2421 = vmatpush1.msra.mxu0 %v2387
    %2422 = vmatprep.subr.mxu0 0.0
    %2423 = vmatpush1.msra.mxu0 %v2388
    %2424 = vmatprep.subr.mxu0 0.0
    %2425 = vmatpush1.msra.mxu0 %v2389
    %2426 = vmatprep.subr.mxu0 0.0
    %2427 = vmatpush1.msra.mxu0 %v2390
    %2428 = vmatprep.subr.mxu0 0.0
    %2429 = vmatpush1.msra.mxu0 %v2391
    %2430 = vmatprep.subr.mxu0 0.0
    %2431 = vmatpush1.msra.mxu0 %v2392
    %2432 = vmatprep.subr.mxu0 0.0
    %2433 = vmatpush1.msra.mxu0 0.0
    %2434 = vmatprep.subr.mxu0 0.0
    %2435 = vmatpush1.msra.mxu0 0.0
    %2436 = vmatprep.subr.mxu0 0.0
    %2437 = vmatpush1.msra.mxu0 0.0
    %2438 = vmatprep.subr.mxu0 0.0
    %2439 = vmatpush1.msra.mxu0 0.0
    %2440 = vmatprep.subr.mxu0 0.0
    %2441 = vmatpush1.msra.mxu0 0.0
    %2442 = vmatprep.subr.mxu0 0.0
    %2443 = vmatpush1.msra.mxu0 0.0
    %2444 = vmatprep.subr.mxu0 0.0
    %2445 = vmatpush1.msra.mxu0 0.0
    %2446 = vmatprep.subr.mxu0 0.0
    %2447 = vmatpush1.msra.mxu0 0.0
    %2448 = vmatprep.subr.mxu0 0.0
    %2449 = vmatpush1.msra.mxu0 0.0
    %2450 = vmatprep.subr.mxu0 0.0
    %2451 = vmatpush1.msra.mxu0 0.0
    %2452 = vmatprep.subr.mxu0 0.0
    %2453 = vmatpush1.msra.mxu0 0.0
    %2454 = vmatprep.subr.mxu0 0.0
    %2455 = vmatpush1.msra.mxu0 0.0
    %2456 = vmatprep.subr.mxu0 0.0
    %2457 = vmatpush1.msra.mxu0 0.0
    %2458 = vmatprep.subr.mxu0 0.0
    %2459 = vmatpush1.msra.mxu0 0.0
    %2460 = vmatprep.subr.mxu0 0.0
    %2461 = vmatpush1.msra.mxu0 0.0
    %2462 = vmatprep.subr.mxu0 0.0
    %2463 = vmatpush1.msra.mxu0 0.0
    %2464 = vmatprep.mubr.f32.mxu0 0.0
    %2465 = vmatmul.mubr.f32.gmra.mrb[0].mxu0 %v2376
    %v2466 = vpop.f32.mrb[0].mxu0
    %v2467 = vadd.f32 %v2398, %v2466
    %v2468 = vpop.f32.mrb[0].mxu0
    %2469 = vdwg.mxu0
    %2470 = vst [vmem:[#allocation9] sm:$0xff] %v2467
    // Predicated region
    $region62: #{tpu_custom_call.1} parent=1 // pred_check
      _
    $region63: #{tpu_custom_call.1} parent=1 // pred_check_branch
      %2472 = sbr.rel (0) target = $region65
    $region64: #{tpu_custom_call.1} parent=1 // pred_region
      %s2474 = ssub.s32 128, 128
      %2475 = vsyncadd [#allocation5], %s2474
      %s2477 = sshll.u32 [#allocation9], 4
      %s2478 = int_to_ptr.vmem [resolvable:$true] %s2477
      %2480 = dma.vmem_to_hbm [thread:$0]  %s2478, 128, %s12, [#allocation5]
    $region65: #{tpu_custom_call.1} parent=1 // pred_fallthru
      _
    // Predicated region
    $region66: #{tpu_custom_call.1} parent=1 // pred_check
      _
    $region67: #{tpu_custom_call.1} parent=1 // pred_check_branch
      %2482 = sbr.rel (0) target = $region69
    $region68: #{tpu_custom_call.1} parent=1 // pred_region
      %2483 = dma.done [#allocation5], 128
    $region69: #{tpu_custom_call.1} parent=1 // pred_fallthru
      _
    %2484 = vsyncpa [#allocation4], 1
    %2485 = vsyncpa [#allocation7], 1
    %2486 = vsyncpa [#allocation5], 1

</llo_original>
